<compile_context>
chip_gen: v6e
topology: v6e:2x2x1
jax: 0.10.0
libtpu: 0.0.40
codegen_flags: <defaults>
</compile_context>

<pallas_src>
import numpy as np

import jax
import jax.numpy as jnp
from jax.experimental import pallas as pl
from jax.experimental.pallas import tpu as pltpu


_VMEM = pl.BlockSpec(memory_space=pltpu.MemorySpace.VMEM)


# ------------------------------ fused kernel -------------------------------

def disc_fused_kernel(p1_ref, w1_ref, idx2_ref, w2_ref, gam2_ref, bet2_ref,
                      idx3_ref, w3_ref, gam3_ref, bet3_ref, w4_ref, out_ref):
    f32 = jnp.float32
    bf16 = jnp.bfloat16
    bs = out_ref.shape[0]

    def leaky(y):
        # LeakyReLU(0.2): one VPU op instead of compare+select.
        return jnp.maximum(y, 0.2 * y)

    def batchnorm(y, gam, bet):
        # BatchNorm2d over (N, OH, OW) == the rows of y; centered two-pass
        # variance (better numerics than E[y^2]-E[y]^2).
        m = jnp.mean(y, axis=0, keepdims=True)
        d = y - m
        v = jnp.mean(d * d, axis=0, keepdims=True)
        return d * jax.lax.rsqrt(v + 1e-5) * gam + bet

    def gather_conv(y_bf, idx_ref, w_ref, n_pos):
        # In-kernel im2col + conv as ONE GEMM:
        #   * per kernel position, build a one-hot row-gather operator from the
        #     tiny int32 index table (lane iota + compare; padding rows have
        #     src = -1 and come out all-zero) and apply it on the MXU,
        #   * lane-concatenate the per-position patches -> [rows, n_pos*Cin],
        #   * single bf16 GEMM against the stacked weight [n_pos*Cin, Cout].
        rows = idx_ref.shape[0]
        src_rows = y_bf.shape[0]
        s_iota = jax.lax.broadcasted_iota(jnp.int32, (rows, src_rows), 1)
        patches = []
        for pos in range(n_pos):
            src = idx_ref[:, pos:pos + 1]                       # [rows, 1]
            g = jnp.where(s_iota == src, 1.0, 0.0).astype(bf16)  # [rows, src]
            patches.append(
                jnp.dot(g, y_bf, preferred_element_type=f32).astype(bf16))
        patch = jnp.concatenate(patches, axis=1)                # [rows, n_pos*Cin]
        return jnp.dot(patch, w_ref[...], preferred_element_type=f32)

    # layer 1: Conv(1->32, k4, s2, p1) as GEMM on prepacked patches + LeakyReLU
    y1 = jnp.dot(p1_ref[...], w1_ref[...], preferred_element_type=f32)
    y1 = leaky(y1)                                              # [bs*196, 32]

    # layer 2: Conv(32->64, k2, s2, p1) + BN + LeakyReLU
    y2 = gather_conv(y1.astype(bf16), idx2_ref, w2_ref, 4)      # [bs*64, 64]
    y2 = leaky(batchnorm(y2, gam2_ref[...], bet2_ref[...]))

    # layer 3: Conv(64->128, k4, s2, p1) + BN + LeakyReLU
    y3 = gather_conv(y2.astype(bf16), idx3_ref, w3_ref, 16)     # [bs*16, 128]
    y3 = leaky(batchnorm(y3, gam3_ref[...], bet3_ref[...]))

    # head: Conv(128->1, k4, s1, p0) folded in: VPU multiply + XLU reductions
    # over the [bs, 16, 128] view (no O(B^2) constants, no MXU push), sigmoid.
    prod = y3.reshape(bs, 16, 128) * w4_ref[...][None, :, :]    # [bs, 16, 128]
    lane_sum = jnp.sum(prod, axis=2)                            # [bs, 16]
    logits = jnp.sum(lane_sum, axis=1, keepdims=True)           # [bs, 1]
    out_ref[...] = 1.0 / (1.0 + jnp.exp(-logits))


# ------------------------------- glue (JAX) --------------------------------

def im2col_input(x):
    """x: [N, 1, 28, 28] -> layer-1 patches [N*14*14, 16].

    Rows ordered (n, oh, ow); columns ordered (ki, kj) -- matches the OIHW
    weight flattening for C=1.  Input-layer only; runs once per call in XLA.
    """
    n = x.shape[0]
    xp = jnp.pad(x[:, 0], ((0, 0), (1, 1), (1, 1)))              # [N, 30, 30]
    cols = [xp[:, ki:ki + 27:2, kj:kj + 27:2]                    # [N, 14, 14]
            for ki in range(4) for kj in range(4)]
    p = jnp.stack(cols, axis=-1)                                 # [N,14,14,16]
    return p.reshape(n * 14 * 14, 16)


def make_gather_idx(n, h, w, oh, ow, k, stride, pad):
    """Tiny O(batch) gather-index table for the in-kernel im2col.

    Returns int32 [n*oh*ow, k*k]: entry [r, ki*k+kj] is the source row in the
    channels-last [n*h*w, C] activation matrix feeding kernel offset (ki, kj)
    of output row r = (b*oh+i)*ow+j, or -1 for padded (out-of-bounds) taps.
    Replaces the old dense O(B^2) 0/1 gather matrices (~1 MB -> ~4 KB).
    """
    idx = np.full((n * oh * ow, k * k), -1, np.int32)
    for b in range(n):
        for i in range(oh):
            for j in range(ow):
                r = (b * oh + i) * ow + j
                for ki in range(k):
                    hh = stride * i - pad + ki
                    if not (0 <= hh < h):
                        continue
                    for kj in range(k):
                        ww = stride * j - pad + kj
                        if not (0 <= ww < w):
                            continue
                        idx[r, ki * k + kj] = (b * h + hh) * w + ww
    return idx


def spectral_normalize(w, key, n_iter=1, eps=1e-12):
    """PyTorch-style spectral_norm on a conv weight [OC, C, KH, KW]."""
    # TODO(synk): PyTorch persists/updates the power-iteration vector u across
    # forwards; here it is re-drawn per init (matches only the first forward).
    oc = w.shape[0]
    w_mat = w.reshape(oc, -1)
    u = jax.random.normal(key, (oc,), dtype=jnp.float32)
    u = u / (jnp.linalg.norm(u) + eps)
    v = None
    for _ in range(n_iter):
        v = w_mat.T @ u
        v = v / (jnp.linalg.norm(v) + eps)
        u = w_mat @ v
        u = u / (jnp.linalg.norm(u) + eps)
    sigma = u @ (w_mat @ v)
    return w / sigma


def init_params(key, batch_size):
    ndf = 16
    ks = jax.random.split(key, 8)

    def conv_w(k, oc, ic, kh, kw):
        return 0.05 * jax.random.normal(k, (oc, ic, kh, kw), dtype=jnp.float32)

    w1 = spectral_normalize(conv_w(ks[0], ndf * 2, 1, 4, 4), ks[4])
    w2 = spectral_normalize(conv_w(ks[1], ndf * 4, ndf * 2, 2, 2), ks[5])
    w3 = spectral_normalize(conv_w(ks[2], ndf * 8, ndf * 4, 4, 4), ks[6])
    w4 = spectral_normalize(conv_w(ks[3], 1, ndf * 8, 4, 4), ks[7])

    # layer-1 weight as a K=16 bf16 GEMM operand (no lane padding: the MXU
    # runs a full-depth pass regardless of K; padding only inflates DMA).
    w1mat = w1.reshape(ndf * 2, 16).T.astype(jnp.bfloat16)        # [16, 32]

    # layers 2/3: weights flattened to a single [k*k*Cin, Cout] bf16 operand,
    # rows ordered (pos-major, cin-minor) to match the lane-concatenated
    # patches built inside the kernel.
    def stack_w(w, k):
        oc, ic = w.shape[0], w.shape[1]
        ws = jnp.stack([w[:, :, ki, kj].T
                        for ki in range(k) for kj in range(k)])   # [k*k, ic, oc]
        return ws.reshape(k * k * ic, oc).astype(jnp.bfloat16)

    w2mat = stack_w(w2, 2)                                        # [128, 64]
    w3mat = stack_w(w3, 4)                                        # [1024, 128]

    # head weight: rows = spatial position (ki*4+kj), cols = channels.  It is
    # a VPU multiply operand (not MXU), so keep it f32; it is O(1) in batch.
    w4sp = jnp.transpose(w4[0], (1, 2, 0)).reshape(16, ndf * 8)   # [16, 128]

    # tiny O(batch) gather-index tables for the in-kernel im2col
    idx2 = jnp.asarray(make_gather_idx(batch_size, 14, 14, 8, 8, 2, 2, 1))
    idx3 = jnp.asarray(make_gather_idx(batch_size, 8, 8, 4, 4, 4, 2, 1))

    return dict(
        w1=w1mat, w2=w2mat, w3=w3mat, w4=w4sp, idx2=idx2, idx3=idx3,
        gam2=jnp.ones((1, ndf * 4), jnp.float32),
        bet2=jnp.zeros((1, ndf * 4), jnp.float32),
        gam3=jnp.ones((1, ndf * 8), jnp.float32),
        bet3=jnp.zeros((1, ndf * 8), jnp.float32),
    )


def discriminator_forward(x, params):
    """x: [BS, 1, 28, 28] float32 (NCHW) -> [BS, 1]."""
    bs = x.shape[0]
    assert x.shape[1:] == (1, 28, 28), x.shape

    # layer-1 patch packing on the raw input (one-time XLA glue), cast to bf16
    # so every MXU operand entering the kernel is half-width.
    p1 = im2col_input(x).astype(jnp.bfloat16)                     # [bs*196, 16]

    # Output stays [bs, 1]: a masked vst is negligible at this batch size.
    return pl.pallas_call(
        disc_fused_kernel,
        out_shape=jax.ShapeDtypeStruct((bs, 1), jnp.float32),
        in_specs=[_VMEM] * 11,
        out_specs=_VMEM,
    )(p1, params["w1"], params["idx2"], params["w2"], params["gam2"],
      params["bet2"], params["idx3"], params["w3"], params["gam3"],
      params["bet3"], params["w4"])


if __name__ == "__main__":
    key = jax.random.PRNGKey(0)
    k_param, k_input = jax.random.split(key)

    BS = 2
    params = init_params(k_param, BS)

    # MNIST-shaped input: 1 channel, 28x28 (required so the 4x4 head conv with
    # no padding sees exactly a 4x4 feature map).
    x = jax.random.normal(k_input, (BS, 1, 28, 28), dtype=jnp.float32)

    fwd = jax.jit(discriminator_forward)
    out = jax.block_until_ready(fwd(x, params))

    assert out.shape == (BS, 1), out.shape
    assert bool(jnp.all(jnp.isfinite(out)))
    assert bool(jnp.all((out >= 0.0) & (out <= 1.0)))
    print("KERNEL_OK")
</pallas_src>

<mosaic_0001>
module attributes {stable_mosaic.version = 11 : i64} {
  func.func @disc_fused_kernel(%arg0: memref<392x16xbf16, #tpu.memory_space<vmem>>, %arg1: memref<16x32xbf16, #tpu.memory_space<vmem>>, %arg2: memref<128x4xi32, #tpu.memory_space<vmem>>, %arg3: memref<128x64xbf16, #tpu.memory_space<vmem>>, %arg4: memref<1x64xf32, #tpu.memory_space<vmem>>, %arg5: memref<1x64xf32, #tpu.memory_space<vmem>>, %arg6: memref<32x16xi32, #tpu.memory_space<vmem>>, %arg7: memref<1024x128xbf16, #tpu.memory_space<vmem>>, %arg8: memref<1x128xf32, #tpu.memory_space<vmem>>, %arg9: memref<1x128xf32, #tpu.memory_space<vmem>>, %arg10: memref<16x128xf32, #tpu.memory_space<vmem>>, %arg11: memref<2x1xf32, #tpu.memory_space<vmem>>) attributes {dimension_semantics = [], scalar_prefetch = 0 : i64, scratch_operands = 0 : i64, tpu.core_type = #tpu.core_type<tc>} {
    %c0 = arith.constant 0 : index
    %c0_0 = arith.constant 0 : index
    %0 = vector.load %arg0[%c0, %c0_0] : memref<392x16xbf16, #tpu.memory_space<vmem>>, vector<392x16xbf16>
    %c0_1 = arith.constant 0 : index
    %c0_2 = arith.constant 0 : index
    %1 = vector.load %arg1[%c0_1, %c0_2] : memref<16x32xbf16, #tpu.memory_space<vmem>>, vector<16x32xbf16>
    %cst = arith.constant dense<0.000000e+00> : vector<392x32xf32>
    %2 = tpu.matmul %0, %1, %cst {dimension_numbers = #tpu.dot_dimension_numbers<[1], [0], [0], [1], [0, 0, 1, 1], [], []>} : vector<392x16xbf16>, vector<16x32xbf16>, vector<392x32xf32> -> vector<392x32xf32>
    %cst_3 = arith.constant 2.000000e-01 : f32
    %3 = vector.broadcast %cst_3 : f32 to vector<392x32xf32>
    %4 = arith.mulf %3, %2 : vector<392x32xf32>
    %5 = arith.maximumf %2, %4 : vector<392x32xf32>
    %6 = arith.truncf %5 : vector<392x32xf32> to vector<392x32xbf16>
    %7 = tpu.iota {dimensions = array<i32: 1>} : vector<128x392xi32>
    %c0_4 = arith.constant 0 : index
    %c0_5 = arith.constant 0 : index
    %8 = vector.load %arg2[%c0_4, %c0_5] : memref<128x4xi32, #tpu.memory_space<vmem>>, vector<128x1xi32>
    %9 = vector.broadcast %8 : vector<128x1xi32> to vector<128x392xi32>
    %10 = arith.cmpi eq, %7, %9 : vector<128x392xi32>
    %cst_6 = arith.constant 1.000000e+00 : f32
    %cst_7 = arith.constant 0.000000e+00 : f32
    %11 = vector.broadcast %cst_6 : f32 to vector<128x392xf32>
    %12 = vector.broadcast %cst_7 : f32 to vector<128x392xf32>
    %13 = arith.select %10, %11, %12 : vector<128x392xi1>, vector<128x392xf32>
    %14 = arith.truncf %13 : vector<128x392xf32> to vector<128x392xbf16>
    %cst_8 = arith.constant dense<0.000000e+00> : vector<128x32xf32>
    %15 = tpu.matmul %14, %6, %cst_8 {dimension_numbers = #tpu.dot_dimension_numbers<[1], [0], [0], [1], [0, 0, 1, 1], [], []>} : vector<128x392xbf16>, vector<392x32xbf16>, vector<128x32xf32> -> vector<128x32xf32>
    %16 = arith.truncf %15 : vector<128x32xf32> to vector<128x32xbf16>
    %c0_9 = arith.constant 0 : index
    %c1 = arith.constant 1 : index
    %17 = vector.load %arg2[%c0_9, %c1] : memref<128x4xi32, #tpu.memory_space<vmem>>, vector<128x1xi32>
    %18 = vector.broadcast %17 : vector<128x1xi32> to vector<128x392xi32>
    %19 = arith.cmpi eq, %7, %18 : vector<128x392xi32>
    %cst_10 = arith.constant 1.000000e+00 : f32
    %cst_11 = arith.constant 0.000000e+00 : f32
    %20 = vector.broadcast %cst_10 : f32 to vector<128x392xf32>
    %21 = vector.broadcast %cst_11 : f32 to vector<128x392xf32>
    %22 = arith.select %19, %20, %21 : vector<128x392xi1>, vector<128x392xf32>
    %23 = arith.truncf %22 : vector<128x392xf32> to vector<128x392xbf16>
    %cst_12 = arith.constant dense<0.000000e+00> : vector<128x32xf32>
    %24 = tpu.matmul %23, %6, %cst_12 {dimension_numbers = #tpu.dot_dimension_numbers<[1], [0], [0], [1], [0, 0, 1, 1], [], []>} : vector<128x392xbf16>, vector<392x32xbf16>, vector<128x32xf32> -> vector<128x32xf32>
    %25 = arith.truncf %24 : vector<128x32xf32> to vector<128x32xbf16>
    %c0_13 = arith.constant 0 : index
    %c2 = arith.constant 2 : index
    %26 = vector.load %arg2[%c0_13, %c2] : memref<128x4xi32, #tpu.memory_space<vmem>>, vector<128x1xi32>
    %27 = vector.broadcast %26 : vector<128x1xi32> to vector<128x392xi32>
    %28 = arith.cmpi eq, %7, %27 : vector<128x392xi32>
    %cst_14 = arith.constant 1.000000e+00 : f32
    %cst_15 = arith.constant 0.000000e+00 : f32
    %29 = vector.broadcast %cst_14 : f32 to vector<128x392xf32>
    %30 = vector.broadcast %cst_15 : f32 to vector<128x392xf32>
    %31 = arith.select %28, %29, %30 : vector<128x392xi1>, vector<128x392xf32>
    %32 = arith.truncf %31 : vector<128x392xf32> to vector<128x392xbf16>
    %cst_16 = arith.constant dense<0.000000e+00> : vector<128x32xf32>
    %33 = tpu.matmul %32, %6, %cst_16 {dimension_numbers = #tpu.dot_dimension_numbers<[1], [0], [0], [1], [0, 0, 1, 1], [], []>} : vector<128x392xbf16>, vector<392x32xbf16>, vector<128x32xf32> -> vector<128x32xf32>
    %34 = arith.truncf %33 : vector<128x32xf32> to vector<128x32xbf16>
    %c0_17 = arith.constant 0 : index
    %c3 = arith.constant 3 : index
    %35 = vector.load %arg2[%c0_17, %c3] : memref<128x4xi32, #tpu.memory_space<vmem>>, vector<128x1xi32>
    %36 = vector.broadcast %35 : vector<128x1xi32> to vector<128x392xi32>
    %37 = arith.cmpi eq, %7, %36 : vector<128x392xi32>
    %cst_18 = arith.constant 1.000000e+00 : f32
    %cst_19 = arith.constant 0.000000e+00 : f32
    %38 = vector.broadcast %cst_18 : f32 to vector<128x392xf32>
    %39 = vector.broadcast %cst_19 : f32 to vector<128x392xf32>
    %40 = arith.select %37, %38, %39 : vector<128x392xi1>, vector<128x392xf32>
    %41 = arith.truncf %40 : vector<128x392xf32> to vector<128x392xbf16>
    %cst_20 = arith.constant dense<0.000000e+00> : vector<128x32xf32>
    %42 = tpu.matmul %41, %6, %cst_20 {dimension_numbers = #tpu.dot_dimension_numbers<[1], [0], [0], [1], [0, 0, 1, 1], [], []>} : vector<128x392xbf16>, vector<392x32xbf16>, vector<128x32xf32> -> vector<128x32xf32>
    %43 = arith.truncf %42 : vector<128x32xf32> to vector<128x32xbf16>
    %44 = tpu.concatenate %16, %25, %34, %43 in 1 : vector<128x32xbf16>, vector<128x32xbf16>, vector<128x32xbf16>, vector<128x32xbf16> -> vector<128x128xbf16>
    %c0_21 = arith.constant 0 : index
    %c0_22 = arith.constant 0 : index
    %45 = vector.load %arg3[%c0_21, %c0_22] : memref<128x64xbf16, #tpu.memory_space<vmem>>, vector<128x64xbf16>
    %cst_23 = arith.constant dense<0.000000e+00> : vector<128x64xf32>
    %46 = tpu.matmul %44, %45, %cst_23 {dimension_numbers = #tpu.dot_dimension_numbers<[1], [0], [0], [1], [0, 0, 1, 1], [], []>} : vector<128x128xbf16>, vector<128x64xbf16>, vector<128x64xf32> -> vector<128x64xf32>
    %c0_24 = arith.constant 0 : index
    %c0_25 = arith.constant 0 : index
    %47 = vector.load %arg4[%c0_24, %c0_25] : memref<1x64xf32, #tpu.memory_space<vmem>>, vector<1x64xf32>
    %c0_26 = arith.constant 0 : index
    %c0_27 = arith.constant 0 : index
    %48 = vector.load %arg5[%c0_26, %c0_27] : memref<1x64xf32, #tpu.memory_space<vmem>>, vector<1x64xf32>
    %cst_28 = arith.constant dense<0.000000e+00> : vector<64xf32>
    %49 = vector.multi_reduction <add>, %46, %cst_28 [0] : vector<128x64xf32> to vector<64xf32>
    %50 = vector.shape_cast %49 : vector<64xf32> to vector<1x64xf32>
    %cst_29 = arith.constant 1.280000e+02 : f32
    %51 = vector.broadcast %cst_29 : f32 to vector<1x64xf32>
    %52 = arith.divf %50, %51 : vector<1x64xf32>
    %53 = vector.broadcast %52 : vector<1x64xf32> to vector<128x64xf32>
    %54 = arith.subf %46, %53 : vector<128x64xf32>
    %55 = arith.mulf %54, %54 : vector<128x64xf32>
    %cst_30 = arith.constant dense<0.000000e+00> : vector<64xf32>
    %56 = vector.multi_reduction <add>, %55, %cst_30 [0] : vector<128x64xf32> to vector<64xf32>
    %57 = vector.shape_cast %56 : vector<64xf32> to vector<1x64xf32>
    %cst_31 = arith.constant 1.280000e+02 : f32
    %58 = vector.broadcast %cst_31 : f32 to vector<1x64xf32>
    %59 = arith.divf %57, %58 : vector<1x64xf32>
    %cst_32 = arith.constant 9.99999974E-6 : f32
    %60 = vector.broadcast %cst_32 : f32 to vector<1x64xf32>
    %61 = arith.addf %59, %60 : vector<1x64xf32>
    %62 = math.rsqrt %61 : vector<1x64xf32>
    %63 = vector.broadcast %62 : vector<1x64xf32> to vector<128x64xf32>
    %64 = arith.mulf %54, %63 : vector<128x64xf32>
    %65 = vector.broadcast %47 : vector<1x64xf32> to vector<128x64xf32>
    %66 = arith.mulf %64, %65 : vector<128x64xf32>
    %67 = vector.broadcast %48 : vector<1x64xf32> to vector<128x64xf32>
    %68 = arith.addf %66, %67 : vector<128x64xf32>
    %cst_33 = arith.constant 2.000000e-01 : f32
    %69 = vector.broadcast %cst_33 : f32 to vector<128x64xf32>
    %70 = arith.mulf %69, %68 : vector<128x64xf32>
    %71 = arith.maximumf %68, %70 : vector<128x64xf32>
    %72 = arith.truncf %71 : vector<128x64xf32> to vector<128x64xbf16>
    %73 = tpu.iota {dimensions = array<i32: 1>} : vector<32x128xi32>
    %c0_34 = arith.constant 0 : index
    %c0_35 = arith.constant 0 : index
    %74 = vector.load %arg6[%c0_34, %c0_35] : memref<32x16xi32, #tpu.memory_space<vmem>>, vector<32x1xi32>
    %75 = vector.broadcast %74 : vector<32x1xi32> to vector<32x128xi32>
    %76 = arith.cmpi eq, %73, %75 : vector<32x128xi32>
    %cst_36 = arith.constant 1.000000e+00 : f32
    %cst_37 = arith.constant 0.000000e+00 : f32
    %77 = vector.broadcast %cst_36 : f32 to vector<32x128xf32>
    %78 = vector.broadcast %cst_37 : f32 to vector<32x128xf32>
    %79 = arith.select %76, %77, %78 : vector<32x128xi1>, vector<32x128xf32>
    %80 = arith.truncf %79 : vector<32x128xf32> to vector<32x128xbf16>
    %cst_38 = arith.constant dense<0.000000e+00> : vector<32x64xf32>
    %81 = tpu.matmul %80, %72, %cst_38 {dimension_numbers = #tpu.dot_dimension_numbers<[1], [0], [0], [1], [0, 0, 1, 1], [], []>} : vector<32x128xbf16>, vector<128x64xbf16>, vector<32x64xf32> -> vector<32x64xf32>
    %82 = arith.truncf %81 : vector<32x64xf32> to vector<32x64xbf16>
    %c0_39 = arith.constant 0 : index
    %c1_40 = arith.constant 1 : index
    %83 = vector.load %arg6[%c0_39, %c1_40] : memref<32x16xi32, #tpu.memory_space<vmem>>, vector<32x1xi32>
    %84 = vector.broadcast %83 : vector<32x1xi32> to vector<32x128xi32>
    %85 = arith.cmpi eq, %73, %84 : vector<32x128xi32>
    %cst_41 = arith.constant 1.000000e+00 : f32
    %cst_42 = arith.constant 0.000000e+00 : f32
    %86 = vector.broadcast %cst_41 : f32 to vector<32x128xf32>
    %87 = vector.broadcast %cst_42 : f32 to vector<32x128xf32>
    %88 = arith.select %85, %86, %87 : vector<32x128xi1>, vector<32x128xf32>
    %89 = arith.truncf %88 : vector<32x128xf32> to vector<32x128xbf16>
    %cst_43 = arith.constant dense<0.000000e+00> : vector<32x64xf32>
    %90 = tpu.matmul %89, %72, %cst_43 {dimension_numbers = #tpu.dot_dimension_numbers<[1], [0], [0], [1], [0, 0, 1, 1], [], []>} : vector<32x128xbf16>, vector<128x64xbf16>, vector<32x64xf32> -> vector<32x64xf32>
    %91 = arith.truncf %90 : vector<32x64xf32> to vector<32x64xbf16>
    %c0_44 = arith.constant 0 : index
    %c2_45 = arith.constant 2 : index
    %92 = vector.load %arg6[%c0_44, %c2_45] : memref<32x16xi32, #tpu.memory_space<vmem>>, vector<32x1xi32>
    %93 = vector.broadcast %92 : vector<32x1xi32> to vector<32x128xi32>
    %94 = arith.cmpi eq, %73, %93 : vector<32x128xi32>
    %cst_46 = arith.constant 1.000000e+00 : f32
    %cst_47 = arith.constant 0.000000e+00 : f32
    %95 = vector.broadcast %cst_46 : f32 to vector<32x128xf32>
    %96 = vector.broadcast %cst_47 : f32 to vector<32x128xf32>
    %97 = arith.select %94, %95, %96 : vector<32x128xi1>, vector<32x128xf32>
    %98 = arith.truncf %97 : vector<32x128xf32> to vector<32x128xbf16>
    %cst_48 = arith.constant dense<0.000000e+00> : vector<32x64xf32>
    %99 = tpu.matmul %98, %72, %cst_48 {dimension_numbers = #tpu.dot_dimension_numbers<[1], [0], [0], [1], [0, 0, 1, 1], [], []>} : vector<32x128xbf16>, vector<128x64xbf16>, vector<32x64xf32> -> vector<32x64xf32>
    %100 = arith.truncf %99 : vector<32x64xf32> to vector<32x64xbf16>
    %c0_49 = arith.constant 0 : index
    %c3_50 = arith.constant 3 : index
    %101 = vector.load %arg6[%c0_49, %c3_50] : memref<32x16xi32, #tpu.memory_space<vmem>>, vector<32x1xi32>
    %102 = vector.broadcast %101 : vector<32x1xi32> to vector<32x128xi32>
    %103 = arith.cmpi eq, %73, %102 : vector<32x128xi32>
    %cst_51 = arith.constant 1.000000e+00 : f32
    %cst_52 = arith.constant 0.000000e+00 : f32
    %104 = vector.broadcast %cst_51 : f32 to vector<32x128xf32>
    %105 = vector.broadcast %cst_52 : f32 to vector<32x128xf32>
    %106 = arith.select %103, %104, %105 : vector<32x128xi1>, vector<32x128xf32>
    %107 = arith.truncf %106 : vector<32x128xf32> to vector<32x128xbf16>
    %cst_53 = arith.constant dense<0.000000e+00> : vector<32x64xf32>
    %108 = tpu.matmul %107, %72, %cst_53 {dimension_numbers = #tpu.dot_dimension_numbers<[1], [0], [0], [1], [0, 0, 1, 1], [], []>} : vector<32x128xbf16>, vector<128x64xbf16>, vector<32x64xf32> -> vector<32x64xf32>
    %109 = arith.truncf %108 : vector<32x64xf32> to vector<32x64xbf16>
    %c0_54 = arith.constant 0 : index
    %c4 = arith.constant 4 : index
    %110 = vector.load %arg6[%c0_54, %c4] : memref<32x16xi32, #tpu.memory_space<vmem>>, vector<32x1xi32>
    %111 = vector.broadcast %110 : vector<32x1xi32> to vector<32x128xi32>
    %112 = arith.cmpi eq, %73, %111 : vector<32x128xi32>
    %cst_55 = arith.constant 1.000000e+00 : f32
    %cst_56 = arith.constant 0.000000e+00 : f32
    %113 = vector.broadcast %cst_55 : f32 to vector<32x128xf32>
    %114 = vector.broadcast %cst_56 : f32 to vector<32x128xf32>
    %115 = arith.select %112, %113, %114 : vector<32x128xi1>, vector<32x128xf32>
    %116 = arith.truncf %115 : vector<32x128xf32> to vector<32x128xbf16>
    %cst_57 = arith.constant dense<0.000000e+00> : vector<32x64xf32>
    %117 = tpu.matmul %116, %72, %cst_57 {dimension_numbers = #tpu.dot_dimension_numbers<[1], [0], [0], [1], [0, 0, 1, 1], [], []>} : vector<32x128xbf16>, vector<128x64xbf16>, vector<32x64xf32> -> vector<32x64xf32>
    %118 = arith.truncf %117 : vector<32x64xf32> to vector<32x64xbf16>
    %c0_58 = arith.constant 0 : index
    %c5 = arith.constant 5 : index
    %119 = vector.load %arg6[%c0_58, %c5] : memref<32x16xi32, #tpu.memory_space<vmem>>, vector<32x1xi32>
    %120 = vector.broadcast %119 : vector<32x1xi32> to vector<32x128xi32>
    %121 = arith.cmpi eq, %73, %120 : vector<32x128xi32>
    %cst_59 = arith.constant 1.000000e+00 : f32
    %cst_60 = arith.constant 0.000000e+00 : f32
    %122 = vector.broadcast %cst_59 : f32 to vector<32x128xf32>
    %123 = vector.broadcast %cst_60 : f32 to vector<32x128xf32>
    %124 = arith.select %121, %122, %123 : vector<32x128xi1>, vector<32x128xf32>
    %125 = arith.truncf %124 : vector<32x128xf32> to vector<32x128xbf16>
    %cst_61 = arith.constant dense<0.000000e+00> : vector<32x64xf32>
    %126 = tpu.matmul %125, %72, %cst_61 {dimension_numbers = #tpu.dot_dimension_numbers<[1], [0], [0], [1], [0, 0, 1, 1], [], []>} : vector<32x128xbf16>, vector<128x64xbf16>, vector<32x64xf32> -> vector<32x64xf32>
    %127 = arith.truncf %126 : vector<32x64xf32> to vector<32x64xbf16>
    %c0_62 = arith.constant 0 : index
    %c6 = arith.constant 6 : index
    %128 = vector.load %arg6[%c0_62, %c6] : memref<32x16xi32, #tpu.memory_space<vmem>>, vector<32x1xi32>
    %129 = vector.broadcast %128 : vector<32x1xi32> to vector<32x128xi32>
    %130 = arith.cmpi eq, %73, %129 : vector<32x128xi32>
    %cst_63 = arith.constant 1.000000e+00 : f32
    %cst_64 = arith.constant 0.000000e+00 : f32
    %131 = vector.broadcast %cst_63 : f32 to vector<32x128xf32>
    %132 = vector.broadcast %cst_64 : f32 to vector<32x128xf32>
    %133 = arith.select %130, %131, %132 : vector<32x128xi1>, vector<32x128xf32>
    %134 = arith.truncf %133 : vector<32x128xf32> to vector<32x128xbf16>
    %cst_65 = arith.constant dense<0.000000e+00> : vector<32x64xf32>
    %135 = tpu.matmul %134, %72, %cst_65 {dimension_numbers = #tpu.dot_dimension_numbers<[1], [0], [0], [1], [0, 0, 1, 1], [], []>} : vector<32x128xbf16>, vector<128x64xbf16>, vector<32x64xf32> -> vector<32x64xf32>
    %136 = arith.truncf %135 : vector<32x64xf32> to vector<32x64xbf16>
    %c0_66 = arith.constant 0 : index
    %c7 = arith.constant 7 : index
    %137 = vector.load %arg6[%c0_66, %c7] : memref<32x16xi32, #tpu.memory_space<vmem>>, vector<32x1xi32>
    %138 = vector.broadcast %137 : vector<32x1xi32> to vector<32x128xi32>
    %139 = arith.cmpi eq, %73, %138 : vector<32x128xi32>
    %cst_67 = arith.constant 1.000000e+00 : f32
    %cst_68 = arith.constant 0.000000e+00 : f32
    %140 = vector.broadcast %cst_67 : f32 to vector<32x128xf32>
    %141 = vector.broadcast %cst_68 : f32 to vector<32x128xf32>
    %142 = arith.select %139, %140, %141 : vector<32x128xi1>, vector<32x128xf32>
    %143 = arith.truncf %142 : vector<32x128xf32> to vector<32x128xbf16>
    %cst_69 = arith.constant dense<0.000000e+00> : vector<32x64xf32>
    %144 = tpu.matmul %143, %72, %cst_69 {dimension_numbers = #tpu.dot_dimension_numbers<[1], [0], [0], [1], [0, 0, 1, 1], [], []>} : vector<32x128xbf16>, vector<128x64xbf16>, vector<32x64xf32> -> vector<32x64xf32>
    %145 = arith.truncf %144 : vector<32x64xf32> to vector<32x64xbf16>
    %c0_70 = arith.constant 0 : index
    %c8 = arith.constant 8 : index
    %146 = vector.load %arg6[%c0_70, %c8] : memref<32x16xi32, #tpu.memory_space<vmem>>, vector<32x1xi32>
    %147 = vector.broadcast %146 : vector<32x1xi32> to vector<32x128xi32>
    %148 = arith.cmpi eq, %73, %147 : vector<32x128xi32>
    %cst_71 = arith.constant 1.000000e+00 : f32
    %cst_72 = arith.constant 0.000000e+00 : f32
    %149 = vector.broadcast %cst_71 : f32 to vector<32x128xf32>
    %150 = vector.broadcast %cst_72 : f32 to vector<32x128xf32>
    %151 = arith.select %148, %149, %150 : vector<32x128xi1>, vector<32x128xf32>
    %152 = arith.truncf %151 : vector<32x128xf32> to vector<32x128xbf16>
    %cst_73 = arith.constant dense<0.000000e+00> : vector<32x64xf32>
    %153 = tpu.matmul %152, %72, %cst_73 {dimension_numbers = #tpu.dot_dimension_numbers<[1], [0], [0], [1], [0, 0, 1, 1], [], []>} : vector<32x128xbf16>, vector<128x64xbf16>, vector<32x64xf32> -> vector<32x64xf32>
    %154 = arith.truncf %153 : vector<32x64xf32> to vector<32x64xbf16>
    %c0_74 = arith.constant 0 : index
    %c9 = arith.constant 9 : index
    %155 = vector.load %arg6[%c0_74, %c9] : memref<32x16xi32, #tpu.memory_space<vmem>>, vector<32x1xi32>
    %156 = vector.broadcast %155 : vector<32x1xi32> to vector<32x128xi32>
    %157 = arith.cmpi eq, %73, %156 : vector<32x128xi32>
    %cst_75 = arith.constant 1.000000e+00 : f32
    %cst_76 = arith.constant 0.000000e+00 : f32
    %158 = vector.broadcast %cst_75 : f32 to vector<32x128xf32>
    %159 = vector.broadcast %cst_76 : f32 to vector<32x128xf32>
    %160 = arith.select %157, %158, %159 : vector<32x128xi1>, vector<32x128xf32>
    %161 = arith.truncf %160 : vector<32x128xf32> to vector<32x128xbf16>
    %cst_77 = arith.constant dense<0.000000e+00> : vector<32x64xf32>
    %162 = tpu.matmul %161, %72, %cst_77 {dimension_numbers = #tpu.dot_dimension_numbers<[1], [0], [0], [1], [0, 0, 1, 1], [], []>} : vector<32x128xbf16>, vector<128x64xbf16>, vector<32x64xf32> -> vector<32x64xf32>
    %163 = arith.truncf %162 : vector<32x64xf32> to vector<32x64xbf16>
    %c0_78 = arith.constant 0 : index
    %c10 = arith.constant 10 : index
    %164 = vector.load %arg6[%c0_78, %c10] : memref<32x16xi32, #tpu.memory_space<vmem>>, vector<32x1xi32>
    %165 = vector.broadcast %164 : vector<32x1xi32> to vector<32x128xi32>
    %166 = arith.cmpi eq, %73, %165 : vector<32x128xi32>
    %cst_79 = arith.constant 1.000000e+00 : f32
    %cst_80 = arith.constant 0.000000e+00 : f32
    %167 = vector.broadcast %cst_79 : f32 to vector<32x128xf32>
    %168 = vector.broadcast %cst_80 : f32 to vector<32x128xf32>
    %169 = arith.select %166, %167, %168 : vector<32x128xi1>, vector<32x128xf32>
    %170 = arith.truncf %169 : vector<32x128xf32> to vector<32x128xbf16>
    %cst_81 = arith.constant dense<0.000000e+00> : vector<32x64xf32>
    %171 = tpu.matmul %170, %72, %cst_81 {dimension_numbers = #tpu.dot_dimension_numbers<[1], [0], [0], [1], [0, 0, 1, 1], [], []>} : vector<32x128xbf16>, vector<128x64xbf16>, vector<32x64xf32> -> vector<32x64xf32>
    %172 = arith.truncf %171 : vector<32x64xf32> to vector<32x64xbf16>
    %c0_82 = arith.constant 0 : index
    %c11 = arith.constant 11 : index
    %173 = vector.load %arg6[%c0_82, %c11] : memref<32x16xi32, #tpu.memory_space<vmem>>, vector<32x1xi32>
    %174 = vector.broadcast %173 : vector<32x1xi32> to vector<32x128xi32>
    %175 = arith.cmpi eq, %73, %174 : vector<32x128xi32>
    %cst_83 = arith.constant 1.000000e+00 : f32
    %cst_84 = arith.constant 0.000000e+00 : f32
    %176 = vector.broadcast %cst_83 : f32 to vector<32x128xf32>
    %177 = vector.broadcast %cst_84 : f32 to vector<32x128xf32>
    %178 = arith.select %175, %176, %177 : vector<32x128xi1>, vector<32x128xf32>
    %179 = arith.truncf %178 : vector<32x128xf32> to vector<32x128xbf16>
    %cst_85 = arith.constant dense<0.000000e+00> : vector<32x64xf32>
    %180 = tpu.matmul %179, %72, %cst_85 {dimension_numbers = #tpu.dot_dimension_numbers<[1], [0], [0], [1], [0, 0, 1, 1], [], []>} : vector<32x128xbf16>, vector<128x64xbf16>, vector<32x64xf32> -> vector<32x64xf32>
    %181 = arith.truncf %180 : vector<32x64xf32> to vector<32x64xbf16>
    %c0_86 = arith.constant 0 : index
    %c12 = arith.constant 12 : index
    %182 = vector.load %arg6[%c0_86, %c12] : memref<32x16xi32, #tpu.memory_space<vmem>>, vector<32x1xi32>
    %183 = vector.broadcast %182 : vector<32x1xi32> to vector<32x128xi32>
    %184 = arith.cmpi eq, %73, %183 : vector<32x128xi32>
    %cst_87 = arith.constant 1.000000e+00 : f32
    %cst_88 = arith.constant 0.000000e+00 : f32
    %185 = vector.broadcast %cst_87 : f32 to vector<32x128xf32>
    %186 = vector.broadcast %cst_88 : f32 to vector<32x128xf32>
    %187 = arith.select %184, %185, %186 : vector<32x128xi1>, vector<32x128xf32>
    %188 = arith.truncf %187 : vector<32x128xf32> to vector<32x128xbf16>
    %cst_89 = arith.constant dense<0.000000e+00> : vector<32x64xf32>
    %189 = tpu.matmul %188, %72, %cst_89 {dimension_numbers = #tpu.dot_dimension_numbers<[1], [0], [0], [1], [0, 0, 1, 1], [], []>} : vector<32x128xbf16>, vector<128x64xbf16>, vector<32x64xf32> -> vector<32x64xf32>
    %190 = arith.truncf %189 : vector<32x64xf32> to vector<32x64xbf16>
    %c0_90 = arith.constant 0 : index
    %c13 = arith.constant 13 : index
    %191 = vector.load %arg6[%c0_90, %c13] : memref<32x16xi32, #tpu.memory_space<vmem>>, vector<32x1xi32>
    %192 = vector.broadcast %191 : vector<32x1xi32> to vector<32x128xi32>
    %193 = arith.cmpi eq, %73, %192 : vector<32x128xi32>
    %cst_91 = arith.constant 1.000000e+00 : f32
    %cst_92 = arith.constant 0.000000e+00 : f32
    %194 = vector.broadcast %cst_91 : f32 to vector<32x128xf32>
    %195 = vector.broadcast %cst_92 : f32 to vector<32x128xf32>
    %196 = arith.select %193, %194, %195 : vector<32x128xi1>, vector<32x128xf32>
    %197 = arith.truncf %196 : vector<32x128xf32> to vector<32x128xbf16>
    %cst_93 = arith.constant dense<0.000000e+00> : vector<32x64xf32>
    %198 = tpu.matmul %197, %72, %cst_93 {dimension_numbers = #tpu.dot_dimension_numbers<[1], [0], [0], [1], [0, 0, 1, 1], [], []>} : vector<32x128xbf16>, vector<128x64xbf16>, vector<32x64xf32> -> vector<32x64xf32>
    %199 = arith.truncf %198 : vector<32x64xf32> to vector<32x64xbf16>
    %c0_94 = arith.constant 0 : index
    %c14 = arith.constant 14 : index
    %200 = vector.load %arg6[%c0_94, %c14] : memref<32x16xi32, #tpu.memory_space<vmem>>, vector<32x1xi32>
    %201 = vector.broadcast %200 : vector<32x1xi32> to vector<32x128xi32>
    %202 = arith.cmpi eq, %73, %201 : vector<32x128xi32>
    %cst_95 = arith.constant 1.000000e+00 : f32
    %cst_96 = arith.constant 0.000000e+00 : f32
    %203 = vector.broadcast %cst_95 : f32 to vector<32x128xf32>
    %204 = vector.broadcast %cst_96 : f32 to vector<32x128xf32>
    %205 = arith.select %202, %203, %204 : vector<32x128xi1>, vector<32x128xf32>
    %206 = arith.truncf %205 : vector<32x128xf32> to vector<32x128xbf16>
    %cst_97 = arith.constant dense<0.000000e+00> : vector<32x64xf32>
    %207 = tpu.matmul %206, %72, %cst_97 {dimension_numbers = #tpu.dot_dimension_numbers<[1], [0], [0], [1], [0, 0, 1, 1], [], []>} : vector<32x128xbf16>, vector<128x64xbf16>, vector<32x64xf32> -> vector<32x64xf32>
    %208 = arith.truncf %207 : vector<32x64xf32> to vector<32x64xbf16>
    %c0_98 = arith.constant 0 : index
    %c15 = arith.constant 15 : index
    %209 = vector.load %arg6[%c0_98, %c15] : memref<32x16xi32, #tpu.memory_space<vmem>>, vector<32x1xi32>
    %210 = vector.broadcast %209 : vector<32x1xi32> to vector<32x128xi32>
    %211 = arith.cmpi eq, %73, %210 : vector<32x128xi32>
    %cst_99 = arith.constant 1.000000e+00 : f32
    %cst_100 = arith.constant 0.000000e+00 : f32
    %212 = vector.broadcast %cst_99 : f32 to vector<32x128xf32>
    %213 = vector.broadcast %cst_100 : f32 to vector<32x128xf32>
    %214 = arith.select %211, %212, %213 : vector<32x128xi1>, vector<32x128xf32>
    %215 = arith.truncf %214 : vector<32x128xf32> to vector<32x128xbf16>
    %cst_101 = arith.constant dense<0.000000e+00> : vector<32x64xf32>
    %216 = tpu.matmul %215, %72, %cst_101 {dimension_numbers = #tpu.dot_dimension_numbers<[1], [0], [0], [1], [0, 0, 1, 1], [], []>} : vector<32x128xbf16>, vector<128x64xbf16>, vector<32x64xf32> -> vector<32x64xf32>
    %217 = arith.truncf %216 : vector<32x64xf32> to vector<32x64xbf16>
    %218 = tpu.concatenate %82, %91, %100, %109, %118, %127, %136, %145, %154, %163, %172, %181, %190, %199, %208, %217 in 1 : vector<32x64xbf16>, vector<32x64xbf16>, vector<32x64xbf16>, vector<32x64xbf16>, vector<32x64xbf16>, vector<32x64xbf16>, vector<32x64xbf16>, vector<32x64xbf16>, vector<32x64xbf16>, vector<32x64xbf16>, vector<32x64xbf16>, vector<32x64xbf16>, vector<32x64xbf16>, vector<32x64xbf16>, vector<32x64xbf16>, vector<32x64xbf16> -> vector<32x1024xbf16>
    %c0_102 = arith.constant 0 : index
    %c0_103 = arith.constant 0 : index
    %219 = vector.load %arg7[%c0_102, %c0_103] : memref<1024x128xbf16, #tpu.memory_space<vmem>>, vector<1024x128xbf16>
    %cst_104 = arith.constant dense<0.000000e+00> : vector<32x128xf32>
    %220 = tpu.matmul %218, %219, %cst_104 {dimension_numbers = #tpu.dot_dimension_numbers<[1], [0], [0], [1], [0, 0, 1, 1], [], []>} : vector<32x1024xbf16>, vector<1024x128xbf16>, vector<32x128xf32> -> vector<32x128xf32>
    %c0_105 = arith.constant 0 : index
    %c0_106 = arith.constant 0 : index
    %221 = vector.load %arg8[%c0_105, %c0_106] : memref<1x128xf32, #tpu.memory_space<vmem>>, vector<1x128xf32>
    %c0_107 = arith.constant 0 : index
    %c0_108 = arith.constant 0 : index
    %222 = vector.load %arg9[%c0_107, %c0_108] : memref<1x128xf32, #tpu.memory_space<vmem>>, vector<1x128xf32>
    %cst_109 = arith.constant dense<0.000000e+00> : vector<128xf32>
    %223 = vector.multi_reduction <add>, %220, %cst_109 [0] : vector<32x128xf32> to vector<128xf32>
    %224 = vector.shape_cast %223 : vector<128xf32> to vector<1x128xf32>
    %cst_110 = arith.constant 3.200000e+01 : f32
    %225 = vector.broadcast %cst_110 : f32 to vector<1x128xf32>
    %226 = arith.divf %224, %225 : vector<1x128xf32>
    %227 = vector.broadcast %226 : vector<1x128xf32> to vector<32x128xf32>
    %228 = arith.subf %220, %227 : vector<32x128xf32>
    %229 = arith.mulf %228, %228 : vector<32x128xf32>
    %cst_111 = arith.constant dense<0.000000e+00> : vector<128xf32>
    %230 = vector.multi_reduction <add>, %229, %cst_111 [0] : vector<32x128xf32> to vector<128xf32>
    %231 = vector.shape_cast %230 : vector<128xf32> to vector<1x128xf32>
    %cst_112 = arith.constant 3.200000e+01 : f32
    %232 = vector.broadcast %cst_112 : f32 to vector<1x128xf32>
    %233 = arith.divf %231, %232 : vector<1x128xf32>
    %cst_113 = arith.constant 9.99999974E-6 : f32
    %234 = vector.broadcast %cst_113 : f32 to vector<1x128xf32>
    %235 = arith.addf %233, %234 : vector<1x128xf32>
    %236 = math.rsqrt %235 : vector<1x128xf32>
    %237 = vector.broadcast %236 : vector<1x128xf32> to vector<32x128xf32>
    %238 = arith.mulf %228, %237 : vector<32x128xf32>
    %239 = vector.broadcast %221 : vector<1x128xf32> to vector<32x128xf32>
    %240 = arith.mulf %238, %239 : vector<32x128xf32>
    %241 = vector.broadcast %222 : vector<1x128xf32> to vector<32x128xf32>
    %242 = arith.addf %240, %241 : vector<32x128xf32>
    %cst_114 = arith.constant 2.000000e-01 : f32
    %243 = vector.broadcast %cst_114 : f32 to vector<32x128xf32>
    %244 = arith.mulf %243, %242 : vector<32x128xf32>
    %245 = arith.maximumf %242, %244 : vector<32x128xf32>
    %246 = vector.shape_cast %245 : vector<32x128xf32> to vector<2x16x128xf32>
    %c0_115 = arith.constant 0 : index
    %c0_116 = arith.constant 0 : index
    %247 = vector.load %arg10[%c0_115, %c0_116] : memref<16x128xf32, #tpu.memory_space<vmem>>, vector<16x128xf32>
    %248 = vector.shape_cast %247 : vector<16x128xf32> to vector<1x16x128xf32>
    %249 = vector.broadcast %248 : vector<1x16x128xf32> to vector<2x16x128xf32>
    %250 = arith.mulf %246, %249 : vector<2x16x128xf32>
    %cst_117 = arith.constant dense<0.000000e+00> : vector<2x16xf32>
    %251 = vector.multi_reduction <add>, %250, %cst_117 [2] : vector<2x16x128xf32> to vector<2x16xf32>
    %cst_118 = arith.constant dense<0.000000e+00> : vector<2xf32>
    %252 = vector.multi_reduction <add>, %251, %cst_118 [1] : vector<2x16xf32> to vector<2xf32>
    %253 = vector.shape_cast %252 : vector<2xf32> to vector<2x1xf32>
    %cst_119 = arith.constant 0.000000e+00 : f32
    %254 = vector.broadcast %cst_119 : f32 to vector<2x1xf32>
    %255 = arith.subf %254, %253 : vector<2x1xf32>
    %256 = math.exp %255 : vector<2x1xf32>
    %cst_120 = arith.constant 1.000000e+00 : f32
    %257 = vector.broadcast %cst_120 : f32 to vector<2x1xf32>
    %258 = arith.addf %257, %256 : vector<2x1xf32>
    %cst_121 = arith.constant 1.000000e+00 : f32
    %259 = vector.broadcast %cst_121 : f32 to vector<2x1xf32>
    %260 = arith.divf %259, %258 : vector<2x1xf32>
    %c0_122 = arith.constant 0 : index
    %c0_123 = arith.constant 0 : index
    %261 = vector.load %arg11[%c0_122, %c0_123] : memref<2x1xf32, #tpu.memory_space<vmem>>, vector<2x1xf32>
    tpu.vector_store %arg11[%c0_122, %c0_123], %260 {strides = array<i32>} : memref<2x1xf32, #tpu.memory_space<vmem>>, vector<2x1xf32>,
    return
  }
}

</mosaic_0001>

<llo_original>
// kernel: discriminator_forward.1
$region0: #{discriminator_forward.1}
  #allocation0 [shape = 'u32[]', space=smem, size = 0x4, offset = 0x4, fixed_abs, tag = 'smem constant byte address 0x4 - core index']
  #allocation1 [shape = 'u32[144,128]{1,0:T(1,128)}', space=vmem, size = 0x12000, scoped, tag = 'internal scratch']
  %s0 = inlined_call_operand.vmem [shape: bf16[392,16], index: 0, kind: input, shape index: {}]
  %s1 = inlined_call_operand.vmem [shape: bf16[16,32], index: 1, kind: input, shape index: {}]
  %s2 = inlined_call_operand.vmem [shape: s32[128,4], index: 2, kind: input, shape index: {}]
  %s3 = inlined_call_operand.vmem [shape: bf16[128,64], index: 3, kind: input, shape index: {}]
  %s4 = inlined_call_operand.vmem [shape: f32[1,64], index: 4, kind: input, shape index: {}]
  %s5 = inlined_call_operand.vmem [shape: f32[1,64], index: 5, kind: input, shape index: {}]
  %s6 = inlined_call_operand.vmem [shape: s32[32,16], index: 6, kind: input, shape index: {}]
  %s7 = inlined_call_operand.vmem [shape: bf16[1024,128], index: 7, kind: input, shape index: {}]
  %s8 = inlined_call_operand.vmem [shape: f32[1,128], index: 8, kind: input, shape index: {}]
  %s9 = inlined_call_operand.vmem [shape: f32[1,128], index: 9, kind: input, shape index: {}]
  %s10 = inlined_call_operand.vmem [shape: f32[16,128], index: 10, kind: input, shape index: {}]
  %s11 = inlined_call_operand.vmem [shape: f32[2,1], index: 11, kind: output, shape index: {}]
  %s12 = sld [smem:[#allocation0]]
  $region54: #{discriminator_forward.1} parent=0
    _
  %s14 = ssub.s32 1, %s12
  %s15 = scalar_select 0, %s14, %s12
  // Predicated region
  $region2: #{discriminator_forward.1} parent=0 // pred_check
    _
  $region3: #{discriminator_forward.1} parent=0 // pred_check_branch
    %17 = sbr.rel (0) target = $region5
  $region4: #{discriminator_forward.1} parent=0 // pred_region
    _
  $region5: #{discriminator_forward.1} parent=0 // pred_fallthru
    _
  // Predicated region
  $region6: #{discriminator_forward.1} parent=0 // pred_check
    _
  $region7: #{discriminator_forward.1} parent=0 // pred_check_branch
    %19 = sbr.rel (0) target = $region9
  $region8: #{discriminator_forward.1} parent=0 // pred_region
    _
  $region9: #{discriminator_forward.1} parent=0 // pred_fallthru
    _
  // Predicated region
  $region10: #{discriminator_forward.1} parent=0 // pred_check
    _
  $region11: #{discriminator_forward.1} parent=0 // pred_check_branch
    %21 = sbr.rel (0) target = $region13
  $region12: #{discriminator_forward.1} parent=0 // pred_region
    _
  $region13: #{discriminator_forward.1} parent=0 // pred_fallthru
    _
  // Predicated region
  $region14: #{discriminator_forward.1} parent=0 // pred_check
    _
  $region15: #{discriminator_forward.1} parent=0 // pred_check_branch
    %23 = sbr.rel (0) target = $region17
  $region16: #{discriminator_forward.1} parent=0 // pred_region
    _
  $region17: #{discriminator_forward.1} parent=0 // pred_fallthru
    _
  // Predicated region
  $region18: #{discriminator_forward.1} parent=0 // pred_check
    _
  $region19: #{discriminator_forward.1} parent=0 // pred_check_branch
    %25 = sbr.rel (0) target = $region21
  $region20: #{discriminator_forward.1} parent=0 // pred_region
    _
  $region21: #{discriminator_forward.1} parent=0 // pred_fallthru
    _
  // Predicated region
  $region22: #{discriminator_forward.1} parent=0 // pred_check
    _
  $region23: #{discriminator_forward.1} parent=0 // pred_check_branch
    %27 = sbr.rel (0) target = $region25
  $region24: #{discriminator_forward.1} parent=0 // pred_region
    _
  $region25: #{discriminator_forward.1} parent=0 // pred_fallthru
    _
  // Predicated region
  $region26: #{discriminator_forward.1} parent=0 // pred_check
    _
  $region27: #{discriminator_forward.1} parent=0 // pred_check_branch
    %29 = sbr.rel (0) target = $region29
  $region28: #{discriminator_forward.1} parent=0 // pred_region
    _
  $region29: #{discriminator_forward.1} parent=0 // pred_fallthru
    _
  // Predicated region
  $region30: #{discriminator_forward.1} parent=0 // pred_check
    _
  $region31: #{discriminator_forward.1} parent=0 // pred_check_branch
    %31 = sbr.rel (0) target = $region33
  $region32: #{discriminator_forward.1} parent=0 // pred_region
    _
  $region33: #{discriminator_forward.1} parent=0 // pred_fallthru
    _
  // Predicated region
  $region34: #{discriminator_forward.1} parent=0 // pred_check
    _
  $region35: #{discriminator_forward.1} parent=0 // pred_check_branch
    %33 = sbr.rel (0) target = $region37
  $region36: #{discriminator_forward.1} parent=0 // pred_region
    _
  $region37: #{discriminator_forward.1} parent=0 // pred_fallthru
    _
  // Predicated region
  $region38: #{discriminator_forward.1} parent=0 // pred_check
    _
  $region39: #{discriminator_forward.1} parent=0 // pred_check_branch
    %35 = sbr.rel (0) target = $region41
  $region40: #{discriminator_forward.1} parent=0 // pred_region
    _
  $region41: #{discriminator_forward.1} parent=0 // pred_fallthru
    _
  // Predicated region
  $region42: #{discriminator_forward.1} parent=0 // pred_check
    _
  $region43: #{discriminator_forward.1} parent=0 // pred_check_branch
    %37 = sbr.rel (0) target = $region45
  $region44: #{discriminator_forward.1} parent=0 // pred_region
    _
  $region45: #{discriminator_forward.1} parent=0 // pred_fallthru
    _
  %v39 = vld [vmem:[%s0] sm:$0xf]
  %v40 = vld [vmem:[%s0 + $0x4] sm:$0xf]
  %v41 = vld [vmem:[%s0 + $0x8] sm:$0xf]
  %v42 = vld [vmem:[%s0 + $0xc] sm:$0xf]
  %v43 = vld [vmem:[%s0 + $0x10] sm:$0xf]
  %v44 = vld [vmem:[%s0 + $0x14] sm:$0xf]
  %v45 = vld [vmem:[%s0 + $0x18] sm:$0xf]
  %v46 = vld [vmem:[%s0 + $0x1c] sm:$0xf]
  %v47 = vld [vmem:[%s0 + $0x20] sm:$0xf]
  %v48 = vld [vmem:[%s0 + $0x24] sm:$0xf]
  %v49 = vld [vmem:[%s0 + $0x28] sm:$0xf]
  %v50 = vld [vmem:[%s0 + $0x2c] sm:$0xf]
  %v51 = vld [vmem:[%s0 + $0x30] sm:$0xf]
  %v52 = vld [vmem:[%s0 + $0x34] sm:$0xf]
  %v53 = vld [vmem:[%s0 + $0x38] sm:$0xf]
  %v54 = vld [vmem:[%s0 + $0x3c] sm:$0xf]
  %v55 = vld [vmem:[%s0 + $0x40] sm:$0xf]
  %v56 = vld [vmem:[%s0 + $0x44] sm:$0xf]
  %v57 = vld [vmem:[%s0 + $0x48] sm:$0xf]
  %v58 = vld [vmem:[%s0 + $0x4c] sm:$0xf]
  %v59 = vld [vmem:[%s0 + $0x50] sm:$0xf]
  %v60 = vld [vmem:[%s0 + $0x54] sm:$0xf]
  %v61 = vld [vmem:[%s0 + $0x58] sm:$0xf]
  %v62 = vld [vmem:[%s0 + $0x5c] sm:$0xf]
  %v63 = vld [vmem:[%s0 + $0x60] sm:$0xf]
  %v64 = vld [vmem:[%s0 + $0x64] sm:$0xf]
  %v65 = vld [vmem:[%s0 + $0x68] sm:$0xf]
  %v66 = vld [vmem:[%s0 + $0x6c] sm:$0xf]
  %v67 = vld [vmem:[%s0 + $0x70] sm:$0xf]
  %v68 = vld [vmem:[%s0 + $0x74] sm:$0xf]
  %v69 = vld [vmem:[%s0 + $0x78] sm:$0xf]
  %v70 = vld [vmem:[%s0 + $0x7c] sm:$0xf]
  %v71 = vld [vmem:[%s0 + $0x80] sm:$0xf]
  %v72 = vld [vmem:[%s0 + $0x84] sm:$0xf]
  %v73 = vld [vmem:[%s0 + $0x88] sm:$0xf]
  %v74 = vld [vmem:[%s0 + $0x8c] sm:$0xf]
  %v75 = vld [vmem:[%s0 + $0x90] sm:$0xf]
  %v76 = vld [vmem:[%s0 + $0x94] sm:$0xf]
  %v77 = vld [vmem:[%s0 + $0x98] sm:$0xf]
  %v78 = vld [vmem:[%s0 + $0x9c] sm:$0xf]
  %v79 = vld [vmem:[%s0 + $0xa0] sm:$0xf]
  %v80 = vld [vmem:[%s0 + $0xa4] sm:$0xf]
  %v81 = vld [vmem:[%s0 + $0xa8] sm:$0xf]
  %v82 = vld [vmem:[%s0 + $0xac] sm:$0xf]
  %v83 = vld [vmem:[%s0 + $0xb0] sm:$0xf]
  %v84 = vld [vmem:[%s0 + $0xb4] sm:$0xf]
  %v85 = vld [vmem:[%s0 + $0xb8] sm:$0xf]
  %v86 = vld [vmem:[%s0 + $0xbc] sm:$0xf]
  %v87 = vld [vmem:[%s0 + $0xc0] sm:$0xf]
  %v88 = vld [vmem:[%s1] sm:$0xf]
  %v89 = vld [vmem:[%s1 + $0x4] sm:$0xf]
  %v139 = vunpack.c.l.b16 %v39
  %v140 = vunpack.c.l.b16 %v40
  %v141 = vunpack.c.l.b16 %v41
  %v142 = vunpack.c.l.b16 %v42
  %v143 = vunpack.c.l.b16 %v43
  %v144 = vunpack.c.l.b16 %v44
  %v145 = vunpack.c.l.b16 %v45
  %v146 = vunpack.c.l.b16 %v46
  %v147 = vunpack.c.l.b16 %v47
  %v148 = vunpack.c.l.b16 %v48
  %v149 = vunpack.c.l.b16 %v49
  %v150 = vunpack.c.l.b16 %v50
  %v151 = vunpack.c.l.b16 %v51
  %v152 = vunpack.c.l.b16 %v52
  %v153 = vunpack.c.l.b16 %v53
  %v154 = vunpack.c.l.b16 %v54
  %v155 = vunpack.c.l.b16 %v55
  %v156 = vunpack.c.l.b16 %v56
  %v157 = vunpack.c.l.b16 %v57
  %v158 = vunpack.c.l.b16 %v58
  %v159 = vunpack.c.l.b16 %v59
  %v160 = vunpack.c.l.b16 %v60
  %v161 = vunpack.c.l.b16 %v61
  %v162 = vunpack.c.l.b16 %v62
  %v163 = vunpack.c.l.b16 %v63
  %v164 = vunpack.c.l.b16 %v64
  %v165 = vunpack.c.l.b16 %v65
  %v166 = vunpack.c.l.b16 %v66
  %v167 = vunpack.c.l.b16 %v67
  %v168 = vunpack.c.l.b16 %v68
  %v169 = vunpack.c.l.b16 %v69
  %v170 = vunpack.c.l.b16 %v70
  %v171 = vunpack.c.l.b16 %v71
  %v172 = vunpack.c.l.b16 %v72
  %v173 = vunpack.c.l.b16 %v73
  %v174 = vunpack.c.l.b16 %v74
  %v175 = vunpack.c.l.b16 %v75
  %v176 = vunpack.c.l.b16 %v76
  %v177 = vunpack.c.l.b16 %v77
  %v178 = vunpack.c.l.b16 %v78
  %v179 = vunpack.c.l.b16 %v79
  %v180 = vunpack.c.l.b16 %v80
  %v181 = vunpack.c.l.b16 %v81
  %v182 = vunpack.c.l.b16 %v82
  %v183 = vunpack.c.l.b16 %v83
  %v184 = vunpack.c.l.b16 %v84
  %v185 = vunpack.c.l.b16 %v85
  %v186 = vunpack.c.l.b16 %v86
  %v187 = vunpack.c.l.b16 %v87
  %v188 = vpack.c.b16 %v140, %v139
  %v189 = vpack.c.b16 %v142, %v141
  %v190 = vpack.c.b16 %v144, %v143
  %v191 = vpack.c.b16 %v146, %v145
  %v192 = vpack.c.b16 %v148, %v147
  %v193 = vpack.c.b16 %v150, %v149
  %v194 = vpack.c.b16 %v152, %v151
  %v195 = vpack.c.b16 %v154, %v153
  %v196 = vpack.c.b16 %v156, %v155
  %v197 = vpack.c.b16 %v158, %v157
  %v198 = vpack.c.b16 %v160, %v159
  %v199 = vpack.c.b16 %v162, %v161
  %v200 = vpack.c.b16 %v164, %v163
  %v201 = vpack.c.b16 %v166, %v165
  %v202 = vpack.c.b16 %v168, %v167
  %v203 = vpack.c.b16 %v170, %v169
  %v204 = vpack.c.b16 %v172, %v171
  %v205 = vpack.c.b16 %v174, %v173
  %v206 = vpack.c.b16 %v176, %v175
  %v207 = vpack.c.b16 %v178, %v177
  %v208 = vpack.c.b16 %v180, %v179
  %v209 = vpack.c.b16 %v182, %v181
  %v210 = vpack.c.b16 %v184, %v183
  %v211 = vpack.c.b16 %v186, %v185
  %v212 = vpack.c.b16 %v187, %v187
  %v215 = vunpack.c.l.b16 %v88
  %v216 = vunpack.c.l.b16 %v89
  %v217 = vpack.c.b16 %v216, %v215
  %vm219 = vcmask 130048
  %v221 = vsel %vm219, %v188, 0
  %v224 = vsel %vm219, %v189, 0
  %v227 = vsel %vm219, %v190, 0
  %v230 = vsel %vm219, %v191, 0
  %v233 = vsel %vm219, %v192, 0
  %v236 = vsel %vm219, %v193, 0
  %v239 = vsel %vm219, %v194, 0
  %v242 = vsel %vm219, %v195, 0
  %v245 = vsel %vm219, %v196, 0
  %v248 = vsel %vm219, %v197, 0
  %v251 = vsel %vm219, %v198, 0
  %v254 = vsel %vm219, %v199, 0
  %v257 = vsel %vm219, %v200, 0
  %v260 = vsel %vm219, %v201, 0
  %v263 = vsel %vm219, %v202, 0
  %v266 = vsel %vm219, %v203, 0
  %v269 = vsel %vm219, %v204, 0
  %v272 = vsel %vm219, %v205, 0
  %v275 = vsel %vm219, %v206, 0
  %v278 = vsel %vm219, %v207, 0
  %v281 = vsel %vm219, %v208, 0
  %v284 = vsel %vm219, %v209, 0
  %v287 = vsel %vm219, %v210, 0
  %v290 = vsel %vm219, %v211, 0
  %v293 = vsel %vm219, %v212, 0
  %295 = vmatprep.subr.bf16.mxu0 0
  %296 = vmatpush1.bf16.msra.mxu0 0
  %297 = vmatprep.subr.bf16.mxu0 0
  %298 = vmatpush1.bf16.msra.mxu0 0
  %299 = vmatprep.subr.bf16.mxu0 0
  %300 = vmatpush1.bf16.msra.mxu0 0
  %301 = vmatprep.subr.bf16.mxu0 0
  %302 = vmatpush1.bf16.msra.mxu0 0
  %303 = vmatprep.subr.bf16.mxu0 0
  %304 = vmatpush1.bf16.msra.mxu0 0
  %305 = vmatprep.subr.bf16.mxu0 0
  %306 = vmatpush1.bf16.msra.mxu0 0
  %307 = vmatprep.subr.bf16.mxu0 0
  %308 = vmatpush1.bf16.msra.mxu0 0
  %309 = vmatprep.subr.bf16.mxu0 0
  %310 = vmatpush1.bf16.msra.mxu0 %v217
  %311 = vmatprep.subr.bf16.mxu0 0
  %312 = vmatpush2.bf16.msra.mxu0 0
  %313 = vmatprep.subr.bf16.mxu0 0
  %314 = vmatpush2.bf16.msra.mxu0 0
  %315 = vmatprep.subr.bf16.mxu0 0
  %316 = vmatpush2.bf16.msra.mxu0 0
  %317 = vmatprep.subr.bf16.mxu0 0
  %318 = vmatpush2.bf16.msra.mxu0 0
  %319 = vmatprep.subr.bf16.mxu0 0
  %320 = vmatpush2.bf16.msra.mxu0 0
  %321 = vmatprep.subr.bf16.mxu0 0
  %322 = vmatpush2.bf16.msra.mxu0 0
  %323 = vmatprep.subr.bf16.mxu0 0
  %324 = vmatpush2.bf16.msra.mxu0 0
  %325 = vmatprep.subr.bf16.mxu0 0
  %326 = vmatpush2.bf16.msra.mxu0 0
  %327 = vmatprep.mubr.bf16.mxu0 0
  %328 = vmatmul.mubr.bf16.gmra.mxu0 %v221
  %v329 = vpop.f32.mrf.mxu0
  %v330 = vadd.f32 0.0, %v329
  %v331 = vpop.f32.mrf.mxu0
  %v332 = vpop.f32.mrf.mxu0
  %v333 = vadd.f32 0.0, %v332
  %v334 = vpop.f32.mrf.mxu0
  %335 = vmatprep.mubr.bf16.mxu0 0
  %336 = vmatmul.mubr.bf16.gmra.mxu0 %v224
  %v337 = vpop.f32.mrf.mxu0
  %v338 = vadd.f32 0.0, %v337
  %v339 = vpop.f32.mrf.mxu0
  %v340 = vpop.f32.mrf.mxu0
  %v341 = vadd.f32 0.0, %v340
  %v342 = vpop.f32.mrf.mxu0
  %343 = vmatprep.mubr.bf16.mxu0 0
  %344 = vmatmul.mubr.bf16.gmra.mxu0 %v227
  %v345 = vpop.f32.mrf.mxu0
  %v346 = vadd.f32 0.0, %v345
  %v347 = vpop.f32.mrf.mxu0
  %v348 = vpop.f32.mrf.mxu0
  %v349 = vadd.f32 0.0, %v348
  %v350 = vpop.f32.mrf.mxu0
  %351 = vmatprep.mubr.bf16.mxu0 0
  %352 = vmatmul.mubr.bf16.gmra.mxu0 %v230
  %v353 = vpop.f32.mrf.mxu0
  %v354 = vadd.f32 0.0, %v353
  %v355 = vpop.f32.mrf.mxu0
  %v356 = vpop.f32.mrf.mxu0
  %v357 = vadd.f32 0.0, %v356
  %v358 = vpop.f32.mrf.mxu0
  %359 = vmatprep.mubr.bf16.mxu0 0
  %360 = vmatmul.mubr.bf16.gmra.mxu0 %v233
  %v361 = vpop.f32.mrf.mxu0
  %v362 = vadd.f32 0.0, %v361
  %v363 = vpop.f32.mrf.mxu0
  %v364 = vpop.f32.mrf.mxu0
  %v365 = vadd.f32 0.0, %v364
  %v366 = vpop.f32.mrf.mxu0
  %367 = vmatprep.mubr.bf16.mxu0 0
  %368 = vmatmul.mubr.bf16.gmra.mxu0 %v236
  %v369 = vpop.f32.mrf.mxu0
  %v370 = vadd.f32 0.0, %v369
  %v371 = vpop.f32.mrf.mxu0
  %v372 = vpop.f32.mrf.mxu0
  %v373 = vadd.f32 0.0, %v372
  %v374 = vpop.f32.mrf.mxu0
  %375 = vmatprep.mubr.bf16.mxu0 0
  %376 = vmatmul.mubr.bf16.gmra.mxu0 %v239
  %v377 = vpop.f32.mrf.mxu0
  %v378 = vadd.f32 0.0, %v377
  %v379 = vpop.f32.mrf.mxu0
  %v380 = vpop.f32.mrf.mxu0
  %v381 = vadd.f32 0.0, %v380
  %v382 = vpop.f32.mrf.mxu0
  %383 = vmatprep.mubr.bf16.mxu0 0
  %384 = vmatmul.mubr.bf16.gmra.mxu0 %v242
  %v385 = vpop.f32.mrf.mxu0
  %v386 = vadd.f32 0.0, %v385
  %v387 = vpop.f32.mrf.mxu0
  %v388 = vpop.f32.mrf.mxu0
  %v389 = vadd.f32 0.0, %v388
  %v390 = vpop.f32.mrf.mxu0
  %391 = vmatprep.mubr.bf16.mxu0 0
  %392 = vmatmul.mubr.bf16.gmra.mxu0 %v245
  %v393 = vpop.f32.mrf.mxu0
  %v394 = vadd.f32 0.0, %v393
  %v395 = vpop.f32.mrf.mxu0
  %v396 = vpop.f32.mrf.mxu0
  %v397 = vadd.f32 0.0, %v396
  %v398 = vpop.f32.mrf.mxu0
  %399 = vmatprep.mubr.bf16.mxu0 0
  %400 = vmatmul.mubr.bf16.gmra.mxu0 %v248
  %v401 = vpop.f32.mrf.mxu0
  %v402 = vadd.f32 0.0, %v401
  %v403 = vpop.f32.mrf.mxu0
  %v404 = vpop.f32.mrf.mxu0
  %v405 = vadd.f32 0.0, %v404
  %v406 = vpop.f32.mrf.mxu0
  %407 = vmatprep.mubr.bf16.mxu0 0
  %408 = vmatmul.mubr.bf16.gmra.mxu0 %v251
  %v409 = vpop.f32.mrf.mxu0
  %v410 = vadd.f32 0.0, %v409
  %v411 = vpop.f32.mrf.mxu0
  %v412 = vpop.f32.mrf.mxu0
  %v413 = vadd.f32 0.0, %v412
  %v414 = vpop.f32.mrf.mxu0
  %415 = vmatprep.mubr.bf16.mxu0 0
  %416 = vmatmul.mubr.bf16.gmra.mxu0 %v254
  %v417 = vpop.f32.mrf.mxu0
  %v418 = vadd.f32 0.0, %v417
  %v419 = vpop.f32.mrf.mxu0
  %v420 = vpop.f32.mrf.mxu0
  %v421 = vadd.f32 0.0, %v420
  %v422 = vpop.f32.mrf.mxu0
  %423 = vmatprep.mubr.bf16.mxu0 0
  %424 = vmatmul.mubr.bf16.gmra.mxu0 %v257
  %v425 = vpop.f32.mrf.mxu0
  %v426 = vadd.f32 0.0, %v425
  %v427 = vpop.f32.mrf.mxu0
  %v428 = vpop.f32.mrf.mxu0
  %v429 = vadd.f32 0.0, %v428
  %v430 = vpop.f32.mrf.mxu0
  %431 = vmatprep.mubr.bf16.mxu0 0
  %432 = vmatmul.mubr.bf16.gmra.mxu0 %v260
  %v433 = vpop.f32.mrf.mxu0
  %v434 = vadd.f32 0.0, %v433
  %v435 = vpop.f32.mrf.mxu0
  %v436 = vpop.f32.mrf.mxu0
  %v437 = vadd.f32 0.0, %v436
  %v438 = vpop.f32.mrf.mxu0
  %439 = vmatprep.mubr.bf16.mxu0 0
  %440 = vmatmul.mubr.bf16.gmra.mxu0 %v263
  %v441 = vpop.f32.mrf.mxu0
  %v442 = vadd.f32 0.0, %v441
  %v443 = vpop.f32.mrf.mxu0
  %v444 = vpop.f32.mrf.mxu0
  %v445 = vadd.f32 0.0, %v444
  %v446 = vpop.f32.mrf.mxu0
  %447 = vmatprep.mubr.bf16.mxu0 0
  %448 = vmatmul.mubr.bf16.gmra.mxu0 %v266
  %v449 = vpop.f32.mrf.mxu0
  %v450 = vadd.f32 0.0, %v449
  %v451 = vpop.f32.mrf.mxu0
  %v452 = vpop.f32.mrf.mxu0
  %v453 = vadd.f32 0.0, %v452
  %v454 = vpop.f32.mrf.mxu0
  %455 = vmatprep.mubr.bf16.mxu0 0
  %456 = vmatmul.mubr.bf16.gmra.mxu0 %v269
  %v457 = vpop.f32.mrf.mxu0
  %v458 = vadd.f32 0.0, %v457
  %v459 = vpop.f32.mrf.mxu0
  %v460 = vpop.f32.mrf.mxu0
  %v461 = vadd.f32 0.0, %v460
  %v462 = vpop.f32.mrf.mxu0
  %463 = vmatprep.mubr.bf16.mxu0 0
  %464 = vmatmul.mubr.bf16.gmra.mxu0 %v272
  %v465 = vpop.f32.mrf.mxu0
  %v466 = vadd.f32 0.0, %v465
  %v467 = vpop.f32.mrf.mxu0
  %v468 = vpop.f32.mrf.mxu0
  %v469 = vadd.f32 0.0, %v468
  %v470 = vpop.f32.mrf.mxu0
  %471 = vmatprep.mubr.bf16.mxu0 0
  %472 = vmatmul.mubr.bf16.gmra.mxu0 %v275
  %v473 = vpop.f32.mrf.mxu0
  %v474 = vadd.f32 0.0, %v473
  %v475 = vpop.f32.mrf.mxu0
  %v476 = vpop.f32.mrf.mxu0
  %v477 = vadd.f32 0.0, %v476
  %v478 = vpop.f32.mrf.mxu0
  %479 = vmatprep.mubr.bf16.mxu0 0
  %480 = vmatmul.mubr.bf16.gmra.mxu0 %v278
  %v481 = vpop.f32.mrf.mxu0
  %v482 = vadd.f32 0.0, %v481
  %v483 = vpop.f32.mrf.mxu0
  %v484 = vpop.f32.mrf.mxu0
  %v485 = vadd.f32 0.0, %v484
  %v486 = vpop.f32.mrf.mxu0
  %487 = vmatprep.mubr.bf16.mxu0 0
  %488 = vmatmul.mubr.bf16.gmra.mxu0 %v281
  %v489 = vpop.f32.mrf.mxu0
  %v490 = vadd.f32 0.0, %v489
  %v491 = vpop.f32.mrf.mxu0
  %v492 = vpop.f32.mrf.mxu0
  %v493 = vadd.f32 0.0, %v492
  %v494 = vpop.f32.mrf.mxu0
  %495 = vmatprep.mubr.bf16.mxu0 0
  %496 = vmatmul.mubr.bf16.gmra.mxu0 %v284
  %v497 = vpop.f32.mrf.mxu0
  %v498 = vadd.f32 0.0, %v497
  %v499 = vpop.f32.mrf.mxu0
  %v500 = vpop.f32.mrf.mxu0
  %v501 = vadd.f32 0.0, %v500
  %v502 = vpop.f32.mrf.mxu0
  %503 = vmatprep.mubr.bf16.mxu0 0
  %504 = vmatmul.mubr.bf16.gmra.mxu0 %v287
  %v505 = vpop.f32.mrf.mxu0
  %v506 = vadd.f32 0.0, %v505
  %v507 = vpop.f32.mrf.mxu0
  %v508 = vpop.f32.mrf.mxu0
  %v509 = vadd.f32 0.0, %v508
  %v510 = vpop.f32.mrf.mxu0
  %511 = vmatprep.mubr.bf16.mxu0 0
  %512 = vmatmul.mubr.bf16.gmra.mxu0 %v290
  %v513 = vpop.f32.mrf.mxu0
  %v514 = vadd.f32 0.0, %v513
  %v515 = vpop.f32.mrf.mxu0
  %v516 = vpop.f32.mrf.mxu0
  %v517 = vadd.f32 0.0, %v516
  %v518 = vpop.f32.mrf.mxu0
  %519 = vmatprep.mubr.bf16.mxu0 0
  %520 = vmatmul.mubr.bf16.gmra.mxu0 %v293
  %v521 = vpop.f32.mrf.mxu0
  %v522 = vadd.f32 0.0, %v521
  %v523 = vpop.f32.mrf.mxu0
  %v524 = vpop.f32.mrf.mxu0
  %v525 = vpop.f32.mrf.mxu0
  %526 = vdwg.mxu0
  %v527 = vmul.f32 %v330, 0.2
  %v528 = vmul.f32 %v333, 0.2
  %v529 = vmul.f32 %v338, 0.2
  %v530 = vmul.f32 %v341, 0.2
  %v531 = vmul.f32 %v346, 0.2
  %v532 = vmul.f32 %v349, 0.2
  %v533 = vmul.f32 %v354, 0.2
  %v534 = vmul.f32 %v357, 0.2
  %v535 = vmul.f32 %v362, 0.2
  %v536 = vmul.f32 %v365, 0.2
  %v537 = vmul.f32 %v370, 0.2
  %v538 = vmul.f32 %v373, 0.2
  %v539 = vmul.f32 %v378, 0.2
  %v540 = vmul.f32 %v381, 0.2
  %v541 = vmul.f32 %v386, 0.2
  %v542 = vmul.f32 %v389, 0.2
  %v543 = vmul.f32 %v394, 0.2
  %v544 = vmul.f32 %v397, 0.2
  %v545 = vmul.f32 %v402, 0.2
  %v546 = vmul.f32 %v405, 0.2
  %v547 = vmul.f32 %v410, 0.2
  %v548 = vmul.f32 %v413, 0.2
  %v549 = vmul.f32 %v418, 0.2
  %v550 = vmul.f32 %v421, 0.2
  %v551 = vmul.f32 %v426, 0.2
  %v552 = vmul.f32 %v429, 0.2
  %v553 = vmul.f32 %v434, 0.2
  %v554 = vmul.f32 %v437, 0.2
  %v555 = vmul.f32 %v442, 0.2
  %v556 = vmul.f32 %v445, 0.2
  %v557 = vmul.f32 %v450, 0.2
  %v558 = vmul.f32 %v453, 0.2
  %v559 = vmul.f32 %v458, 0.2
  %v560 = vmul.f32 %v461, 0.2
  %v561 = vmul.f32 %v466, 0.2
  %v562 = vmul.f32 %v469, 0.2
  %v563 = vmul.f32 %v474, 0.2
  %v564 = vmul.f32 %v477, 0.2
  %v565 = vmul.f32 %v482, 0.2
  %v566 = vmul.f32 %v485, 0.2
  %v567 = vmul.f32 %v490, 0.2
  %v568 = vmul.f32 %v493, 0.2
  %v569 = vmul.f32 %v498, 0.2
  %v570 = vmul.f32 %v501, 0.2
  %v571 = vmul.f32 %v506, 0.2
  %v572 = vmul.f32 %v509, 0.2
  %v573 = vmul.f32 %v514, 0.2
  %v574 = vmul.f32 %v517, 0.2
  %v575 = vmul.f32 %v522, 0.2
  %v576 = vmax.f32 %v330, %v527
  %v577 = vmax.f32 %v333, %v528
  %v578 = vmax.f32 %v338, %v529
  %v579 = vmax.f32 %v341, %v530
  %v580 = vmax.f32 %v346, %v531
  %v581 = vmax.f32 %v349, %v532
  %v582 = vmax.f32 %v354, %v533
  %v583 = vmax.f32 %v357, %v534
  %v584 = vmax.f32 %v362, %v535
  %v585 = vmax.f32 %v365, %v536
  %v586 = vmax.f32 %v370, %v537
  %v587 = vmax.f32 %v373, %v538
  %v588 = vmax.f32 %v378, %v539
  %v589 = vmax.f32 %v381, %v540
  %v590 = vmax.f32 %v386, %v541
  %v591 = vmax.f32 %v389, %v542
  %v592 = vmax.f32 %v394, %v543
  %v593 = vmax.f32 %v397, %v544
  %v594 = vmax.f32 %v402, %v545
  %v595 = vmax.f32 %v405, %v546
  %v596 = vmax.f32 %v410, %v547
  %v597 = vmax.f32 %v413, %v548
  %v598 = vmax.f32 %v418, %v549
  %v599 = vmax.f32 %v421, %v550
  %v600 = vmax.f32 %v426, %v551
  %v601 = vmax.f32 %v429, %v552
  %v602 = vmax.f32 %v434, %v553
  %v603 = vmax.f32 %v437, %v554
  %v604 = vmax.f32 %v442, %v555
  %v605 = vmax.f32 %v445, %v556
  %v606 = vmax.f32 %v450, %v557
  %v607 = vmax.f32 %v453, %v558
  %v608 = vmax.f32 %v458, %v559
  %v609 = vmax.f32 %v461, %v560
  %v610 = vmax.f32 %v466, %v561
  %v611 = vmax.f32 %v469, %v562
  %v612 = vmax.f32 %v474, %v563
  %v613 = vmax.f32 %v477, %v564
  %v614 = vmax.f32 %v482, %v565
  %v615 = vmax.f32 %v485, %v566
  %v616 = vmax.f32 %v490, %v567
  %v617 = vmax.f32 %v493, %v568
  %v618 = vmax.f32 %v498, %v569
  %v619 = vmax.f32 %v501, %v570
  %v620 = vmax.f32 %v506, %v571
  %v621 = vmax.f32 %v509, %v572
  %v622 = vmax.f32 %v514, %v573
  %v623 = vmax.f32 %v517, %v574
  %v624 = vmax.f32 %v522, %v575
  %v625 = vpack.c.bf16 %v577, %v576
  %v626 = vpack.c.bf16 %v579, %v578
  %v627 = vpack.c.bf16 %v581, %v580
  %v628 = vpack.c.bf16 %v583, %v582
  %v629 = vpack.c.bf16 %v585, %v584
  %v630 = vpack.c.bf16 %v587, %v586
  %v631 = vpack.c.bf16 %v589, %v588
  %v632 = vpack.c.bf16 %v591, %v590
  %v633 = vpack.c.bf16 %v593, %v592
  %v634 = vpack.c.bf16 %v595, %v594
  %v635 = vpack.c.bf16 %v597, %v596
  %v636 = vpack.c.bf16 %v599, %v598
  %v637 = vpack.c.bf16 %v601, %v600
  %v638 = vpack.c.bf16 %v603, %v602
  %v639 = vpack.c.bf16 %v605, %v604
  %v640 = vpack.c.bf16 %v607, %v606
  %v641 = vpack.c.bf16 %v609, %v608
  %v642 = vpack.c.bf16 %v611, %v610
  %v643 = vpack.c.bf16 %v613, %v612
  %v644 = vpack.c.bf16 %v615, %v614
  %v645 = vpack.c.bf16 %v617, %v616
  %v646 = vpack.c.bf16 %v619, %v618
  %v647 = vpack.c.bf16 %v621, %v620
  %v648 = vpack.c.bf16 %v623, %v622
  %v649 = vpack.c.bf16 %v624, %v624
  %v650 = vlaneseq
  %v651 = vand.u32 %v650, 127
  %v652 = vadd.s32 %v651, 128
  %v653 = vadd.s32 %v651, 256
  %v654 = vadd.s32 %v651, 384
  %v655 = vld [vmem:[%s2] sm:$0xff]
  %v656 = vld [vmem:[%s2 + $0x8] sm:$0xff]
  %v657 = vld [vmem:[%s2 + $0x10] sm:$0xff]
  %v658 = vld [vmem:[%s2 + $0x18] sm:$0xff]
  %v659 = vld [vmem:[%s2 + $0x20] sm:$0xff]
  %v660 = vld [vmem:[%s2 + $0x28] sm:$0xff]
  %v661 = vld [vmem:[%s2 + $0x30] sm:$0xff]
  %v662 = vld [vmem:[%s2 + $0x38] sm:$0xff]
  %v663 = vld [vmem:[%s2 + $0x40] sm:$0xff]
  %v664 = vld [vmem:[%s2 + $0x48] sm:$0xff]
  %v665 = vld [vmem:[%s2 + $0x50] sm:$0xff]
  %v666 = vld [vmem:[%s2 + $0x58] sm:$0xff]
  %v667 = vld [vmem:[%s2 + $0x60] sm:$0xff]
  %v668 = vld [vmem:[%s2 + $0x68] sm:$0xff]
  %v669 = vld [vmem:[%s2 + $0x70] sm:$0xff]
  %v670 = vld [vmem:[%s2 + $0x78] sm:$0xff]
  %671 = vset.pattern.permute.xlu0 0
  %672 = vperm.xlu0 %671, %v655
  %v673 = vpop.permute.xlu0 %672
  %674 = vset.pattern.permute.xlu0 0
  %675 = vperm.xlu0 %674, %v656
  %v676 = vpop.permute.xlu0 %675
  %677 = vset.pattern.permute.xlu0 0
  %678 = vperm.xlu0 %677, %v657
  %v679 = vpop.permute.xlu0 %678
  %680 = vset.pattern.permute.xlu0 0
  %681 = vperm.xlu0 %680, %v658
  %v682 = vpop.permute.xlu0 %681
  %683 = vset.pattern.permute.xlu0 0
  %684 = vperm.xlu0 %683, %v659
  %v685 = vpop.permute.xlu0 %684
  %686 = vset.pattern.permute.xlu0 0
  %687 = vperm.xlu0 %686, %v660
  %v688 = vpop.permute.xlu0 %687
  %689 = vset.pattern.permute.xlu0 0
  %690 = vperm.xlu0 %689, %v661
  %v691 = vpop.permute.xlu0 %690
  %692 = vset.pattern.permute.xlu0 0
  %693 = vperm.xlu0 %692, %v662
  %v694 = vpop.permute.xlu0 %693
  %695 = vset.pattern.permute.xlu0 0
  %696 = vperm.xlu0 %695, %v663
  %v697 = vpop.permute.xlu0 %696
  %698 = vset.pattern.permute.xlu0 0
  %699 = vperm.xlu0 %698, %v664
  %v700 = vpop.permute.xlu0 %699
  %701 = vset.pattern.permute.xlu0 0
  %702 = vperm.xlu0 %701, %v665
  %v703 = vpop.permute.xlu0 %702
  %704 = vset.pattern.permute.xlu0 0
  %705 = vperm.xlu0 %704, %v666
  %v706 = vpop.permute.xlu0 %705
  %707 = vset.pattern.permute.xlu0 0
  %708 = vperm.xlu0 %707, %v667
  %v709 = vpop.permute.xlu0 %708
  %710 = vset.pattern.permute.xlu0 0
  %711 = vperm.xlu0 %710, %v668
  %v712 = vpop.permute.xlu0 %711
  %713 = vset.pattern.permute.xlu0 0
  %714 = vperm.xlu0 %713, %v669
  %v715 = vpop.permute.xlu0 %714
  %716 = vset.pattern.permute.xlu0 0
  %717 = vperm.xlu0 %716, %v670
  %v718 = vpop.permute.xlu0 %717
  %vm719 = vcmp.eq.s32.totalorder %v651, %v673
  %vm720 = vcmp.eq.s32.totalorder %v652, %v673
  %vm721 = vcmp.eq.s32.totalorder %v653, %v673
  %vm722 = vcmp.eq.s32.totalorder %v654, %v673
  %vm723 = vcmp.eq.s32.totalorder %v651, %v676
  %vm724 = vcmp.eq.s32.totalorder %v652, %v676
  %vm725 = vcmp.eq.s32.totalorder %v653, %v676
  %vm726 = vcmp.eq.s32.totalorder %v654, %v676
  %vm727 = vcmp.eq.s32.totalorder %v651, %v679
  %vm728 = vcmp.eq.s32.totalorder %v652, %v679
  %vm729 = vcmp.eq.s32.totalorder %v653, %v679
  %vm730 = vcmp.eq.s32.totalorder %v654, %v679
  %vm731 = vcmp.eq.s32.totalorder %v651, %v682
  %vm732 = vcmp.eq.s32.totalorder %v652, %v682
  %vm733 = vcmp.eq.s32.totalorder %v653, %v682
  %vm734 = vcmp.eq.s32.totalorder %v654, %v682
  %vm735 = vcmp.eq.s32.totalorder %v651, %v685
  %vm736 = vcmp.eq.s32.totalorder %v652, %v685
  %vm737 = vcmp.eq.s32.totalorder %v653, %v685
  %vm738 = vcmp.eq.s32.totalorder %v654, %v685
  %vm739 = vcmp.eq.s32.totalorder %v651, %v688
  %vm740 = vcmp.eq.s32.totalorder %v652, %v688
  %vm741 = vcmp.eq.s32.totalorder %v653, %v688
  %vm742 = vcmp.eq.s32.totalorder %v654, %v688
  %vm743 = vcmp.eq.s32.totalorder %v651, %v691
  %vm744 = vcmp.eq.s32.totalorder %v652, %v691
  %vm745 = vcmp.eq.s32.totalorder %v653, %v691
  %vm746 = vcmp.eq.s32.totalorder %v654, %v691
  %vm747 = vcmp.eq.s32.totalorder %v651, %v694
  %vm748 = vcmp.eq.s32.totalorder %v652, %v694
  %vm749 = vcmp.eq.s32.totalorder %v653, %v694
  %vm750 = vcmp.eq.s32.totalorder %v654, %v694
  %vm751 = vcmp.eq.s32.totalorder %v651, %v697
  %vm752 = vcmp.eq.s32.totalorder %v652, %v697
  %vm753 = vcmp.eq.s32.totalorder %v653, %v697
  %vm754 = vcmp.eq.s32.totalorder %v654, %v697
  %vm755 = vcmp.eq.s32.totalorder %v651, %v700
  %vm756 = vcmp.eq.s32.totalorder %v652, %v700
  %vm757 = vcmp.eq.s32.totalorder %v653, %v700
  %vm758 = vcmp.eq.s32.totalorder %v654, %v700
  %vm759 = vcmp.eq.s32.totalorder %v651, %v703
  %vm760 = vcmp.eq.s32.totalorder %v652, %v703
  %vm761 = vcmp.eq.s32.totalorder %v653, %v703
  %vm762 = vcmp.eq.s32.totalorder %v654, %v703
  %vm763 = vcmp.eq.s32.totalorder %v651, %v706
  %vm764 = vcmp.eq.s32.totalorder %v652, %v706
  %vm765 = vcmp.eq.s32.totalorder %v653, %v706
  %vm766 = vcmp.eq.s32.totalorder %v654, %v706
  %vm767 = vcmp.eq.s32.totalorder %v651, %v709
  %vm768 = vcmp.eq.s32.totalorder %v652, %v709
  %vm769 = vcmp.eq.s32.totalorder %v653, %v709
  %vm770 = vcmp.eq.s32.totalorder %v654, %v709
  %vm771 = vcmp.eq.s32.totalorder %v651, %v712
  %vm772 = vcmp.eq.s32.totalorder %v652, %v712
  %vm773 = vcmp.eq.s32.totalorder %v653, %v712
  %vm774 = vcmp.eq.s32.totalorder %v654, %v712
  %vm775 = vcmp.eq.s32.totalorder %v651, %v715
  %vm776 = vcmp.eq.s32.totalorder %v652, %v715
  %vm777 = vcmp.eq.s32.totalorder %v653, %v715
  %vm778 = vcmp.eq.s32.totalorder %v654, %v715
  %vm779 = vcmp.eq.s32.totalorder %v651, %v718
  %vm780 = vcmp.eq.s32.totalorder %v652, %v718
  %vm781 = vcmp.eq.s32.totalorder %v653, %v718
  %vm782 = vcmp.eq.s32.totalorder %v654, %v718
  %v783 = vsel %vm719, 1.0, 0.0
  %v784 = vsel %vm720, 1.0, 0.0
  %v785 = vsel %vm721, 1.0, 0.0
  %v786 = vsel %vm722, 1.0, 0.0
  %v787 = vsel %vm723, 1.0, 0.0
  %v788 = vsel %vm724, 1.0, 0.0
  %v789 = vsel %vm725, 1.0, 0.0
  %v790 = vsel %vm726, 1.0, 0.0
  %v791 = vsel %vm727, 1.0, 0.0
  %v792 = vsel %vm728, 1.0, 0.0
  %v793 = vsel %vm729, 1.0, 0.0
  %v794 = vsel %vm730, 1.0, 0.0
  %v795 = vsel %vm731, 1.0, 0.0
  %v796 = vsel %vm732, 1.0, 0.0
  %v797 = vsel %vm733, 1.0, 0.0
  %v798 = vsel %vm734, 1.0, 0.0
  %v799 = vsel %vm735, 1.0, 0.0
  %v800 = vsel %vm736, 1.0, 0.0
  %v801 = vsel %vm737, 1.0, 0.0
  %v802 = vsel %vm738, 1.0, 0.0
  %v803 = vsel %vm739, 1.0, 0.0
  %v804 = vsel %vm740, 1.0, 0.0
  %v805 = vsel %vm741, 1.0, 0.0
  %v806 = vsel %vm742, 1.0, 0.0
  %v807 = vsel %vm743, 1.0, 0.0
  %v808 = vsel %vm744, 1.0, 0.0
  %v809 = vsel %vm745, 1.0, 0.0
  %v810 = vsel %vm746, 1.0, 0.0
  %v811 = vsel %vm747, 1.0, 0.0
  %v812 = vsel %vm748, 1.0, 0.0
  %v813 = vsel %vm749, 1.0, 0.0
  %v814 = vsel %vm750, 1.0, 0.0
  %v815 = vsel %vm751, 1.0, 0.0
  %v816 = vsel %vm752, 1.0, 0.0
  %v817 = vsel %vm753, 1.0, 0.0
  %v818 = vsel %vm754, 1.0, 0.0
  %v819 = vsel %vm755, 1.0, 0.0
  %v820 = vsel %vm756, 1.0, 0.0
  %v821 = vsel %vm757, 1.0, 0.0
  %v822 = vsel %vm758, 1.0, 0.0
  %v823 = vsel %vm759, 1.0, 0.0
  %v824 = vsel %vm760, 1.0, 0.0
  %v825 = vsel %vm761, 1.0, 0.0
  %v826 = vsel %vm762, 1.0, 0.0
  %v827 = vsel %vm763, 1.0, 0.0
  %v828 = vsel %vm764, 1.0, 0.0
  %v829 = vsel %vm765, 1.0, 0.0
  %v830 = vsel %vm766, 1.0, 0.0
  %v831 = vsel %vm767, 1.0, 0.0
  %v832 = vsel %vm768, 1.0, 0.0
  %v833 = vsel %vm769, 1.0, 0.0
  %v834 = vsel %vm770, 1.0, 0.0
  %v835 = vsel %vm771, 1.0, 0.0
  %v836 = vsel %vm772, 1.0, 0.0
  %v837 = vsel %vm773, 1.0, 0.0
  %v838 = vsel %vm774, 1.0, 0.0
  %v839 = vsel %vm775, 1.0, 0.0
  %v840 = vsel %vm776, 1.0, 0.0
  %v841 = vsel %vm777, 1.0, 0.0
  %v842 = vsel %vm778, 1.0, 0.0
  %v843 = vsel %vm779, 1.0, 0.0
  %v844 = vsel %vm780, 1.0, 0.0
  %v845 = vsel %vm781, 1.0, 0.0
  %v846 = vsel %vm782, 1.0, 0.0
  %v847 = vpack.c.bf16 %v787, %v783
  %v848 = vpack.c.bf16 %v788, %v784
  %v849 = vpack.c.bf16 %v789, %v785
  %v850 = vpack.c.bf16 %v790, %v786
  %v851 = vpack.c.bf16 %v795, %v791
  %v852 = vpack.c.bf16 %v796, %v792
  %v853 = vpack.c.bf16 %v797, %v793
  %v854 = vpack.c.bf16 %v798, %v794
  %v855 = vpack.c.bf16 %v803, %v799
  %v856 = vpack.c.bf16 %v804, %v800
  %v857 = vpack.c.bf16 %v805, %v801
  %v858 = vpack.c.bf16 %v806, %v802
  %v859 = vpack.c.bf16 %v811, %v807
  %v860 = vpack.c.bf16 %v812, %v808
  %v861 = vpack.c.bf16 %v813, %v809
  %v862 = vpack.c.bf16 %v814, %v810
  %v863 = vpack.c.bf16 %v819, %v815
  %v864 = vpack.c.bf16 %v820, %v816
  %v865 = vpack.c.bf16 %v821, %v817
  %v866 = vpack.c.bf16 %v822, %v818
  %v867 = vpack.c.bf16 %v827, %v823
  %v868 = vpack.c.bf16 %v828, %v824
  %v869 = vpack.c.bf16 %v829, %v825
  %v870 = vpack.c.bf16 %v830, %v826
  %v871 = vpack.c.bf16 %v835, %v831
  %v872 = vpack.c.bf16 %v836, %v832
  %v873 = vpack.c.bf16 %v837, %v833
  %v874 = vpack.c.bf16 %v838, %v834
  %v875 = vpack.c.bf16 %v843, %v839
  %v876 = vpack.c.bf16 %v844, %v840
  %v877 = vpack.c.bf16 %v845, %v841
  %v878 = vpack.c.bf16 %v846, %v842
  %vm879 = vcmask 64512
  %v881 = vsel %vm879, %v850, 0
  %v884 = vsel %vm879, %v854, 0
  %v887 = vsel %vm879, %v858, 0
  %v890 = vsel %vm879, %v862, 0
  %v893 = vsel %vm879, %v866, 0
  %v896 = vsel %vm879, %v870, 0
  %v899 = vsel %vm879, %v874, 0
  %v902 = vsel %vm879, %v878, 0
  %vm904 = vcmask 1043456
  %v906 = vsel %vm904, %v649, 0
  %908 = vmatprep.subr.bf16.mxu0 0
  %909 = vmatpush1.bf16.msra.mxu0 %v632
  %910 = vmatprep.subr.bf16.mxu0 0
  %911 = vmatpush1.bf16.msra.mxu0 %v631
  %912 = vmatprep.subr.bf16.mxu0 0
  %913 = vmatpush1.bf16.msra.mxu0 %v630
  %914 = vmatprep.subr.bf16.mxu0 0
  %915 = vmatpush1.bf16.msra.mxu0 %v629
  %916 = vmatprep.subr.bf16.mxu0 0
  %917 = vmatpush1.bf16.msra.mxu0 %v628
  %918 = vmatprep.subr.bf16.mxu0 0
  %919 = vmatpush1.bf16.msra.mxu0 %v627
  %920 = vmatprep.subr.bf16.mxu0 0
  %921 = vmatpush1.bf16.msra.mxu0 %v626
  %922 = vmatprep.subr.bf16.mxu0 0
  %923 = vmatpush1.bf16.msra.mxu0 %v625
  %924 = vmatprep.subr.bf16.mxu0 0
  %925 = vmatpush2.bf16.msra.mxu0 %v640
  %926 = vmatprep.subr.bf16.mxu0 0
  %927 = vmatpush2.bf16.msra.mxu0 %v639
  %928 = vmatprep.subr.bf16.mxu0 0
  %929 = vmatpush2.bf16.msra.mxu0 %v638
  %930 = vmatprep.subr.bf16.mxu0 0
  %931 = vmatpush2.bf16.msra.mxu0 %v637
  %932 = vmatprep.subr.bf16.mxu0 0
  %933 = vmatpush2.bf16.msra.mxu0 %v636
  %934 = vmatprep.subr.bf16.mxu0 0
  %935 = vmatpush2.bf16.msra.mxu0 %v635
  %936 = vmatprep.subr.bf16.mxu0 0
  %937 = vmatpush2.bf16.msra.mxu0 %v634
  %938 = vmatprep.subr.bf16.mxu0 0
  %939 = vmatpush2.bf16.msra.mxu0 %v633
  %940 = vmatprep.mubr.bf16.mxu0 %v848
  %941 = vmatmul.mubr.bf16.gmra.mxu0 %v847
  %v942 = vpop.f32.mrf.mxu0
  %v943 = vadd.f32 0.0, %v942
  %v944 = vpop.f32.mrf.mxu0
  %v945 = vpop.f32.mrf.mxu0
  %v946 = vadd.f32 0.0, %v945
  %v947 = vpop.f32.mrf.mxu0
  %948 = vmatprep.mubr.bf16.mxu0 %v852
  %949 = vmatmul.mubr.bf16.gmra.mxu0 %v851
  %v950 = vpop.f32.mrf.mxu0
  %v951 = vadd.f32 0.0, %v950
  %v952 = vpop.f32.mrf.mxu0
  %v953 = vpop.f32.mrf.mxu0
  %v954 = vadd.f32 0.0, %v953
  %v955 = vpop.f32.mrf.mxu0
  %956 = vmatprep.mubr.bf16.mxu0 %v856
  %957 = vmatmul.mubr.bf16.gmra.mxu0 %v855
  %v958 = vpop.f32.mrf.mxu0
  %v959 = vadd.f32 0.0, %v958
  %v960 = vpop.f32.mrf.mxu0
  %v961 = vpop.f32.mrf.mxu0
  %v962 = vadd.f32 0.0, %v961
  %v963 = vpop.f32.mrf.mxu0
  %964 = vmatprep.mubr.bf16.mxu0 %v860
  %965 = vmatmul.mubr.bf16.gmra.mxu0 %v859
  %v966 = vpop.f32.mrf.mxu0
  %v967 = vadd.f32 0.0, %v966
  %v968 = vpop.f32.mrf.mxu0
  %v969 = vpop.f32.mrf.mxu0
  %v970 = vadd.f32 0.0, %v969
  %v971 = vpop.f32.mrf.mxu0
  %972 = vmatprep.mubr.bf16.mxu0 %v864
  %973 = vmatmul.mubr.bf16.gmra.mxu0 %v863
  %v974 = vpop.f32.mrf.mxu0
  %v975 = vadd.f32 0.0, %v974
  %v976 = vpop.f32.mrf.mxu0
  %v977 = vpop.f32.mrf.mxu0
  %v978 = vadd.f32 0.0, %v977
  %v979 = vpop.f32.mrf.mxu0
  %980 = vmatprep.mubr.bf16.mxu0 %v868
  %981 = vmatmul.mubr.bf16.gmra.mxu0 %v867
  %v982 = vpop.f32.mrf.mxu0
  %v983 = vadd.f32 0.0, %v982
  %v984 = vpop.f32.mrf.mxu0
  %v985 = vpop.f32.mrf.mxu0
  %v986 = vadd.f32 0.0, %v985
  %v987 = vpop.f32.mrf.mxu0
  %988 = vmatprep.mubr.bf16.mxu0 %v872
  %989 = vmatmul.mubr.bf16.gmra.mxu0 %v871
  %v990 = vpop.f32.mrf.mxu0
  %v991 = vadd.f32 0.0, %v990
  %v992 = vpop.f32.mrf.mxu0
  %v993 = vpop.f32.mrf.mxu0
  %v994 = vadd.f32 0.0, %v993
  %v995 = vpop.f32.mrf.mxu0
  %996 = vmatprep.mubr.bf16.mxu0 %v876
  %997 = vmatmul.mubr.bf16.gmra.mxu0 %v875
  %v998 = vpop.f32.mrf.mxu0
  %v999 = vadd.f32 0.0, %v998
  %v1000 = vpop.f32.mrf.mxu0
  %v1001 = vpop.f32.mrf.mxu0
  %v1002 = vadd.f32 0.0, %v1001
  %v1003 = vpop.f32.mrf.mxu0
  %1004 = vdwg.mxu0
  %1005 = vmatprep.subr.bf16.mxu0 0
  %1006 = vmatpush1.bf16.msra.mxu0 %v648
  %1007 = vmatprep.subr.bf16.mxu0 0
  %1008 = vmatpush1.bf16.msra.mxu0 %v647
  %1009 = vmatprep.subr.bf16.mxu0 0
  %1010 = vmatpush1.bf16.msra.mxu0 %v646
  %1011 = vmatprep.subr.bf16.mxu0 0
  %1012 = vmatpush1.bf16.msra.mxu0 %v645
  %1013 = vmatprep.subr.bf16.mxu0 0
  %1014 = vmatpush1.bf16.msra.mxu0 %v644
  %1015 = vmatprep.subr.bf16.mxu0 0
  %1016 = vmatpush1.bf16.msra.mxu0 %v643
  %1017 = vmatprep.subr.bf16.mxu0 0
  %1018 = vmatpush1.bf16.msra.mxu0 %v642
  %1019 = vmatprep.subr.bf16.mxu0 0
  %1020 = vmatpush1.bf16.msra.mxu0 %v641
  %1021 = vmatprep.subr.bf16.mxu0 0
  %1022 = vmatpush2.bf16.msra.mxu0 0
  %1023 = vmatprep.subr.bf16.mxu0 0
  %1024 = vmatpush2.bf16.msra.mxu0 0
  %1025 = vmatprep.subr.bf16.mxu0 0
  %1026 = vmatpush2.bf16.msra.mxu0 0
  %1027 = vmatprep.subr.bf16.mxu0 0
  %1028 = vmatpush2.bf16.msra.mxu0 0
  %1029 = vmatprep.subr.bf16.mxu0 0
  %1030 = vmatpush2.bf16.msra.mxu0 0
  %1031 = vmatprep.subr.bf16.mxu0 0
  %1032 = vmatpush2.bf16.msra.mxu0 0
  %1033 = vmatprep.subr.bf16.mxu0 0
  %1034 = vmatpush2.bf16.msra.mxu0 0
  %1035 = vmatprep.subr.bf16.mxu0 0
  %1036 = vmatpush2.bf16.msra.mxu0 %v906
  %1037 = vmatprep.mubr.bf16.mxu0 %v881
  %1038 = vmatmul.mubr.bf16.gmra.mxu0 %v849
  %v1039 = vpop.f32.mrf.mxu0
  %v1040 = vadd.f32 %v943, %v1039
  %v1041 = vpop.f32.mrf.mxu0
  %v1042 = vpop.f32.mrf.mxu0
  %v1043 = vadd.f32 %v946, %v1042
  %v1044 = vpop.f32.mrf.mxu0
  %1045 = vmatprep.mubr.bf16.mxu0 %v884
  %1046 = vmatmul.mubr.bf16.gmra.mxu0 %v853
  %v1047 = vpop.f32.mrf.mxu0
  %v1048 = vadd.f32 %v951, %v1047
  %v1049 = vpop.f32.mrf.mxu0
  %v1050 = vpop.f32.mrf.mxu0
  %v1051 = vadd.f32 %v954, %v1050
  %v1052 = vpop.f32.mrf.mxu0
  %1053 = vmatprep.mubr.bf16.mxu0 %v887
  %1054 = vmatmul.mubr.bf16.gmra.mxu0 %v857
  %v1055 = vpop.f32.mrf.mxu0
  %v1056 = vadd.f32 %v959, %v1055
  %v1057 = vpop.f32.mrf.mxu0
  %v1058 = vpop.f32.mrf.mxu0
  %v1059 = vadd.f32 %v962, %v1058
  %v1060 = vpop.f32.mrf.mxu0
  %1061 = vmatprep.mubr.bf16.mxu0 %v890
  %1062 = vmatmul.mubr.bf16.gmra.mxu0 %v861
  %v1063 = vpop.f32.mrf.mxu0
  %v1064 = vadd.f32 %v967, %v1063
  %v1065 = vpop.f32.mrf.mxu0
  %v1066 = vpop.f32.mrf.mxu0
  %v1067 = vadd.f32 %v970, %v1066
  %v1068 = vpop.f32.mrf.mxu0
  %1069 = vmatprep.mubr.bf16.mxu0 %v893
  %1070 = vmatmul.mubr.bf16.gmra.mxu0 %v865
  %v1071 = vpop.f32.mrf.mxu0
  %v1072 = vadd.f32 %v975, %v1071
  %v1073 = vpop.f32.mrf.mxu0
  %v1074 = vpop.f32.mrf.mxu0
  %v1075 = vadd.f32 %v978, %v1074
  %v1076 = vpop.f32.mrf.mxu0
  %1077 = vmatprep.mubr.bf16.mxu0 %v896
  %1078 = vmatmul.mubr.bf16.gmra.mxu0 %v869
  %v1079 = vpop.f32.mrf.mxu0
  %v1080 = vadd.f32 %v983, %v1079
  %v1081 = vpop.f32.mrf.mxu0
  %v1082 = vpop.f32.mrf.mxu0
  %v1083 = vadd.f32 %v986, %v1082
  %v1084 = vpop.f32.mrf.mxu0
  %1085 = vmatprep.mubr.bf16.mxu0 %v899
  %1086 = vmatmul.mubr.bf16.gmra.mxu0 %v873
  %v1087 = vpop.f32.mrf.mxu0
  %v1088 = vadd.f32 %v991, %v1087
  %v1089 = vpop.f32.mrf.mxu0
  %v1090 = vpop.f32.mrf.mxu0
  %v1091 = vadd.f32 %v994, %v1090
  %v1092 = vpop.f32.mrf.mxu0
  %1093 = vmatprep.mubr.bf16.mxu0 %v902
  %1094 = vmatmul.mubr.bf16.gmra.mxu0 %v877
  %v1095 = vpop.f32.mrf.mxu0
  %v1096 = vadd.f32 %v999, %v1095
  %v1097 = vpop.f32.mrf.mxu0
  %v1098 = vpop.f32.mrf.mxu0
  %v1099 = vadd.f32 %v1002, %v1098
  %v1100 = vpop.f32.mrf.mxu0
  %1101 = vdwg.mxu0
  %v1102 = vpack.c.bf16 %v1043, %v1040
  %v1103 = vpack.c.bf16 %v1051, %v1048
  %v1104 = vpack.c.bf16 %v1059, %v1056
  %v1105 = vpack.c.bf16 %v1067, %v1064
  %v1106 = vpack.c.bf16 %v1075, %v1072
  %v1107 = vpack.c.bf16 %v1083, %v1080
  %v1108 = vpack.c.bf16 %v1091, %v1088
  %v1109 = vpack.c.bf16 %v1099, %v1096
  %1110 = vset.pattern.permute.xlu0 1
  %1111 = vperm.xlu0 %1110, %v655
  %v1112 = vpop.permute.xlu0 %1111
  %1113 = vset.pattern.permute.xlu0 1
  %1114 = vperm.xlu0 %1113, %v656
  %v1115 = vpop.permute.xlu0 %1114
  %1116 = vset.pattern.permute.xlu0 1
  %1117 = vperm.xlu0 %1116, %v657
  %v1118 = vpop.permute.xlu0 %1117
  %1119 = vset.pattern.permute.xlu0 1
  %1120 = vperm.xlu0 %1119, %v658
  %v1121 = vpop.permute.xlu0 %1120
  %1122 = vset.pattern.permute.xlu0 1
  %1123 = vperm.xlu0 %1122, %v659
  %v1124 = vpop.permute.xlu0 %1123
  %1125 = vset.pattern.permute.xlu0 1
  %1126 = vperm.xlu0 %1125, %v660
  %v1127 = vpop.permute.xlu0 %1126
  %1128 = vset.pattern.permute.xlu0 1
  %1129 = vperm.xlu0 %1128, %v661
  %v1130 = vpop.permute.xlu0 %1129
  %1131 = vset.pattern.permute.xlu0 1
  %1132 = vperm.xlu0 %1131, %v662
  %v1133 = vpop.permute.xlu0 %1132
  %1134 = vset.pattern.permute.xlu0 1
  %1135 = vperm.xlu0 %1134, %v663
  %v1136 = vpop.permute.xlu0 %1135
  %1137 = vset.pattern.permute.xlu0 1
  %1138 = vperm.xlu0 %1137, %v664
  %v1139 = vpop.permute.xlu0 %1138
  %1140 = vset.pattern.permute.xlu0 1
  %1141 = vperm.xlu0 %1140, %v665
  %v1142 = vpop.permute.xlu0 %1141
  %1143 = vset.pattern.permute.xlu0 1
  %1144 = vperm.xlu0 %1143, %v666
  %v1145 = vpop.permute.xlu0 %1144
  %1146 = vset.pattern.permute.xlu0 1
  %1147 = vperm.xlu0 %1146, %v667
  %v1148 = vpop.permute.xlu0 %1147
  %1149 = vset.pattern.permute.xlu0 1
  %1150 = vperm.xlu0 %1149, %v668
  %v1151 = vpop.permute.xlu0 %1150
  %1152 = vset.pattern.permute.xlu0 1
  %1153 = vperm.xlu0 %1152, %v669
  %v1154 = vpop.permute.xlu0 %1153
  %1155 = vset.pattern.permute.xlu0 1
  %1156 = vperm.xlu0 %1155, %v670
  %v1157 = vpop.permute.xlu0 %1156
  %vm1158 = vcmp.eq.s32.totalorder %v651, %v1112
  %vm1159 = vcmp.eq.s32.totalorder %v652, %v1112
  %vm1160 = vcmp.eq.s32.totalorder %v653, %v1112
  %vm1161 = vcmp.eq.s32.totalorder %v654, %v1112
  %vm1162 = vcmp.eq.s32.totalorder %v651, %v1115
  %vm1163 = vcmp.eq.s32.totalorder %v652, %v1115
  %vm1164 = vcmp.eq.s32.totalorder %v653, %v1115
  %vm1165 = vcmp.eq.s32.totalorder %v654, %v1115
  %vm1166 = vcmp.eq.s32.totalorder %v651, %v1118
  %vm1167 = vcmp.eq.s32.totalorder %v652, %v1118
  %vm1168 = vcmp.eq.s32.totalorder %v653, %v1118
  %vm1169 = vcmp.eq.s32.totalorder %v654, %v1118
  %vm1170 = vcmp.eq.s32.totalorder %v651, %v1121
  %vm1171 = vcmp.eq.s32.totalorder %v652, %v1121
  %vm1172 = vcmp.eq.s32.totalorder %v653, %v1121
  %vm1173 = vcmp.eq.s32.totalorder %v654, %v1121
  %vm1174 = vcmp.eq.s32.totalorder %v651, %v1124
  %vm1175 = vcmp.eq.s32.totalorder %v652, %v1124
  %vm1176 = vcmp.eq.s32.totalorder %v653, %v1124
  %vm1177 = vcmp.eq.s32.totalorder %v654, %v1124
  %vm1178 = vcmp.eq.s32.totalorder %v651, %v1127
  %vm1179 = vcmp.eq.s32.totalorder %v652, %v1127
  %vm1180 = vcmp.eq.s32.totalorder %v653, %v1127
  %vm1181 = vcmp.eq.s32.totalorder %v654, %v1127
  %vm1182 = vcmp.eq.s32.totalorder %v651, %v1130
  %vm1183 = vcmp.eq.s32.totalorder %v652, %v1130
  %vm1184 = vcmp.eq.s32.totalorder %v653, %v1130
  %vm1185 = vcmp.eq.s32.totalorder %v654, %v1130
  %vm1186 = vcmp.eq.s32.totalorder %v651, %v1133
  %vm1187 = vcmp.eq.s32.totalorder %v652, %v1133
  %vm1188 = vcmp.eq.s32.totalorder %v653, %v1133
  %vm1189 = vcmp.eq.s32.totalorder %v654, %v1133
  %vm1190 = vcmp.eq.s32.totalorder %v651, %v1136
  %vm1191 = vcmp.eq.s32.totalorder %v652, %v1136
  %vm1192 = vcmp.eq.s32.totalorder %v653, %v1136
  %vm1193 = vcmp.eq.s32.totalorder %v654, %v1136
  %vm1194 = vcmp.eq.s32.totalorder %v651, %v1139
  %vm1195 = vcmp.eq.s32.totalorder %v652, %v1139
  %vm1196 = vcmp.eq.s32.totalorder %v653, %v1139
  %vm1197 = vcmp.eq.s32.totalorder %v654, %v1139
  %vm1198 = vcmp.eq.s32.totalorder %v651, %v1142
  %vm1199 = vcmp.eq.s32.totalorder %v652, %v1142
  %vm1200 = vcmp.eq.s32.totalorder %v653, %v1142
  %vm1201 = vcmp.eq.s32.totalorder %v654, %v1142
  %vm1202 = vcmp.eq.s32.totalorder %v651, %v1145
  %vm1203 = vcmp.eq.s32.totalorder %v652, %v1145
  %vm1204 = vcmp.eq.s32.totalorder %v653, %v1145
  %vm1205 = vcmp.eq.s32.totalorder %v654, %v1145
  %vm1206 = vcmp.eq.s32.totalorder %v651, %v1148
  %vm1207 = vcmp.eq.s32.totalorder %v652, %v1148
  %vm1208 = vcmp.eq.s32.totalorder %v653, %v1148
  %vm1209 = vcmp.eq.s32.totalorder %v654, %v1148
  %vm1210 = vcmp.eq.s32.totalorder %v651, %v1151
  %vm1211 = vcmp.eq.s32.totalorder %v652, %v1151
  %vm1212 = vcmp.eq.s32.totalorder %v653, %v1151
  %vm1213 = vcmp.eq.s32.totalorder %v654, %v1151
  %vm1214 = vcmp.eq.s32.totalorder %v651, %v1154
  %vm1215 = vcmp.eq.s32.totalorder %v652, %v1154
  %vm1216 = vcmp.eq.s32.totalorder %v653, %v1154
  %vm1217 = vcmp.eq.s32.totalorder %v654, %v1154
  %vm1218 = vcmp.eq.s32.totalorder %v651, %v1157
  %vm1219 = vcmp.eq.s32.totalorder %v652, %v1157
  %vm1220 = vcmp.eq.s32.totalorder %v653, %v1157
  %vm1221 = vcmp.eq.s32.totalorder %v654, %v1157
  %v1222 = vsel %vm1158, 1.0, 0.0
  %v1223 = vsel %vm1159, 1.0, 0.0
  %v1224 = vsel %vm1160, 1.0, 0.0
  %v1225 = vsel %vm1161, 1.0, 0.0
  %v1226 = vsel %vm1162, 1.0, 0.0
  %v1227 = vsel %vm1163, 1.0, 0.0
  %v1228 = vsel %vm1164, 1.0, 0.0
  %v1229 = vsel %vm1165, 1.0, 0.0
  %v1230 = vsel %vm1166, 1.0, 0.0
  %v1231 = vsel %vm1167, 1.0, 0.0
  %v1232 = vsel %vm1168, 1.0, 0.0
  %v1233 = vsel %vm1169, 1.0, 0.0
  %v1234 = vsel %vm1170, 1.0, 0.0
  %v1235 = vsel %vm1171, 1.0, 0.0
  %v1236 = vsel %vm1172, 1.0, 0.0
  %v1237 = vsel %vm1173, 1.0, 0.0
  %v1238 = vsel %vm1174, 1.0, 0.0
  %v1239 = vsel %vm1175, 1.0, 0.0
  %v1240 = vsel %vm1176, 1.0, 0.0
  %v1241 = vsel %vm1177, 1.0, 0.0
  %v1242 = vsel %vm1178, 1.0, 0.0
  %v1243 = vsel %vm1179, 1.0, 0.0
  %v1244 = vsel %vm1180, 1.0, 0.0
  %v1245 = vsel %vm1181, 1.0, 0.0
  %v1246 = vsel %vm1182, 1.0, 0.0
  %v1247 = vsel %vm1183, 1.0, 0.0
  %v1248 = vsel %vm1184, 1.0, 0.0
  %v1249 = vsel %vm1185, 1.0, 0.0
  %v1250 = vsel %vm1186, 1.0, 0.0
  %v1251 = vsel %vm1187, 1.0, 0.0
  %v1252 = vsel %vm1188, 1.0, 0.0
  %v1253 = vsel %vm1189, 1.0, 0.0
  %v1254 = vsel %vm1190, 1.0, 0.0
  %v1255 = vsel %vm1191, 1.0, 0.0
  %v1256 = vsel %vm1192, 1.0, 0.0
  %v1257 = vsel %vm1193, 1.0, 0.0
  %v1258 = vsel %vm1194, 1.0, 0.0
  %v1259 = vsel %vm1195, 1.0, 0.0
  %v1260 = vsel %vm1196, 1.0, 0.0
  %v1261 = vsel %vm1197, 1.0, 0.0
  %v1262 = vsel %vm1198, 1.0, 0.0
  %v1263 = vsel %vm1199, 1.0, 0.0
  %v1264 = vsel %vm1200, 1.0, 0.0
  %v1265 = vsel %vm1201, 1.0, 0.0
  %v1266 = vsel %vm1202, 1.0, 0.0
  %v1267 = vsel %vm1203, 1.0, 0.0
  %v1268 = vsel %vm1204, 1.0, 0.0
  %v1269 = vsel %vm1205, 1.0, 0.0
  %v1270 = vsel %vm1206, 1.0, 0.0
  %v1271 = vsel %vm1207, 1.0, 0.0
  %v1272 = vsel %vm1208, 1.0, 0.0
  %v1273 = vsel %vm1209, 1.0, 0.0
  %v1274 = vsel %vm1210, 1.0, 0.0
  %v1275 = vsel %vm1211, 1.0, 0.0
  %v1276 = vsel %vm1212, 1.0, 0.0
  %v1277 = vsel %vm1213, 1.0, 0.0
  %v1278 = vsel %vm1214, 1.0, 0.0
  %v1279 = vsel %vm1215, 1.0, 0.0
  %v1280 = vsel %vm1216, 1.0, 0.0
  %v1281 = vsel %vm1217, 1.0, 0.0
  %v1282 = vsel %vm1218, 1.0, 0.0
  %v1283 = vsel %vm1219, 1.0, 0.0
  %v1284 = vsel %vm1220, 1.0, 0.0
  %v1285 = vsel %vm1221, 1.0, 0.0
  %v1286 = vpack.c.bf16 %v1226, %v1222
  %v1287 = vpack.c.bf16 %v1227, %v1223
  %v1288 = vpack.c.bf16 %v1228, %v1224
  %v1289 = vpack.c.bf16 %v1229, %v1225
  %v1290 = vpack.c.bf16 %v1234, %v1230
  %v1291 = vpack.c.bf16 %v1235, %v1231
  %v1292 = vpack.c.bf16 %v1236, %v1232
  %v1293 = vpack.c.bf16 %v1237, %v1233
  %v1294 = vpack.c.bf16 %v1242, %v1238
  %v1295 = vpack.c.bf16 %v1243, %v1239
  %v1296 = vpack.c.bf16 %v1244, %v1240
  %v1297 = vpack.c.bf16 %v1245, %v1241
  %v1298 = vpack.c.bf16 %v1250, %v1246
  %v1299 = vpack.c.bf16 %v1251, %v1247
  %v1300 = vpack.c.bf16 %v1252, %v1248
  %v1301 = vpack.c.bf16 %v1253, %v1249
  %v1302 = vpack.c.bf16 %v1258, %v1254
  %v1303 = vpack.c.bf16 %v1259, %v1255
  %v1304 = vpack.c.bf16 %v1260, %v1256
  %v1305 = vpack.c.bf16 %v1261, %v1257
  %v1306 = vpack.c.bf16 %v1266, %v1262
  %v1307 = vpack.c.bf16 %v1267, %v1263
  %v1308 = vpack.c.bf16 %v1268, %v1264
  %v1309 = vpack.c.bf16 %v1269, %v1265
  %v1310 = vpack.c.bf16 %v1274, %v1270
  %v1311 = vpack.c.bf16 %v1275, %v1271
  %v1312 = vpack.c.bf16 %v1276, %v1272
  %v1313 = vpack.c.bf16 %v1277, %v1273
  %v1314 = vpack.c.bf16 %v1282, %v1278
  %v1315 = vpack.c.bf16 %v1283, %v1279
  %v1316 = vpack.c.bf16 %v1284, %v1280
  %v1317 = vpack.c.bf16 %v1285, %v1281
  %v1319 = vsel %vm879, %v1289, 0
  %v1322 = vsel %vm879, %v1293, 0
  %v1325 = vsel %vm879, %v1297, 0
  %v1328 = vsel %vm879, %v1301, 0
  %v1331 = vsel %vm879, %v1305, 0
  %v1334 = vsel %vm879, %v1309, 0
  %v1337 = vsel %vm879, %v1313, 0
  %v1340 = vsel %vm879, %v1317, 0
  %1342 = vmatprep.subr.bf16.mxu0 0
  %1343 = vmatpush1.bf16.msra.mxu0 %v632
  %1344 = vmatprep.subr.bf16.mxu0 0
  %1345 = vmatpush1.bf16.msra.mxu0 %v631
  %1346 = vmatprep.subr.bf16.mxu0 0
  %1347 = vmatpush1.bf16.msra.mxu0 %v630
  %1348 = vmatprep.subr.bf16.mxu0 0
  %1349 = vmatpush1.bf16.msra.mxu0 %v629
  %1350 = vmatprep.subr.bf16.mxu0 0
  %1351 = vmatpush1.bf16.msra.mxu0 %v628
  %1352 = vmatprep.subr.bf16.mxu0 0
  %1353 = vmatpush1.bf16.msra.mxu0 %v627
  %1354 = vmatprep.subr.bf16.mxu0 0
  %1355 = vmatpush1.bf16.msra.mxu0 %v626
  %1356 = vmatprep.subr.bf16.mxu0 0
  %1357 = vmatpush1.bf16.msra.mxu0 %v625
  %1358 = vmatprep.subr.bf16.mxu0 0
  %1359 = vmatpush2.bf16.msra.mxu0 %v640
  %1360 = vmatprep.subr.bf16.mxu0 0
  %1361 = vmatpush2.bf16.msra.mxu0 %v639
  %1362 = vmatprep.subr.bf16.mxu0 0
  %1363 = vmatpush2.bf16.msra.mxu0 %v638
  %1364 = vmatprep.subr.bf16.mxu0 0
  %1365 = vmatpush2.bf16.msra.mxu0 %v637
  %1366 = vmatprep.subr.bf16.mxu0 0
  %1367 = vmatpush2.bf16.msra.mxu0 %v636
  %1368 = vmatprep.subr.bf16.mxu0 0
  %1369 = vmatpush2.bf16.msra.mxu0 %v635
  %1370 = vmatprep.subr.bf16.mxu0 0
  %1371 = vmatpush2.bf16.msra.mxu0 %v634
  %1372 = vmatprep.subr.bf16.mxu0 0
  %1373 = vmatpush2.bf16.msra.mxu0 %v633
  %1374 = vmatprep.mubr.bf16.mxu0 %v1287
  %1375 = vmatmul.mubr.bf16.gmra.mxu0 %v1286
  %v1376 = vpop.f32.mrf.mxu0
  %v1377 = vadd.f32 0.0, %v1376
  %v1378 = vpop.f32.mrf.mxu0
  %v1379 = vpop.f32.mrf.mxu0
  %v1380 = vadd.f32 0.0, %v1379
  %v1381 = vpop.f32.mrf.mxu0
  %1382 = vmatprep.mubr.bf16.mxu0 %v1291
  %1383 = vmatmul.mubr.bf16.gmra.mxu0 %v1290
  %v1384 = vpop.f32.mrf.mxu0
  %v1385 = vadd.f32 0.0, %v1384
  %v1386 = vpop.f32.mrf.mxu0
  %v1387 = vpop.f32.mrf.mxu0
  %v1388 = vadd.f32 0.0, %v1387
  %v1389 = vpop.f32.mrf.mxu0
  %1390 = vmatprep.mubr.bf16.mxu0 %v1295
  %1391 = vmatmul.mubr.bf16.gmra.mxu0 %v1294
  %v1392 = vpop.f32.mrf.mxu0
  %v1393 = vadd.f32 0.0, %v1392
  %v1394 = vpop.f32.mrf.mxu0
  %v1395 = vpop.f32.mrf.mxu0
  %v1396 = vadd.f32 0.0, %v1395
  %v1397 = vpop.f32.mrf.mxu0
  %1398 = vmatprep.mubr.bf16.mxu0 %v1299
  %1399 = vmatmul.mubr.bf16.gmra.mxu0 %v1298
  %v1400 = vpop.f32.mrf.mxu0
  %v1401 = vadd.f32 0.0, %v1400
  %v1402 = vpop.f32.mrf.mxu0
  %v1403 = vpop.f32.mrf.mxu0
  %v1404 = vadd.f32 0.0, %v1403
  %v1405 = vpop.f32.mrf.mxu0
  %1406 = vmatprep.mubr.bf16.mxu0 %v1303
  %1407 = vmatmul.mubr.bf16.gmra.mxu0 %v1302
  %v1408 = vpop.f32.mrf.mxu0
  %v1409 = vadd.f32 0.0, %v1408
  %v1410 = vpop.f32.mrf.mxu0
  %v1411 = vpop.f32.mrf.mxu0
  %v1412 = vadd.f32 0.0, %v1411
  %v1413 = vpop.f32.mrf.mxu0
  %1414 = vmatprep.mubr.bf16.mxu0 %v1307
  %1415 = vmatmul.mubr.bf16.gmra.mxu0 %v1306
  %v1416 = vpop.f32.mrf.mxu0
  %v1417 = vadd.f32 0.0, %v1416
  %v1418 = vpop.f32.mrf.mxu0
  %v1419 = vpop.f32.mrf.mxu0
  %v1420 = vadd.f32 0.0, %v1419
  %v1421 = vpop.f32.mrf.mxu0
  %1422 = vmatprep.mubr.bf16.mxu0 %v1311
  %1423 = vmatmul.mubr.bf16.gmra.mxu0 %v1310
  %v1424 = vpop.f32.mrf.mxu0
  %v1425 = vadd.f32 0.0, %v1424
  %v1426 = vpop.f32.mrf.mxu0
  %v1427 = vpop.f32.mrf.mxu0
  %v1428 = vadd.f32 0.0, %v1427
  %v1429 = vpop.f32.mrf.mxu0
  %1430 = vmatprep.mubr.bf16.mxu0 %v1315
  %1431 = vmatmul.mubr.bf16.gmra.mxu0 %v1314
  %v1432 = vpop.f32.mrf.mxu0
  %v1433 = vadd.f32 0.0, %v1432
  %v1434 = vpop.f32.mrf.mxu0
  %v1435 = vpop.f32.mrf.mxu0
  %v1436 = vadd.f32 0.0, %v1435
  %v1437 = vpop.f32.mrf.mxu0
  %1438 = vdwg.mxu0
  %1439 = vmatprep.subr.bf16.mxu0 0
  %1440 = vmatpush1.bf16.msra.mxu0 %v648
  %1441 = vmatprep.subr.bf16.mxu0 0
  %1442 = vmatpush1.bf16.msra.mxu0 %v647
  %1443 = vmatprep.subr.bf16.mxu0 0
  %1444 = vmatpush1.bf16.msra.mxu0 %v646
  %1445 = vmatprep.subr.bf16.mxu0 0
  %1446 = vmatpush1.bf16.msra.mxu0 %v645
  %1447 = vmatprep.subr.bf16.mxu0 0
  %1448 = vmatpush1.bf16.msra.mxu0 %v644
  %1449 = vmatprep.subr.bf16.mxu0 0
  %1450 = vmatpush1.bf16.msra.mxu0 %v643
  %1451 = vmatprep.subr.bf16.mxu0 0
  %1452 = vmatpush1.bf16.msra.mxu0 %v642
  %1453 = vmatprep.subr.bf16.mxu0 0
  %1454 = vmatpush1.bf16.msra.mxu0 %v641
  %1455 = vmatprep.subr.bf16.mxu0 0
  %1456 = vmatpush2.bf16.msra.mxu0 0
  %1457 = vmatprep.subr.bf16.mxu0 0
  %1458 = vmatpush2.bf16.msra.mxu0 0
  %1459 = vmatprep.subr.bf16.mxu0 0
  %1460 = vmatpush2.bf16.msra.mxu0 0
  %1461 = vmatprep.subr.bf16.mxu0 0
  %1462 = vmatpush2.bf16.msra.mxu0 0
  %1463 = vmatprep.subr.bf16.mxu0 0
  %1464 = vmatpush2.bf16.msra.mxu0 0
  %1465 = vmatprep.subr.bf16.mxu0 0
  %1466 = vmatpush2.bf16.msra.mxu0 0
  %1467 = vmatprep.subr.bf16.mxu0 0
  %1468 = vmatpush2.bf16.msra.mxu0 0
  %1469 = vmatprep.subr.bf16.mxu0 0
  %1470 = vmatpush2.bf16.msra.mxu0 %v906
  %1471 = vmatprep.mubr.bf16.mxu0 %v1319
  %1472 = vmatmul.mubr.bf16.gmra.mxu0 %v1288
  %v1473 = vpop.f32.mrf.mxu0
  %v1474 = vadd.f32 %v1377, %v1473
  %v1475 = vpop.f32.mrf.mxu0
  %v1476 = vpop.f32.mrf.mxu0
  %v1477 = vadd.f32 %v1380, %v1476
  %v1478 = vpop.f32.mrf.mxu0
  %1479 = vmatprep.mubr.bf16.mxu0 %v1322
  %1480 = vmatmul.mubr.bf16.gmra.mxu0 %v1292
  %v1481 = vpop.f32.mrf.mxu0
  %v1482 = vadd.f32 %v1385, %v1481
  %v1483 = vpop.f32.mrf.mxu0
  %v1484 = vpop.f32.mrf.mxu0
  %v1485 = vadd.f32 %v1388, %v1484
  %v1486 = vpop.f32.mrf.mxu0
  %1487 = vmatprep.mubr.bf16.mxu0 %v1325
  %1488 = vmatmul.mubr.bf16.gmra.mxu0 %v1296
  %v1489 = vpop.f32.mrf.mxu0
  %v1490 = vadd.f32 %v1393, %v1489
  %v1491 = vpop.f32.mrf.mxu0
  %v1492 = vpop.f32.mrf.mxu0
  %v1493 = vadd.f32 %v1396, %v1492
  %v1494 = vpop.f32.mrf.mxu0
  %1495 = vmatprep.mubr.bf16.mxu0 %v1328
  %1496 = vmatmul.mubr.bf16.gmra.mxu0 %v1300
  %v1497 = vpop.f32.mrf.mxu0
  %v1498 = vadd.f32 %v1401, %v1497
  %v1499 = vpop.f32.mrf.mxu0
  %v1500 = vpop.f32.mrf.mxu0
  %v1501 = vadd.f32 %v1404, %v1500
  %v1502 = vpop.f32.mrf.mxu0
  %1503 = vmatprep.mubr.bf16.mxu0 %v1331
  %1504 = vmatmul.mubr.bf16.gmra.mxu0 %v1304
  %v1505 = vpop.f32.mrf.mxu0
  %v1506 = vadd.f32 %v1409, %v1505
  %v1507 = vpop.f32.mrf.mxu0
  %v1508 = vpop.f32.mrf.mxu0
  %v1509 = vadd.f32 %v1412, %v1508
  %v1510 = vpop.f32.mrf.mxu0
  %1511 = vmatprep.mubr.bf16.mxu0 %v1334
  %1512 = vmatmul.mubr.bf16.gmra.mxu0 %v1308
  %v1513 = vpop.f32.mrf.mxu0
  %v1514 = vadd.f32 %v1417, %v1513
  %v1515 = vpop.f32.mrf.mxu0
  %v1516 = vpop.f32.mrf.mxu0
  %v1517 = vadd.f32 %v1420, %v1516
  %v1518 = vpop.f32.mrf.mxu0
  %1519 = vmatprep.mubr.bf16.mxu0 %v1337
  %1520 = vmatmul.mubr.bf16.gmra.mxu0 %v1312
  %v1521 = vpop.f32.mrf.mxu0
  %v1522 = vadd.f32 %v1425, %v1521
  %v1523 = vpop.f32.mrf.mxu0
  %v1524 = vpop.f32.mrf.mxu0
  %v1525 = vadd.f32 %v1428, %v1524
  %v1526 = vpop.f32.mrf.mxu0
  %1527 = vmatprep.mubr.bf16.mxu0 %v1340
  %1528 = vmatmul.mubr.bf16.gmra.mxu0 %v1316
  %v1529 = vpop.f32.mrf.mxu0
  %v1530 = vadd.f32 %v1433, %v1529
  %v1531 = vpop.f32.mrf.mxu0
  %v1532 = vpop.f32.mrf.mxu0
  %v1533 = vadd.f32 %v1436, %v1532
  %v1534 = vpop.f32.mrf.mxu0
  %1535 = vdwg.mxu0
  %v1536 = vpack.c.bf16 %v1477, %v1474
  %v1537 = vpack.c.bf16 %v1485, %v1482
  %v1538 = vpack.c.bf16 %v1493, %v1490
  %v1539 = vpack.c.bf16 %v1501, %v1498
  %v1540 = vpack.c.bf16 %v1509, %v1506
  %v1541 = vpack.c.bf16 %v1517, %v1514
  %v1542 = vpack.c.bf16 %v1525, %v1522
  %v1543 = vpack.c.bf16 %v1533, %v1530
  %1544 = vset.pattern.permute.xlu0 2
  %1545 = vperm.xlu0 %1544, %v655
  %v1546 = vpop.permute.xlu0 %1545
  %1547 = vset.pattern.permute.xlu0 2
  %1548 = vperm.xlu0 %1547, %v656
  %v1549 = vpop.permute.xlu0 %1548
  %1550 = vset.pattern.permute.xlu0 2
  %1551 = vperm.xlu0 %1550, %v657
  %v1552 = vpop.permute.xlu0 %1551
  %1553 = vset.pattern.permute.xlu0 2
  %1554 = vperm.xlu0 %1553, %v658
  %v1555 = vpop.permute.xlu0 %1554
  %1556 = vset.pattern.permute.xlu0 2
  %1557 = vperm.xlu0 %1556, %v659
  %v1558 = vpop.permute.xlu0 %1557
  %1559 = vset.pattern.permute.xlu0 2
  %1560 = vperm.xlu0 %1559, %v660
  %v1561 = vpop.permute.xlu0 %1560
  %1562 = vset.pattern.permute.xlu0 2
  %1563 = vperm.xlu0 %1562, %v661
  %v1564 = vpop.permute.xlu0 %1563
  %1565 = vset.pattern.permute.xlu0 2
  %1566 = vperm.xlu0 %1565, %v662
  %v1567 = vpop.permute.xlu0 %1566
  %1568 = vset.pattern.permute.xlu0 2
  %1569 = vperm.xlu0 %1568, %v663
  %v1570 = vpop.permute.xlu0 %1569
  %1571 = vset.pattern.permute.xlu0 2
  %1572 = vperm.xlu0 %1571, %v664
  %v1573 = vpop.permute.xlu0 %1572
  %1574 = vset.pattern.permute.xlu0 2
  %1575 = vperm.xlu0 %1574, %v665
  %v1576 = vpop.permute.xlu0 %1575
  %1577 = vset.pattern.permute.xlu0 2
  %1578 = vperm.xlu0 %1577, %v666
  %v1579 = vpop.permute.xlu0 %1578
  %1580 = vset.pattern.permute.xlu0 2
  %1581 = vperm.xlu0 %1580, %v667
  %v1582 = vpop.permute.xlu0 %1581
  %1583 = vset.pattern.permute.xlu0 2
  %1584 = vperm.xlu0 %1583, %v668
  %v1585 = vpop.permute.xlu0 %1584
  %1586 = vset.pattern.permute.xlu0 2
  %1587 = vperm.xlu0 %1586, %v669
  %v1588 = vpop.permute.xlu0 %1587
  %1589 = vset.pattern.permute.xlu0 2
  %1590 = vperm.xlu0 %1589, %v670
  %v1591 = vpop.permute.xlu0 %1590
  %vm1592 = vcmp.eq.s32.totalorder %v651, %v1546
  %vm1593 = vcmp.eq.s32.totalorder %v652, %v1546
  %vm1594 = vcmp.eq.s32.totalorder %v653, %v1546
  %vm1595 = vcmp.eq.s32.totalorder %v654, %v1546
  %vm1596 = vcmp.eq.s32.totalorder %v651, %v1549
  %vm1597 = vcmp.eq.s32.totalorder %v652, %v1549
  %vm1598 = vcmp.eq.s32.totalorder %v653, %v1549
  %vm1599 = vcmp.eq.s32.totalorder %v654, %v1549
  %vm1600 = vcmp.eq.s32.totalorder %v651, %v1552
  %vm1601 = vcmp.eq.s32.totalorder %v652, %v1552
  %vm1602 = vcmp.eq.s32.totalorder %v653, %v1552
  %vm1603 = vcmp.eq.s32.totalorder %v654, %v1552
  %vm1604 = vcmp.eq.s32.totalorder %v651, %v1555
  %vm1605 = vcmp.eq.s32.totalorder %v652, %v1555
  %vm1606 = vcmp.eq.s32.totalorder %v653, %v1555
  %vm1607 = vcmp.eq.s32.totalorder %v654, %v1555
  %vm1608 = vcmp.eq.s32.totalorder %v651, %v1558
  %vm1609 = vcmp.eq.s32.totalorder %v652, %v1558
  %vm1610 = vcmp.eq.s32.totalorder %v653, %v1558
  %vm1611 = vcmp.eq.s32.totalorder %v654, %v1558
  %vm1612 = vcmp.eq.s32.totalorder %v651, %v1561
  %vm1613 = vcmp.eq.s32.totalorder %v652, %v1561
  %vm1614 = vcmp.eq.s32.totalorder %v653, %v1561
  %vm1615 = vcmp.eq.s32.totalorder %v654, %v1561
  %vm1616 = vcmp.eq.s32.totalorder %v651, %v1564
  %vm1617 = vcmp.eq.s32.totalorder %v652, %v1564
  %vm1618 = vcmp.eq.s32.totalorder %v653, %v1564
  %vm1619 = vcmp.eq.s32.totalorder %v654, %v1564
  %vm1620 = vcmp.eq.s32.totalorder %v651, %v1567
  %vm1621 = vcmp.eq.s32.totalorder %v652, %v1567
  %vm1622 = vcmp.eq.s32.totalorder %v653, %v1567
  %vm1623 = vcmp.eq.s32.totalorder %v654, %v1567
  %vm1624 = vcmp.eq.s32.totalorder %v651, %v1570
  %vm1625 = vcmp.eq.s32.totalorder %v652, %v1570
  %vm1626 = vcmp.eq.s32.totalorder %v653, %v1570
  %vm1627 = vcmp.eq.s32.totalorder %v654, %v1570
  %vm1628 = vcmp.eq.s32.totalorder %v651, %v1573
  %vm1629 = vcmp.eq.s32.totalorder %v652, %v1573
  %vm1630 = vcmp.eq.s32.totalorder %v653, %v1573
  %vm1631 = vcmp.eq.s32.totalorder %v654, %v1573
  %vm1632 = vcmp.eq.s32.totalorder %v651, %v1576
  %vm1633 = vcmp.eq.s32.totalorder %v652, %v1576
  %vm1634 = vcmp.eq.s32.totalorder %v653, %v1576
  %vm1635 = vcmp.eq.s32.totalorder %v654, %v1576
  %vm1636 = vcmp.eq.s32.totalorder %v651, %v1579
  %vm1637 = vcmp.eq.s32.totalorder %v652, %v1579
  %vm1638 = vcmp.eq.s32.totalorder %v653, %v1579
  %vm1639 = vcmp.eq.s32.totalorder %v654, %v1579
  %vm1640 = vcmp.eq.s32.totalorder %v651, %v1582
  %vm1641 = vcmp.eq.s32.totalorder %v652, %v1582
  %vm1642 = vcmp.eq.s32.totalorder %v653, %v1582
  %vm1643 = vcmp.eq.s32.totalorder %v654, %v1582
  %vm1644 = vcmp.eq.s32.totalorder %v651, %v1585
  %vm1645 = vcmp.eq.s32.totalorder %v652, %v1585
  %vm1646 = vcmp.eq.s32.totalorder %v653, %v1585
  %vm1647 = vcmp.eq.s32.totalorder %v654, %v1585
  %vm1648 = vcmp.eq.s32.totalorder %v651, %v1588
  %vm1649 = vcmp.eq.s32.totalorder %v652, %v1588
  %vm1650 = vcmp.eq.s32.totalorder %v653, %v1588
  %vm1651 = vcmp.eq.s32.totalorder %v654, %v1588
  %vm1652 = vcmp.eq.s32.totalorder %v651, %v1591
  %vm1653 = vcmp.eq.s32.totalorder %v652, %v1591
  %vm1654 = vcmp.eq.s32.totalorder %v653, %v1591
  %vm1655 = vcmp.eq.s32.totalorder %v654, %v1591
  %v1656 = vsel %vm1592, 1.0, 0.0
  %v1657 = vsel %vm1593, 1.0, 0.0
  %v1658 = vsel %vm1594, 1.0, 0.0
  %v1659 = vsel %vm1595, 1.0, 0.0
  %v1660 = vsel %vm1596, 1.0, 0.0
  %v1661 = vsel %vm1597, 1.0, 0.0
  %v1662 = vsel %vm1598, 1.0, 0.0
  %v1663 = vsel %vm1599, 1.0, 0.0
  %v1664 = vsel %vm1600, 1.0, 0.0
  %v1665 = vsel %vm1601, 1.0, 0.0
  %v1666 = vsel %vm1602, 1.0, 0.0
  %v1667 = vsel %vm1603, 1.0, 0.0
  %v1668 = vsel %vm1604, 1.0, 0.0
  %v1669 = vsel %vm1605, 1.0, 0.0
  %v1670 = vsel %vm1606, 1.0, 0.0
  %v1671 = vsel %vm1607, 1.0, 0.0
  %v1672 = vsel %vm1608, 1.0, 0.0
  %v1673 = vsel %vm1609, 1.0, 0.0
  %v1674 = vsel %vm1610, 1.0, 0.0
  %v1675 = vsel %vm1611, 1.0, 0.0
  %v1676 = vsel %vm1612, 1.0, 0.0
  %v1677 = vsel %vm1613, 1.0, 0.0
  %v1678 = vsel %vm1614, 1.0, 0.0
  %v1679 = vsel %vm1615, 1.0, 0.0
  %v1680 = vsel %vm1616, 1.0, 0.0
  %v1681 = vsel %vm1617, 1.0, 0.0
  %v1682 = vsel %vm1618, 1.0, 0.0
  %v1683 = vsel %vm1619, 1.0, 0.0
  %v1684 = vsel %vm1620, 1.0, 0.0
  %v1685 = vsel %vm1621, 1.0, 0.0
  %v1686 = vsel %vm1622, 1.0, 0.0
  %v1687 = vsel %vm1623, 1.0, 0.0
  %v1688 = vsel %vm1624, 1.0, 0.0
  %v1689 = vsel %vm1625, 1.0, 0.0
  %v1690 = vsel %vm1626, 1.0, 0.0
  %v1691 = vsel %vm1627, 1.0, 0.0
  %v1692 = vsel %vm1628, 1.0, 0.0
  %v1693 = vsel %vm1629, 1.0, 0.0
  %v1694 = vsel %vm1630, 1.0, 0.0
  %v1695 = vsel %vm1631, 1.0, 0.0
  %v1696 = vsel %vm1632, 1.0, 0.0
  %v1697 = vsel %vm1633, 1.0, 0.0
  %v1698 = vsel %vm1634, 1.0, 0.0
  %v1699 = vsel %vm1635, 1.0, 0.0
  %v1700 = vsel %vm1636, 1.0, 0.0
  %v1701 = vsel %vm1637, 1.0, 0.0
  %v1702 = vsel %vm1638, 1.0, 0.0
  %v1703 = vsel %vm1639, 1.0, 0.0
  %v1704 = vsel %vm1640, 1.0, 0.0
  %v1705 = vsel %vm1641, 1.0, 0.0
  %v1706 = vsel %vm1642, 1.0, 0.0
  %v1707 = vsel %vm1643, 1.0, 0.0
  %v1708 = vsel %vm1644, 1.0, 0.0
  %v1709 = vsel %vm1645, 1.0, 0.0
  %v1710 = vsel %vm1646, 1.0, 0.0
  %v1711 = vsel %vm1647, 1.0, 0.0
  %v1712 = vsel %vm1648, 1.0, 0.0
  %v1713 = vsel %vm1649, 1.0, 0.0
  %v1714 = vsel %vm1650, 1.0, 0.0
  %v1715 = vsel %vm1651, 1.0, 0.0
  %v1716 = vsel %vm1652, 1.0, 0.0
  %v1717 = vsel %vm1653, 1.0, 0.0
  %v1718 = vsel %vm1654, 1.0, 0.0
  %v1719 = vsel %vm1655, 1.0, 0.0
  %v1720 = vpack.c.bf16 %v1660, %v1656
  %v1721 = vpack.c.bf16 %v1661, %v1657
  %v1722 = vpack.c.bf16 %v1662, %v1658
  %v1723 = vpack.c.bf16 %v1663, %v1659
  %v1724 = vpack.c.bf16 %v1668, %v1664
  %v1725 = vpack.c.bf16 %v1669, %v1665
  %v1726 = vpack.c.bf16 %v1670, %v1666
  %v1727 = vpack.c.bf16 %v1671, %v1667
  %v1728 = vpack.c.bf16 %v1676, %v1672
  %v1729 = vpack.c.bf16 %v1677, %v1673
  %v1730 = vpack.c.bf16 %v1678, %v1674
  %v1731 = vpack.c.bf16 %v1679, %v1675
  %v1732 = vpack.c.bf16 %v1684, %v1680
  %v1733 = vpack.c.bf16 %v1685, %v1681
  %v1734 = vpack.c.bf16 %v1686, %v1682
  %v1735 = vpack.c.bf16 %v1687, %v1683
  %v1736 = vpack.c.bf16 %v1692, %v1688
  %v1737 = vpack.c.bf16 %v1693, %v1689
  %v1738 = vpack.c.bf16 %v1694, %v1690
  %v1739 = vpack.c.bf16 %v1695, %v1691
  %v1740 = vpack.c.bf16 %v1700, %v1696
  %v1741 = vpack.c.bf16 %v1701, %v1697
  %v1742 = vpack.c.bf16 %v1702, %v1698
  %v1743 = vpack.c.bf16 %v1703, %v1699
  %v1744 = vpack.c.bf16 %v1708, %v1704
  %v1745 = vpack.c.bf16 %v1709, %v1705
  %v1746 = vpack.c.bf16 %v1710, %v1706
  %v1747 = vpack.c.bf16 %v1711, %v1707
  %v1748 = vpack.c.bf16 %v1716, %v1712
  %v1749 = vpack.c.bf16 %v1717, %v1713
  %v1750 = vpack.c.bf16 %v1718, %v1714
  %v1751 = vpack.c.bf16 %v1719, %v1715
  %v1753 = vsel %vm879, %v1723, 0
  %v1756 = vsel %vm879, %v1727, 0
  %v1759 = vsel %vm879, %v1731, 0
  %v1762 = vsel %vm879, %v1735, 0
  %v1765 = vsel %vm879, %v1739, 0
  %v1768 = vsel %vm879, %v1743, 0
  %v1771 = vsel %vm879, %v1747, 0
  %v1774 = vsel %vm879, %v1751, 0
  %1776 = vmatprep.subr.bf16.mxu0 0
  %1777 = vmatpush1.bf16.msra.mxu0 %v632
  %1778 = vmatprep.subr.bf16.mxu0 0
  %1779 = vmatpush1.bf16.msra.mxu0 %v631
  %1780 = vmatprep.subr.bf16.mxu0 0
  %1781 = vmatpush1.bf16.msra.mxu0 %v630
  %1782 = vmatprep.subr.bf16.mxu0 0
  %1783 = vmatpush1.bf16.msra.mxu0 %v629
  %1784 = vmatprep.subr.bf16.mxu0 0
  %1785 = vmatpush1.bf16.msra.mxu0 %v628
  %1786 = vmatprep.subr.bf16.mxu0 0
  %1787 = vmatpush1.bf16.msra.mxu0 %v627
  %1788 = vmatprep.subr.bf16.mxu0 0
  %1789 = vmatpush1.bf16.msra.mxu0 %v626
  %1790 = vmatprep.subr.bf16.mxu0 0
  %1791 = vmatpush1.bf16.msra.mxu0 %v625
  %1792 = vmatprep.subr.bf16.mxu0 0
  %1793 = vmatpush2.bf16.msra.mxu0 %v640
  %1794 = vmatprep.subr.bf16.mxu0 0
  %1795 = vmatpush2.bf16.msra.mxu0 %v639
  %1796 = vmatprep.subr.bf16.mxu0 0
  %1797 = vmatpush2.bf16.msra.mxu0 %v638
  %1798 = vmatprep.subr.bf16.mxu0 0
  %1799 = vmatpush2.bf16.msra.mxu0 %v637
  %1800 = vmatprep.subr.bf16.mxu0 0
  %1801 = vmatpush2.bf16.msra.mxu0 %v636
  %1802 = vmatprep.subr.bf16.mxu0 0
  %1803 = vmatpush2.bf16.msra.mxu0 %v635
  %1804 = vmatprep.subr.bf16.mxu0 0
  %1805 = vmatpush2.bf16.msra.mxu0 %v634
  %1806 = vmatprep.subr.bf16.mxu0 0
  %1807 = vmatpush2.bf16.msra.mxu0 %v633
  %1808 = vmatprep.mubr.bf16.mxu0 %v1721
  %1809 = vmatmul.mubr.bf16.gmra.mxu0 %v1720
  %v1810 = vpop.f32.mrf.mxu0
  %v1811 = vadd.f32 0.0, %v1810
  %v1812 = vpop.f32.mrf.mxu0
  %v1813 = vpop.f32.mrf.mxu0
  %v1814 = vadd.f32 0.0, %v1813
  %v1815 = vpop.f32.mrf.mxu0
  %1816 = vmatprep.mubr.bf16.mxu0 %v1725
  %1817 = vmatmul.mubr.bf16.gmra.mxu0 %v1724
  %v1818 = vpop.f32.mrf.mxu0
  %v1819 = vadd.f32 0.0, %v1818
  %v1820 = vpop.f32.mrf.mxu0
  %v1821 = vpop.f32.mrf.mxu0
  %v1822 = vadd.f32 0.0, %v1821
  %v1823 = vpop.f32.mrf.mxu0
  %1824 = vmatprep.mubr.bf16.mxu0 %v1729
  %1825 = vmatmul.mubr.bf16.gmra.mxu0 %v1728
  %v1826 = vpop.f32.mrf.mxu0
  %v1827 = vadd.f32 0.0, %v1826
  %v1828 = vpop.f32.mrf.mxu0
  %v1829 = vpop.f32.mrf.mxu0
  %v1830 = vadd.f32 0.0, %v1829
  %v1831 = vpop.f32.mrf.mxu0
  %1832 = vmatprep.mubr.bf16.mxu0 %v1733
  %1833 = vmatmul.mubr.bf16.gmra.mxu0 %v1732
  %v1834 = vpop.f32.mrf.mxu0
  %v1835 = vadd.f32 0.0, %v1834
  %v1836 = vpop.f32.mrf.mxu0
  %v1837 = vpop.f32.mrf.mxu0
  %v1838 = vadd.f32 0.0, %v1837
  %v1839 = vpop.f32.mrf.mxu0
  %1840 = vmatprep.mubr.bf16.mxu0 %v1737
  %1841 = vmatmul.mubr.bf16.gmra.mxu0 %v1736
  %v1842 = vpop.f32.mrf.mxu0
  %v1843 = vadd.f32 0.0, %v1842
  %v1844 = vpop.f32.mrf.mxu0
  %v1845 = vpop.f32.mrf.mxu0
  %v1846 = vadd.f32 0.0, %v1845
  %v1847 = vpop.f32.mrf.mxu0
  %1848 = vmatprep.mubr.bf16.mxu0 %v1741
  %1849 = vmatmul.mubr.bf16.gmra.mxu0 %v1740
  %v1850 = vpop.f32.mrf.mxu0
  %v1851 = vadd.f32 0.0, %v1850
  %v1852 = vpop.f32.mrf.mxu0
  %v1853 = vpop.f32.mrf.mxu0
  %v1854 = vadd.f32 0.0, %v1853
  %v1855 = vpop.f32.mrf.mxu0
  %1856 = vmatprep.mubr.bf16.mxu0 %v1745
  %1857 = vmatmul.mubr.bf16.gmra.mxu0 %v1744
  %v1858 = vpop.f32.mrf.mxu0
  %v1859 = vadd.f32 0.0, %v1858
  %v1860 = vpop.f32.mrf.mxu0
  %v1861 = vpop.f32.mrf.mxu0
  %v1862 = vadd.f32 0.0, %v1861
  %v1863 = vpop.f32.mrf.mxu0
  %1864 = vmatprep.mubr.bf16.mxu0 %v1749
  %1865 = vmatmul.mubr.bf16.gmra.mxu0 %v1748
  %v1866 = vpop.f32.mrf.mxu0
  %v1867 = vadd.f32 0.0, %v1866
  %v1868 = vpop.f32.mrf.mxu0
  %v1869 = vpop.f32.mrf.mxu0
  %v1870 = vadd.f32 0.0, %v1869
  %v1871 = vpop.f32.mrf.mxu0
  %1872 = vdwg.mxu0
  %1873 = vmatprep.subr.bf16.mxu0 0
  %1874 = vmatpush1.bf16.msra.mxu0 %v648
  %1875 = vmatprep.subr.bf16.mxu0 0
  %1876 = vmatpush1.bf16.msra.mxu0 %v647
  %1877 = vmatprep.subr.bf16.mxu0 0
  %1878 = vmatpush1.bf16.msra.mxu0 %v646
  %1879 = vmatprep.subr.bf16.mxu0 0
  %1880 = vmatpush1.bf16.msra.mxu0 %v645
  %1881 = vmatprep.subr.bf16.mxu0 0
  %1882 = vmatpush1.bf16.msra.mxu0 %v644
  %1883 = vmatprep.subr.bf16.mxu0 0
  %1884 = vmatpush1.bf16.msra.mxu0 %v643
  %1885 = vmatprep.subr.bf16.mxu0 0
  %1886 = vmatpush1.bf16.msra.mxu0 %v642
  %1887 = vmatprep.subr.bf16.mxu0 0
  %1888 = vmatpush1.bf16.msra.mxu0 %v641
  %1889 = vmatprep.subr.bf16.mxu0 0
  %1890 = vmatpush2.bf16.msra.mxu0 0
  %1891 = vmatprep.subr.bf16.mxu0 0
  %1892 = vmatpush2.bf16.msra.mxu0 0
  %1893 = vmatprep.subr.bf16.mxu0 0
  %1894 = vmatpush2.bf16.msra.mxu0 0
  %1895 = vmatprep.subr.bf16.mxu0 0
  %1896 = vmatpush2.bf16.msra.mxu0 0
  %1897 = vmatprep.subr.bf16.mxu0 0
  %1898 = vmatpush2.bf16.msra.mxu0 0
  %1899 = vmatprep.subr.bf16.mxu0 0
  %1900 = vmatpush2.bf16.msra.mxu0 0
  %1901 = vmatprep.subr.bf16.mxu0 0
  %1902 = vmatpush2.bf16.msra.mxu0 0
  %1903 = vmatprep.subr.bf16.mxu0 0
  %1904 = vmatpush2.bf16.msra.mxu0 %v906
  %1905 = vmatprep.mubr.bf16.mxu0 %v1753
  %1906 = vmatmul.mubr.bf16.gmra.mxu0 %v1722
  %v1907 = vpop.f32.mrf.mxu0
  %v1908 = vadd.f32 %v1811, %v1907
  %v1909 = vpop.f32.mrf.mxu0
  %v1910 = vpop.f32.mrf.mxu0
  %v1911 = vadd.f32 %v1814, %v1910
  %v1912 = vpop.f32.mrf.mxu0
  %1913 = vmatprep.mubr.bf16.mxu0 %v1756
  %1914 = vmatmul.mubr.bf16.gmra.mxu0 %v1726
  %v1915 = vpop.f32.mrf.mxu0
  %v1916 = vadd.f32 %v1819, %v1915
  %v1917 = vpop.f32.mrf.mxu0
  %v1918 = vpop.f32.mrf.mxu0
  %v1919 = vadd.f32 %v1822, %v1918
  %v1920 = vpop.f32.mrf.mxu0
  %1921 = vmatprep.mubr.bf16.mxu0 %v1759
  %1922 = vmatmul.mubr.bf16.gmra.mxu0 %v1730
  %v1923 = vpop.f32.mrf.mxu0
  %v1924 = vadd.f32 %v1827, %v1923
  %v1925 = vpop.f32.mrf.mxu0
  %v1926 = vpop.f32.mrf.mxu0
  %v1927 = vadd.f32 %v1830, %v1926
  %v1928 = vpop.f32.mrf.mxu0
  %1929 = vmatprep.mubr.bf16.mxu0 %v1762
  %1930 = vmatmul.mubr.bf16.gmra.mxu0 %v1734
  %v1931 = vpop.f32.mrf.mxu0
  %v1932 = vadd.f32 %v1835, %v1931
  %v1933 = vpop.f32.mrf.mxu0
  %v1934 = vpop.f32.mrf.mxu0
  %v1935 = vadd.f32 %v1838, %v1934
  %v1936 = vpop.f32.mrf.mxu0
  %1937 = vmatprep.mubr.bf16.mxu0 %v1765
  %1938 = vmatmul.mubr.bf16.gmra.mxu0 %v1738
  %v1939 = vpop.f32.mrf.mxu0
  %v1940 = vadd.f32 %v1843, %v1939
  %v1941 = vpop.f32.mrf.mxu0
  %v1942 = vpop.f32.mrf.mxu0
  %v1943 = vadd.f32 %v1846, %v1942
  %v1944 = vpop.f32.mrf.mxu0
  %1945 = vmatprep.mubr.bf16.mxu0 %v1768
  %1946 = vmatmul.mubr.bf16.gmra.mxu0 %v1742
  %v1947 = vpop.f32.mrf.mxu0
  %v1948 = vadd.f32 %v1851, %v1947
  %v1949 = vpop.f32.mrf.mxu0
  %v1950 = vpop.f32.mrf.mxu0
  %v1951 = vadd.f32 %v1854, %v1950
  %v1952 = vpop.f32.mrf.mxu0
  %1953 = vmatprep.mubr.bf16.mxu0 %v1771
  %1954 = vmatmul.mubr.bf16.gmra.mxu0 %v1746
  %v1955 = vpop.f32.mrf.mxu0
  %v1956 = vadd.f32 %v1859, %v1955
  %v1957 = vpop.f32.mrf.mxu0
  %v1958 = vpop.f32.mrf.mxu0
  %v1959 = vadd.f32 %v1862, %v1958
  %v1960 = vpop.f32.mrf.mxu0
  %1961 = vmatprep.mubr.bf16.mxu0 %v1774
  %1962 = vmatmul.mubr.bf16.gmra.mxu0 %v1750
  %v1963 = vpop.f32.mrf.mxu0
  %v1964 = vadd.f32 %v1867, %v1963
  %v1965 = vpop.f32.mrf.mxu0
  %v1966 = vpop.f32.mrf.mxu0
  %v1967 = vadd.f32 %v1870, %v1966
  %v1968 = vpop.f32.mrf.mxu0
  %1969 = vdwg.mxu0
  %v1970 = vpack.c.bf16 %v1911, %v1908
  %v1971 = vpack.c.bf16 %v1919, %v1916
  %v1972 = vpack.c.bf16 %v1927, %v1924
  %v1973 = vpack.c.bf16 %v1935, %v1932
  %v1974 = vpack.c.bf16 %v1943, %v1940
  %v1975 = vpack.c.bf16 %v1951, %v1948
  %v1976 = vpack.c.bf16 %v1959, %v1956
  %v1977 = vpack.c.bf16 %v1967, %v1964
  %1978 = vset.pattern.permute.xlu0 3
  %1979 = vperm.xlu0 %1978, %v655
  %v1980 = vpop.permute.xlu0 %1979
  %1981 = vset.pattern.permute.xlu0 3
  %1982 = vperm.xlu0 %1981, %v656
  %v1983 = vpop.permute.xlu0 %1982
  %1984 = vset.pattern.permute.xlu0 3
  %1985 = vperm.xlu0 %1984, %v657
  %v1986 = vpop.permute.xlu0 %1985
  %1987 = vset.pattern.permute.xlu0 3
  %1988 = vperm.xlu0 %1987, %v658
  %v1989 = vpop.permute.xlu0 %1988
  %1990 = vset.pattern.permute.xlu0 3
  %1991 = vperm.xlu0 %1990, %v659
  %v1992 = vpop.permute.xlu0 %1991
  %1993 = vset.pattern.permute.xlu0 3
  %1994 = vperm.xlu0 %1993, %v660
  %v1995 = vpop.permute.xlu0 %1994
  %1996 = vset.pattern.permute.xlu0 3
  %1997 = vperm.xlu0 %1996, %v661
  %v1998 = vpop.permute.xlu0 %1997
  %1999 = vset.pattern.permute.xlu0 3
  %2000 = vperm.xlu0 %1999, %v662
  %v2001 = vpop.permute.xlu0 %2000
  %2002 = vset.pattern.permute.xlu0 3
  %2003 = vperm.xlu0 %2002, %v663
  %v2004 = vpop.permute.xlu0 %2003
  %2005 = vset.pattern.permute.xlu0 3
  %2006 = vperm.xlu0 %2005, %v664
  %v2007 = vpop.permute.xlu0 %2006
  %2008 = vset.pattern.permute.xlu0 3
  %2009 = vperm.xlu0 %2008, %v665
  %v2010 = vpop.permute.xlu0 %2009
  %2011 = vset.pattern.permute.xlu0 3
  %2012 = vperm.xlu0 %2011, %v666
  %v2013 = vpop.permute.xlu0 %2012
  %2014 = vset.pattern.permute.xlu0 3
  %2015 = vperm.xlu0 %2014, %v667
  %v2016 = vpop.permute.xlu0 %2015
  %2017 = vset.pattern.permute.xlu0 3
  %2018 = vperm.xlu0 %2017, %v668
  %v2019 = vpop.permute.xlu0 %2018
  %2020 = vset.pattern.permute.xlu0 3
  %2021 = vperm.xlu0 %2020, %v669
  %v2022 = vpop.permute.xlu0 %2021
  %2023 = vset.pattern.permute.xlu0 3
  %2024 = vperm.xlu0 %2023, %v670
  %v2025 = vpop.permute.xlu0 %2024
  %vm2026 = vcmp.eq.s32.totalorder %v651, %v1980
  %vm2027 = vcmp.eq.s32.totalorder %v652, %v1980
  %vm2028 = vcmp.eq.s32.totalorder %v653, %v1980
  %vm2029 = vcmp.eq.s32.totalorder %v654, %v1980
  %vm2030 = vcmp.eq.s32.totalorder %v651, %v1983
  %vm2031 = vcmp.eq.s32.totalorder %v652, %v1983
  %vm2032 = vcmp.eq.s32.totalorder %v653, %v1983
  %vm2033 = vcmp.eq.s32.totalorder %v654, %v1983
  %vm2034 = vcmp.eq.s32.totalorder %v651, %v1986
  %vm2035 = vcmp.eq.s32.totalorder %v652, %v1986
  %vm2036 = vcmp.eq.s32.totalorder %v653, %v1986
  %vm2037 = vcmp.eq.s32.totalorder %v654, %v1986
  %vm2038 = vcmp.eq.s32.totalorder %v651, %v1989
  %vm2039 = vcmp.eq.s32.totalorder %v652, %v1989
  %vm2040 = vcmp.eq.s32.totalorder %v653, %v1989
  %vm2041 = vcmp.eq.s32.totalorder %v654, %v1989
  %vm2042 = vcmp.eq.s32.totalorder %v651, %v1992
  %vm2043 = vcmp.eq.s32.totalorder %v652, %v1992
  %vm2044 = vcmp.eq.s32.totalorder %v653, %v1992
  %vm2045 = vcmp.eq.s32.totalorder %v654, %v1992
  %vm2046 = vcmp.eq.s32.totalorder %v651, %v1995
  %vm2047 = vcmp.eq.s32.totalorder %v652, %v1995
  %vm2048 = vcmp.eq.s32.totalorder %v653, %v1995
  %vm2049 = vcmp.eq.s32.totalorder %v654, %v1995
  %vm2050 = vcmp.eq.s32.totalorder %v651, %v1998
  %vm2051 = vcmp.eq.s32.totalorder %v652, %v1998
  %vm2052 = vcmp.eq.s32.totalorder %v653, %v1998
  %vm2053 = vcmp.eq.s32.totalorder %v654, %v1998
  %vm2054 = vcmp.eq.s32.totalorder %v651, %v2001
  %vm2055 = vcmp.eq.s32.totalorder %v652, %v2001
  %vm2056 = vcmp.eq.s32.totalorder %v653, %v2001
  %vm2057 = vcmp.eq.s32.totalorder %v654, %v2001
  %vm2058 = vcmp.eq.s32.totalorder %v651, %v2004
  %vm2059 = vcmp.eq.s32.totalorder %v652, %v2004
  %vm2060 = vcmp.eq.s32.totalorder %v653, %v2004
  %vm2061 = vcmp.eq.s32.totalorder %v654, %v2004
  %vm2062 = vcmp.eq.s32.totalorder %v651, %v2007
  %vm2063 = vcmp.eq.s32.totalorder %v652, %v2007
  %vm2064 = vcmp.eq.s32.totalorder %v653, %v2007
  %vm2065 = vcmp.eq.s32.totalorder %v654, %v2007
  %vm2066 = vcmp.eq.s32.totalorder %v651, %v2010
  %vm2067 = vcmp.eq.s32.totalorder %v652, %v2010
  %vm2068 = vcmp.eq.s32.totalorder %v653, %v2010
  %vm2069 = vcmp.eq.s32.totalorder %v654, %v2010
  %vm2070 = vcmp.eq.s32.totalorder %v651, %v2013
  %vm2071 = vcmp.eq.s32.totalorder %v652, %v2013
  %vm2072 = vcmp.eq.s32.totalorder %v653, %v2013
  %vm2073 = vcmp.eq.s32.totalorder %v654, %v2013
  %vm2074 = vcmp.eq.s32.totalorder %v651, %v2016
  %vm2075 = vcmp.eq.s32.totalorder %v652, %v2016
  %vm2076 = vcmp.eq.s32.totalorder %v653, %v2016
  %vm2077 = vcmp.eq.s32.totalorder %v654, %v2016
  %vm2078 = vcmp.eq.s32.totalorder %v651, %v2019
  %vm2079 = vcmp.eq.s32.totalorder %v652, %v2019
  %vm2080 = vcmp.eq.s32.totalorder %v653, %v2019
  %vm2081 = vcmp.eq.s32.totalorder %v654, %v2019
  %vm2082 = vcmp.eq.s32.totalorder %v651, %v2022
  %vm2083 = vcmp.eq.s32.totalorder %v652, %v2022
  %vm2084 = vcmp.eq.s32.totalorder %v653, %v2022
  %vm2085 = vcmp.eq.s32.totalorder %v654, %v2022
  %vm2086 = vcmp.eq.s32.totalorder %v651, %v2025
  %vm2087 = vcmp.eq.s32.totalorder %v652, %v2025
  %vm2088 = vcmp.eq.s32.totalorder %v653, %v2025
  %vm2089 = vcmp.eq.s32.totalorder %v654, %v2025
  %v2090 = vsel %vm2026, 1.0, 0.0
  %v2091 = vsel %vm2027, 1.0, 0.0
  %v2092 = vsel %vm2028, 1.0, 0.0
  %v2093 = vsel %vm2029, 1.0, 0.0
  %v2094 = vsel %vm2030, 1.0, 0.0
  %v2095 = vsel %vm2031, 1.0, 0.0
  %v2096 = vsel %vm2032, 1.0, 0.0
  %v2097 = vsel %vm2033, 1.0, 0.0
  %v2098 = vsel %vm2034, 1.0, 0.0
  %v2099 = vsel %vm2035, 1.0, 0.0
  %v2100 = vsel %vm2036, 1.0, 0.0
  %v2101 = vsel %vm2037, 1.0, 0.0
  %v2102 = vsel %vm2038, 1.0, 0.0
  %v2103 = vsel %vm2039, 1.0, 0.0
  %v2104 = vsel %vm2040, 1.0, 0.0
  %v2105 = vsel %vm2041, 1.0, 0.0
  %v2106 = vsel %vm2042, 1.0, 0.0
  %v2107 = vsel %vm2043, 1.0, 0.0
  %v2108 = vsel %vm2044, 1.0, 0.0
  %v2109 = vsel %vm2045, 1.0, 0.0
  %v2110 = vsel %vm2046, 1.0, 0.0
  %v2111 = vsel %vm2047, 1.0, 0.0
  %v2112 = vsel %vm2048, 1.0, 0.0
  %v2113 = vsel %vm2049, 1.0, 0.0
  %v2114 = vsel %vm2050, 1.0, 0.0
  %v2115 = vsel %vm2051, 1.0, 0.0
  %v2116 = vsel %vm2052, 1.0, 0.0
  %v2117 = vsel %vm2053, 1.0, 0.0
  %v2118 = vsel %vm2054, 1.0, 0.0
  %v2119 = vsel %vm2055, 1.0, 0.0
  %v2120 = vsel %vm2056, 1.0, 0.0
  %v2121 = vsel %vm2057, 1.0, 0.0
  %v2122 = vsel %vm2058, 1.0, 0.0
  %v2123 = vsel %vm2059, 1.0, 0.0
  %v2124 = vsel %vm2060, 1.0, 0.0
  %v2125 = vsel %vm2061, 1.0, 0.0
  %v2126 = vsel %vm2062, 1.0, 0.0
  %v2127 = vsel %vm2063, 1.0, 0.0
  %v2128 = vsel %vm2064, 1.0, 0.0
  %v2129 = vsel %vm2065, 1.0, 0.0
  %v2130 = vsel %vm2066, 1.0, 0.0
  %v2131 = vsel %vm2067, 1.0, 0.0
  %v2132 = vsel %vm2068, 1.0, 0.0
  %v2133 = vsel %vm2069, 1.0, 0.0
  %v2134 = vsel %vm2070, 1.0, 0.0
  %v2135 = vsel %vm2071, 1.0, 0.0
  %v2136 = vsel %vm2072, 1.0, 0.0
  %v2137 = vsel %vm2073, 1.0, 0.0
  %v2138 = vsel %vm2074, 1.0, 0.0
  %v2139 = vsel %vm2075, 1.0, 0.0
  %v2140 = vsel %vm2076, 1.0, 0.0
  %v2141 = vsel %vm2077, 1.0, 0.0
  %v2142 = vsel %vm2078, 1.0, 0.0
  %v2143 = vsel %vm2079, 1.0, 0.0
  %v2144 = vsel %vm2080, 1.0, 0.0
  %v2145 = vsel %vm2081, 1.0, 0.0
  %v2146 = vsel %vm2082, 1.0, 0.0
  %v2147 = vsel %vm2083, 1.0, 0.0
  %v2148 = vsel %vm2084, 1.0, 0.0
  %v2149 = vsel %vm2085, 1.0, 0.0
  %v2150 = vsel %vm2086, 1.0, 0.0
  %v2151 = vsel %vm2087, 1.0, 0.0
  %v2152 = vsel %vm2088, 1.0, 0.0
  %v2153 = vsel %vm2089, 1.0, 0.0
  %v2154 = vpack.c.bf16 %v2094, %v2090
  %v2155 = vpack.c.bf16 %v2095, %v2091
  %v2156 = vpack.c.bf16 %v2096, %v2092
  %v2157 = vpack.c.bf16 %v2097, %v2093
  %v2158 = vpack.c.bf16 %v2102, %v2098
  %v2159 = vpack.c.bf16 %v2103, %v2099
  %v2160 = vpack.c.bf16 %v2104, %v2100
  %v2161 = vpack.c.bf16 %v2105, %v2101
  %v2162 = vpack.c.bf16 %v2110, %v2106
  %v2163 = vpack.c.bf16 %v2111, %v2107
  %v2164 = vpack.c.bf16 %v2112, %v2108
  %v2165 = vpack.c.bf16 %v2113, %v2109
  %v2166 = vpack.c.bf16 %v2118, %v2114
  %v2167 = vpack.c.bf16 %v2119, %v2115
  %v2168 = vpack.c.bf16 %v2120, %v2116
  %v2169 = vpack.c.bf16 %v2121, %v2117
  %v2170 = vpack.c.bf16 %v2126, %v2122
  %v2171 = vpack.c.bf16 %v2127, %v2123
  %v2172 = vpack.c.bf16 %v2128, %v2124
  %v2173 = vpack.c.bf16 %v2129, %v2125
  %v2174 = vpack.c.bf16 %v2134, %v2130
  %v2175 = vpack.c.bf16 %v2135, %v2131
  %v2176 = vpack.c.bf16 %v2136, %v2132
  %v2177 = vpack.c.bf16 %v2137, %v2133
  %v2178 = vpack.c.bf16 %v2142, %v2138
  %v2179 = vpack.c.bf16 %v2143, %v2139
  %v2180 = vpack.c.bf16 %v2144, %v2140
  %v2181 = vpack.c.bf16 %v2145, %v2141
  %v2182 = vpack.c.bf16 %v2150, %v2146
  %v2183 = vpack.c.bf16 %v2151, %v2147
  %v2184 = vpack.c.bf16 %v2152, %v2148
  %v2185 = vpack.c.bf16 %v2153, %v2149
  %v2187 = vsel %vm879, %v2157, 0
  %v2190 = vsel %vm879, %v2161, 0
  %v2193 = vsel %vm879, %v2165, 0
  %v2196 = vsel %vm879, %v2169, 0
  %v2199 = vsel %vm879, %v2173, 0
  %v2202 = vsel %vm879, %v2177, 0
  %v2205 = vsel %vm879, %v2181, 0
  %v2208 = vsel %vm879, %v2185, 0
  %2210 = vmatprep.subr.bf16.mxu0 0
  %2211 = vmatpush1.bf16.msra.mxu0 %v632
  %2212 = vmatprep.subr.bf16.mxu0 0
  %2213 = vmatpush1.bf16.msra.mxu0 %v631
  %2214 = vmatprep.subr.bf16.mxu0 0
  %2215 = vmatpush1.bf16.msra.mxu0 %v630
  %2216 = vmatprep.subr.bf16.mxu0 0
  %2217 = vmatpush1.bf16.msra.mxu0 %v629
  %2218 = vmatprep.subr.bf16.mxu0 0
  %2219 = vmatpush1.bf16.msra.mxu0 %v628
  %2220 = vmatprep.subr.bf16.mxu0 0
  %2221 = vmatpush1.bf16.msra.mxu0 %v627
  %2222 = vmatprep.subr.bf16.mxu0 0
  %2223 = vmatpush1.bf16.msra.mxu0 %v626
  %2224 = vmatprep.subr.bf16.mxu0 0
  %2225 = vmatpush1.bf16.msra.mxu0 %v625
  %2226 = vmatprep.subr.bf16.mxu0 0
  %2227 = vmatpush2.bf16.msra.mxu0 %v640
  %2228 = vmatprep.subr.bf16.mxu0 0
  %2229 = vmatpush2.bf16.msra.mxu0 %v639
  %2230 = vmatprep.subr.bf16.mxu0 0
  %2231 = vmatpush2.bf16.msra.mxu0 %v638
  %2232 = vmatprep.subr.bf16.mxu0 0
  %2233 = vmatpush2.bf16.msra.mxu0 %v637
  %2234 = vmatprep.subr.bf16.mxu0 0
  %2235 = vmatpush2.bf16.msra.mxu0 %v636
  %2236 = vmatprep.subr.bf16.mxu0 0
  %2237 = vmatpush2.bf16.msra.mxu0 %v635
  %2238 = vmatprep.subr.bf16.mxu0 0
  %2239 = vmatpush2.bf16.msra.mxu0 %v634
  %2240 = vmatprep.subr.bf16.mxu0 0
  %2241 = vmatpush2.bf16.msra.mxu0 %v633
  %2242 = vmatprep.mubr.bf16.mxu0 %v2155
  %2243 = vmatmul.mubr.bf16.gmra.mxu0 %v2154
  %v2244 = vpop.f32.mrf.mxu0
  %v2245 = vadd.f32 0.0, %v2244
  %v2246 = vpop.f32.mrf.mxu0
  %v2247 = vpop.f32.mrf.mxu0
  %v2248 = vadd.f32 0.0, %v2247
  %v2249 = vpop.f32.mrf.mxu0
  %2250 = vmatprep.mubr.bf16.mxu0 %v2159
  %2251 = vmatmul.mubr.bf16.gmra.mxu0 %v2158
  %v2252 = vpop.f32.mrf.mxu0
  %v2253 = vadd.f32 0.0, %v2252
  %v2254 = vpop.f32.mrf.mxu0
  %v2255 = vpop.f32.mrf.mxu0
  %v2256 = vadd.f32 0.0, %v2255
  %v2257 = vpop.f32.mrf.mxu0
  %2258 = vmatprep.mubr.bf16.mxu0 %v2163
  %2259 = vmatmul.mubr.bf16.gmra.mxu0 %v2162
  %v2260 = vpop.f32.mrf.mxu0
  %v2261 = vadd.f32 0.0, %v2260
  %v2262 = vpop.f32.mrf.mxu0
  %v2263 = vpop.f32.mrf.mxu0
  %v2264 = vadd.f32 0.0, %v2263
  %v2265 = vpop.f32.mrf.mxu0
  %2266 = vmatprep.mubr.bf16.mxu0 %v2167
  %2267 = vmatmul.mubr.bf16.gmra.mxu0 %v2166
  %v2268 = vpop.f32.mrf.mxu0
  %v2269 = vadd.f32 0.0, %v2268
  %v2270 = vpop.f32.mrf.mxu0
  %v2271 = vpop.f32.mrf.mxu0
  %v2272 = vadd.f32 0.0, %v2271
  %v2273 = vpop.f32.mrf.mxu0
  %2274 = vmatprep.mubr.bf16.mxu0 %v2171
  %2275 = vmatmul.mubr.bf16.gmra.mxu0 %v2170
  %v2276 = vpop.f32.mrf.mxu0
  %v2277 = vadd.f32 0.0, %v2276
  %v2278 = vpop.f32.mrf.mxu0
  %v2279 = vpop.f32.mrf.mxu0
  %v2280 = vadd.f32 0.0, %v2279
  %v2281 = vpop.f32.mrf.mxu0
  %2282 = vmatprep.mubr.bf16.mxu0 %v2175
  %2283 = vmatmul.mubr.bf16.gmra.mxu0 %v2174
  %v2284 = vpop.f32.mrf.mxu0
  %v2285 = vadd.f32 0.0, %v2284
  %v2286 = vpop.f32.mrf.mxu0
  %v2287 = vpop.f32.mrf.mxu0
  %v2288 = vadd.f32 0.0, %v2287
  %v2289 = vpop.f32.mrf.mxu0
  %2290 = vmatprep.mubr.bf16.mxu0 %v2179
  %2291 = vmatmul.mubr.bf16.gmra.mxu0 %v2178
  %v2292 = vpop.f32.mrf.mxu0
  %v2293 = vadd.f32 0.0, %v2292
  %v2294 = vpop.f32.mrf.mxu0
  %v2295 = vpop.f32.mrf.mxu0
  %v2296 = vadd.f32 0.0, %v2295
  %v2297 = vpop.f32.mrf.mxu0
  %2298 = vmatprep.mubr.bf16.mxu0 %v2183
  %2299 = vmatmul.mubr.bf16.gmra.mxu0 %v2182
  %v2300 = vpop.f32.mrf.mxu0
  %v2301 = vadd.f32 0.0, %v2300
  %v2302 = vpop.f32.mrf.mxu0
  %v2303 = vpop.f32.mrf.mxu0
  %v2304 = vadd.f32 0.0, %v2303
  %v2305 = vpop.f32.mrf.mxu0
  %2306 = vdwg.mxu0
  %2307 = vmatprep.subr.bf16.mxu0 0
  %2308 = vmatpush1.bf16.msra.mxu0 %v648
  %2309 = vmatprep.subr.bf16.mxu0 0
  %2310 = vmatpush1.bf16.msra.mxu0 %v647
  %2311 = vmatprep.subr.bf16.mxu0 0
  %2312 = vmatpush1.bf16.msra.mxu0 %v646
  %2313 = vmatprep.subr.bf16.mxu0 0
  %2314 = vmatpush1.bf16.msra.mxu0 %v645
  %2315 = vmatprep.subr.bf16.mxu0 0
  %2316 = vmatpush1.bf16.msra.mxu0 %v644
  %2317 = vmatprep.subr.bf16.mxu0 0
  %2318 = vmatpush1.bf16.msra.mxu0 %v643
  %2319 = vmatprep.subr.bf16.mxu0 0
  %2320 = vmatpush1.bf16.msra.mxu0 %v642
  %2321 = vmatprep.subr.bf16.mxu0 0
  %2322 = vmatpush1.bf16.msra.mxu0 %v641
  %2323 = vmatprep.subr.bf16.mxu0 0
  %2324 = vmatpush2.bf16.msra.mxu0 0
  %2325 = vmatprep.subr.bf16.mxu0 0
  %2326 = vmatpush2.bf16.msra.mxu0 0
  %2327 = vmatprep.subr.bf16.mxu0 0
  %2328 = vmatpush2.bf16.msra.mxu0 0
  %2329 = vmatprep.subr.bf16.mxu0 0
  %2330 = vmatpush2.bf16.msra.mxu0 0
  %2331 = vmatprep.subr.bf16.mxu0 0
  %2332 = vmatpush2.bf16.msra.mxu0 0
  %2333 = vmatprep.subr.bf16.mxu0 0
  %2334 = vmatpush2.bf16.msra.mxu0 0
  %2335 = vmatprep.subr.bf16.mxu0 0
  %2336 = vmatpush2.bf16.msra.mxu0 0
  %2337 = vmatprep.subr.bf16.mxu0 0
  %2338 = vmatpush2.bf16.msra.mxu0 %v906
  %2339 = vmatprep.mubr.bf16.mxu0 %v2187
  %2340 = vmatmul.mubr.bf16.gmra.mxu0 %v2156
  %v2341 = vpop.f32.mrf.mxu0
  %v2342 = vadd.f32 %v2245, %v2341
  %v2343 = vpop.f32.mrf.mxu0
  %v2344 = vpop.f32.mrf.mxu0
  %v2345 = vadd.f32 %v2248, %v2344
  %v2346 = vpop.f32.mrf.mxu0
  %2347 = vmatprep.mubr.bf16.mxu0 %v2190
  %2348 = vmatmul.mubr.bf16.gmra.mxu0 %v2160
  %v2349 = vpop.f32.mrf.mxu0
  %v2350 = vadd.f32 %v2253, %v2349
  %v2351 = vpop.f32.mrf.mxu0
  %v2352 = vpop.f32.mrf.mxu0
  %v2353 = vadd.f32 %v2256, %v2352
  %v2354 = vpop.f32.mrf.mxu0
  %2355 = vmatprep.mubr.bf16.mxu0 %v2193
  %2356 = vmatmul.mubr.bf16.gmra.mxu0 %v2164
  %v2357 = vpop.f32.mrf.mxu0
  %v2358 = vadd.f32 %v2261, %v2357
  %v2359 = vpop.f32.mrf.mxu0
  %v2360 = vpop.f32.mrf.mxu0
  %v2361 = vadd.f32 %v2264, %v2360
  %v2362 = vpop.f32.mrf.mxu0
  %2363 = vmatprep.mubr.bf16.mxu0 %v2196
  %2364 = vmatmul.mubr.bf16.gmra.mxu0 %v2168
  %v2365 = vpop.f32.mrf.mxu0
  %v2366 = vadd.f32 %v2269, %v2365
  %v2367 = vpop.f32.mrf.mxu0
  %v2368 = vpop.f32.mrf.mxu0
  %v2369 = vadd.f32 %v2272, %v2368
  %v2370 = vpop.f32.mrf.mxu0
  %2371 = vmatprep.mubr.bf16.mxu0 %v2199
  %2372 = vmatmul.mubr.bf16.gmra.mxu0 %v2172
  %v2373 = vpop.f32.mrf.mxu0
  %v2374 = vadd.f32 %v2277, %v2373
  %v2375 = vpop.f32.mrf.mxu0
  %v2376 = vpop.f32.mrf.mxu0
  %v2377 = vadd.f32 %v2280, %v2376
  %v2378 = vpop.f32.mrf.mxu0
  %2379 = vmatprep.mubr.bf16.mxu0 %v2202
  %2380 = vmatmul.mubr.bf16.gmra.mxu0 %v2176
  %v2381 = vpop.f32.mrf.mxu0
  %v2382 = vadd.f32 %v2285, %v2381
  %v2383 = vpop.f32.mrf.mxu0
  %v2384 = vpop.f32.mrf.mxu0
  %v2385 = vadd.f32 %v2288, %v2384
  %v2386 = vpop.f32.mrf.mxu0
  %2387 = vmatprep.mubr.bf16.mxu0 %v2205
  %2388 = vmatmul.mubr.bf16.gmra.mxu0 %v2180
  %v2389 = vpop.f32.mrf.mxu0
  %v2390 = vadd.f32 %v2293, %v2389
  %v2391 = vpop.f32.mrf.mxu0
  %v2392 = vpop.f32.mrf.mxu0
  %v2393 = vadd.f32 %v2296, %v2392
  %v2394 = vpop.f32.mrf.mxu0
  %2395 = vmatprep.mubr.bf16.mxu0 %v2208
  %2396 = vmatmul.mubr.bf16.gmra.mxu0 %v2184
  %v2397 = vpop.f32.mrf.mxu0
  %v2398 = vadd.f32 %v2301, %v2397
  %v2399 = vpop.f32.mrf.mxu0
  %v2400 = vpop.f32.mrf.mxu0
  %v2401 = vadd.f32 %v2304, %v2400
  %v2402 = vpop.f32.mrf.mxu0
  %2403 = vdwg.mxu0
  %v2404 = vpack.c.bf16 %v2345, %v2342
  %v2405 = vpack.c.bf16 %v2353, %v2350
  %v2406 = vpack.c.bf16 %v2361, %v2358
  %v2407 = vpack.c.bf16 %v2369, %v2366
  %v2408 = vpack.c.bf16 %v2377, %v2374
  %v2409 = vpack.c.bf16 %v2385, %v2382
  %v2410 = vpack.c.bf16 %v2393, %v2390
  %v2411 = vpack.c.bf16 %v2401, %v2398
  %2420 = vrot.lane.b32.xlu0 %v1536, 32
  %v2421 = vpop.permute.xlu0 %2420
  %2422 = vrot.lane.b32.xlu0 %v1537, 32
  %v2423 = vpop.permute.xlu0 %2422
  %2424 = vrot.lane.b32.xlu0 %v1538, 32
  %v2425 = vpop.permute.xlu0 %2424
  %2426 = vrot.lane.b32.xlu0 %v1539, 32
  %v2427 = vpop.permute.xlu0 %2426
  %2428 = vrot.lane.b32.xlu0 %v1540, 32
  %v2429 = vpop.permute.xlu0 %2428
  %2430 = vrot.lane.b32.xlu0 %v1541, 32
  %v2431 = vpop.permute.xlu0 %2430
  %2432 = vrot.lane.b32.xlu0 %v1542, 32
  %v2433 = vpop.permute.xlu0 %2432
  %2434 = vrot.lane.b32.xlu0 %v1543, 32
  %v2435 = vpop.permute.xlu0 %2434
  %2444 = vrot.lane.b32.xlu0 %v1970, 64
  %v2445 = vpop.permute.xlu0 %2444
  %2446 = vrot.lane.b32.xlu0 %v1971, 64
  %v2447 = vpop.permute.xlu0 %2446
  %2448 = vrot.lane.b32.xlu0 %v1972, 64
  %v2449 = vpop.permute.xlu0 %2448
  %2450 = vrot.lane.b32.xlu0 %v1973, 64
  %v2451 = vpop.permute.xlu0 %2450
  %2452 = vrot.lane.b32.xlu0 %v1974, 64
  %v2453 = vpop.permute.xlu0 %2452
  %2454 = vrot.lane.b32.xlu0 %v1975, 64
  %v2455 = vpop.permute.xlu0 %2454
  %2456 = vrot.lane.b32.xlu0 %v1976, 64
  %v2457 = vpop.permute.xlu0 %2456
  %2458 = vrot.lane.b32.xlu0 %v1977, 64
  %v2459 = vpop.permute.xlu0 %2458
  %2468 = vrot.lane.b32.xlu0 %v2404, 96
  %v2469 = vpop.permute.xlu0 %2468
  %2470 = vrot.lane.b32.xlu0 %v2405, 96
  %v2471 = vpop.permute.xlu0 %2470
  %2472 = vrot.lane.b32.xlu0 %v2406, 96
  %v2473 = vpop.permute.xlu0 %2472
  %2474 = vrot.lane.b32.xlu0 %v2407, 96
  %v2475 = vpop.permute.xlu0 %2474
  %2476 = vrot.lane.b32.xlu0 %v2408, 96
  %v2477 = vpop.permute.xlu0 %2476
  %2478 = vrot.lane.b32.xlu0 %v2409, 96
  %v2479 = vpop.permute.xlu0 %2478
  %2480 = vrot.lane.b32.xlu0 %v2410, 96
  %v2481 = vpop.permute.xlu0 %2480
  %2482 = vrot.lane.b32.xlu0 %v2411, 96
  %v2483 = vpop.permute.xlu0 %2482
  %vm2484 = vcmask 261120
  %v2487 = vsel %vm2484, %v1102, %v2421
  %v2490 = vsel %vm2484, %v1103, %v2423
  %v2493 = vsel %vm2484, %v1104, %v2425
  %v2496 = vsel %vm2484, %v1105, %v2427
  %v2499 = vsel %vm2484, %v1106, %v2429
  %v2502 = vsel %vm2484, %v1107, %v2431
  %v2505 = vsel %vm2484, %v1108, %v2433
  %v2508 = vsel %vm2484, %v1109, %v2435
  %vm2509 = vcmask 523264
  %v2511 = vsel %vm2509, %v2487, %v2445
  %v2513 = vsel %vm2509, %v2490, %v2447
  %v2515 = vsel %vm2509, %v2493, %v2449
  %v2517 = vsel %vm2509, %v2496, %v2451
  %v2519 = vsel %vm2509, %v2499, %v2453
  %v2521 = vsel %vm2509, %v2502, %v2455
  %v2523 = vsel %vm2509, %v2505, %v2457
  %v2525 = vsel %vm2509, %v2508, %v2459
  %vm2526 = vcmask 785408
  %v2528 = vsel %vm2526, %v2511, %v2469
  %v2531 = vsel %vm2526, %v2513, %v2471
  %v2534 = vsel %vm2526, %v2515, %v2473
  %v2537 = vsel %vm2526, %v2517, %v2475
  %v2540 = vsel %vm2526, %v2519, %v2477
  %v2543 = vsel %vm2526, %v2521, %v2479
  %v2546 = vsel %vm2526, %v2523, %v2481
  %v2549 = vsel %vm2526, %v2525, %v2483
  %v2551 = vld [vmem:[%s3] sm:$0xf]
  %v2552 = vld [vmem:[%s3 + $0x4] sm:$0xf]
  %v2553 = vld [vmem:[%s3 + $0x8] sm:$0xf]
  %v2554 = vld [vmem:[%s3 + $0xc] sm:$0xf]
  %v2555 = vld [vmem:[%s3 + $0x10] sm:$0xf]
  %v2556 = vld [vmem:[%s3 + $0x14] sm:$0xf]
  %v2557 = vld [vmem:[%s3 + $0x18] sm:$0xf]
  %v2558 = vld [vmem:[%s3 + $0x1c] sm:$0xf]
  %v2559 = vld [vmem:[%s3 + $0x20] sm:$0xf]
  %v2560 = vld [vmem:[%s3 + $0x24] sm:$0xf]
  %v2561 = vld [vmem:[%s3 + $0x28] sm:$0xf]
  %v2562 = vld [vmem:[%s3 + $0x2c] sm:$0xf]
  %v2563 = vld [vmem:[%s3 + $0x30] sm:$0xf]
  %v2564 = vld [vmem:[%s3 + $0x34] sm:$0xf]
  %v2565 = vld [vmem:[%s3 + $0x38] sm:$0xf]
  %v2566 = vld [vmem:[%s3 + $0x3c] sm:$0xf]
  %v2583 = vunpack.c.l.b16 %v2551
  %v2584 = vunpack.c.l.b16 %v2552
  %v2585 = vunpack.c.l.b16 %v2553
  %v2586 = vunpack.c.l.b16 %v2554
  %v2587 = vunpack.c.l.b16 %v2555
  %v2588 = vunpack.c.l.b16 %v2556
  %v2589 = vunpack.c.l.b16 %v2557
  %v2590 = vunpack.c.l.b16 %v2558
  %v2591 = vunpack.c.l.b16 %v2559
  %v2592 = vunpack.c.l.b16 %v2560
  %v2593 = vunpack.c.l.b16 %v2561
  %v2594 = vunpack.c.l.b16 %v2562
  %v2595 = vunpack.c.l.b16 %v2563
  %v2596 = vunpack.c.l.b16 %v2564
  %v2597 = vunpack.c.l.b16 %v2565
  %v2598 = vunpack.c.l.b16 %v2566
  %v2599 = vpack.c.b16 %v2584, %v2583
  %v2600 = vpack.c.b16 %v2586, %v2585
  %v2601 = vpack.c.b16 %v2588, %v2587
  %v2602 = vpack.c.b16 %v2590, %v2589
  %v2603 = vpack.c.b16 %v2592, %v2591
  %v2604 = vpack.c.b16 %v2594, %v2593
  %v2605 = vpack.c.b16 %v2596, %v2595
  %v2606 = vpack.c.b16 %v2598, %v2597
  %2615 = vmatprep.subr.bf16.mxu0 0
  %2616 = vmatpush1.bf16.msra.mxu0 %v2606
  %2617 = vmatprep.subr.bf16.mxu0 0
  %2618 = vmatpush1.bf16.msra.mxu0 %v2605
  %2619 = vmatprep.subr.bf16.mxu0 0
  %2620 = vmatpush1.bf16.msra.mxu0 %v2604
  %2621 = vmatprep.subr.bf16.mxu0 0
  %2622 = vmatpush1.bf16.msra.mxu0 %v2603
  %2623 = vmatprep.subr.bf16.mxu0 0
  %2624 = vmatpush1.bf16.msra.mxu0 %v2602
  %2625 = vmatprep.subr.bf16.mxu0 0
  %2626 = vmatpush1.bf16.msra.mxu0 %v2601
  %2627 = vmatprep.subr.bf16.mxu0 0
  %2628 = vmatpush1.bf16.msra.mxu0 %v2600
  %2629 = vmatprep.subr.bf16.mxu0 0
  %2630 = vmatpush1.bf16.msra.mxu0 %v2599
  %2631 = vmatprep.subr.bf16.mxu0 0
  %2632 = vmatpush2.bf16.msra.mxu0 0
  %2633 = vmatprep.subr.bf16.mxu0 0
  %2634 = vmatpush2.bf16.msra.mxu0 0
  %2635 = vmatprep.subr.bf16.mxu0 0
  %2636 = vmatpush2.bf16.msra.mxu0 0
  %2637 = vmatprep.subr.bf16.mxu0 0
  %2638 = vmatpush2.bf16.msra.mxu0 0
  %2639 = vmatprep.subr.bf16.mxu0 0
  %2640 = vmatpush2.bf16.msra.mxu0 0
  %2641 = vmatprep.subr.bf16.mxu0 0
  %2642 = vmatpush2.bf16.msra.mxu0 0
  %2643 = vmatprep.subr.bf16.mxu0 0
  %2644 = vmatpush2.bf16.msra.mxu0 0
  %2645 = vmatprep.subr.bf16.mxu0 0
  %2646 = vmatpush2.bf16.msra.mxu0 0
  %2647 = vmatprep.mubr.bf16.mxu0 0
  %2648 = vmatmul.mubr.bf16.gmra.mxu0 %v2528
  %v2649 = vpop.f32.mrf.mxu0
  %v2650 = vadd.f32 0.0, %v2649
  %v2651 = vpop.f32.mrf.mxu0
  %v2652 = vpop.f32.mrf.mxu0
  %v2653 = vadd.f32 0.0, %v2652
  %v2654 = vpop.f32.mrf.mxu0
  %2655 = vmatprep.mubr.bf16.mxu0 0
  %2656 = vmatmul.mubr.bf16.gmra.mxu0 %v2531
  %v2657 = vpop.f32.mrf.mxu0
  %v2658 = vadd.f32 0.0, %v2657
  %v2659 = vpop.f32.mrf.mxu0
  %v2660 = vpop.f32.mrf.mxu0
  %v2661 = vadd.f32 0.0, %v2660
  %v2662 = vpop.f32.mrf.mxu0
  %2663 = vmatprep.mubr.bf16.mxu0 0
  %2664 = vmatmul.mubr.bf16.gmra.mxu0 %v2534
  %v2665 = vpop.f32.mrf.mxu0
  %v2666 = vadd.f32 0.0, %v2665
  %v2667 = vpop.f32.mrf.mxu0
  %v2668 = vpop.f32.mrf.mxu0
  %v2669 = vadd.f32 0.0, %v2668
  %v2670 = vpop.f32.mrf.mxu0
  %2671 = vmatprep.mubr.bf16.mxu0 0
  %2672 = vmatmul.mubr.bf16.gmra.mxu0 %v2537
  %v2673 = vpop.f32.mrf.mxu0
  %v2674 = vadd.f32 0.0, %v2673
  %v2675 = vpop.f32.mrf.mxu0
  %v2676 = vpop.f32.mrf.mxu0
  %v2677 = vadd.f32 0.0, %v2676
  %v2678 = vpop.f32.mrf.mxu0
  %2679 = vmatprep.mubr.bf16.mxu0 0
  %2680 = vmatmul.mubr.bf16.gmra.mxu0 %v2540
  %v2681 = vpop.f32.mrf.mxu0
  %v2682 = vadd.f32 0.0, %v2681
  %v2683 = vpop.f32.mrf.mxu0
  %v2684 = vpop.f32.mrf.mxu0
  %v2685 = vadd.f32 0.0, %v2684
  %v2686 = vpop.f32.mrf.mxu0
  %2687 = vmatprep.mubr.bf16.mxu0 0
  %2688 = vmatmul.mubr.bf16.gmra.mxu0 %v2543
  %v2689 = vpop.f32.mrf.mxu0
  %v2690 = vadd.f32 0.0, %v2689
  %v2691 = vpop.f32.mrf.mxu0
  %v2692 = vpop.f32.mrf.mxu0
  %v2693 = vadd.f32 0.0, %v2692
  %v2694 = vpop.f32.mrf.mxu0
  %2695 = vmatprep.mubr.bf16.mxu0 0
  %2696 = vmatmul.mubr.bf16.gmra.mxu0 %v2546
  %v2697 = vpop.f32.mrf.mxu0
  %v2698 = vadd.f32 0.0, %v2697
  %v2699 = vpop.f32.mrf.mxu0
  %v2700 = vpop.f32.mrf.mxu0
  %v2701 = vadd.f32 0.0, %v2700
  %v2702 = vpop.f32.mrf.mxu0
  %2703 = vmatprep.mubr.bf16.mxu0 0
  %2704 = vmatmul.mubr.bf16.gmra.mxu0 %v2549
  %v2705 = vpop.f32.mrf.mxu0
  %v2706 = vadd.f32 0.0, %v2705
  %v2707 = vpop.f32.mrf.mxu0
  %v2708 = vpop.f32.mrf.mxu0
  %v2709 = vadd.f32 0.0, %v2708
  %v2710 = vpop.f32.mrf.mxu0
  %2711 = vdwg.mxu0
  %v2712 = vld [vmem:[%s4] sm:$0x1]
  %v2713 = vld [vmem:[%s5] sm:$0x1]
  %v2714 = vsel %vm2509, %v2650, 0.0
  %v2715 = vsel %vm2509, %v2653, 0.0
  %v2716 = vadd.f32 %v2714, %v2715
  %v2717 = vsel %vm2509, %v2658, 0.0
  %v2718 = vadd.f32 %v2716, %v2717
  %v2719 = vsel %vm2509, %v2661, 0.0
  %v2720 = vadd.f32 %v2718, %v2719
  %v2721 = vsel %vm2509, %v2666, 0.0
  %v2722 = vadd.f32 %v2720, %v2721
  %v2723 = vsel %vm2509, %v2669, 0.0
  %v2724 = vadd.f32 %v2722, %v2723
  %v2725 = vsel %vm2509, %v2674, 0.0
  %v2726 = vadd.f32 %v2724, %v2725
  %v2727 = vsel %vm2509, %v2677, 0.0
  %v2728 = vadd.f32 %v2726, %v2727
  %v2729 = vsel %vm2509, %v2682, 0.0
  %v2730 = vadd.f32 %v2728, %v2729
  %v2731 = vsel %vm2509, %v2685, 0.0
  %v2732 = vadd.f32 %v2730, %v2731
  %v2733 = vsel %vm2509, %v2690, 0.0
  %v2734 = vadd.f32 %v2732, %v2733
  %v2735 = vsel %vm2509, %v2693, 0.0
  %v2736 = vadd.f32 %v2734, %v2735
  %v2737 = vsel %vm2509, %v2698, 0.0
  %v2738 = vadd.f32 %v2736, %v2737
  %v2739 = vsel %vm2509, %v2701, 0.0
  %v2740 = vadd.f32 %v2738, %v2739
  %v2741 = vsel %vm2509, %v2706, 0.0
  %v2742 = vadd.f32 %v2740, %v2741
  %v2743 = vsel %vm2509, %v2709, 0.0
  %v2744 = vadd.f32 %v2742, %v2743
  %v2745 = vrot.slane %v2744, 4
  %v2746 = vadd.f32 %v2744, %v2745
  %v2747 = vrot.slane %v2746, 2
  %v2748 = vadd.f32 %v2746, %v2747
  %v2749 = vrot.slane %v2748, 1
  %v2750 = vadd.f32 %v2748, %v2749
  %v2751 = vrcp.pop 128.0
  %v2752 = vmul.f32 %v2750, %v2751
  %v2753 = vsub.f32 %v2650, %v2752
  %v2754 = vsub.f32 %v2653, %v2752
  %v2755 = vsub.f32 %v2658, %v2752
  %v2756 = vsub.f32 %v2661, %v2752
  %v2757 = vsub.f32 %v2666, %v2752
  %v2758 = vsub.f32 %v2669, %v2752
  %v2759 = vsub.f32 %v2674, %v2752
  %v2760 = vsub.f32 %v2677, %v2752
  %v2761 = vsub.f32 %v2682, %v2752
  %v2762 = vsub.f32 %v2685, %v2752
  %v2763 = vsub.f32 %v2690, %v2752
  %v2764 = vsub.f32 %v2693, %v2752
  %v2765 = vsub.f32 %v2698, %v2752
  %v2766 = vsub.f32 %v2701, %v2752
  %v2767 = vsub.f32 %v2706, %v2752
  %v2768 = vsub.f32 %v2709, %v2752
  %v2769 = vmul.f32 %v2753, %v2753
  %v2770 = vmul.f32 %v2754, %v2754
  %v2771 = vmul.f32 %v2755, %v2755
  %v2772 = vmul.f32 %v2756, %v2756
  %v2773 = vmul.f32 %v2757, %v2757
  %v2774 = vmul.f32 %v2758, %v2758
  %v2775 = vmul.f32 %v2759, %v2759
  %v2776 = vmul.f32 %v2760, %v2760
  %v2777 = vmul.f32 %v2761, %v2761
  %v2778 = vmul.f32 %v2762, %v2762
  %v2779 = vmul.f32 %v2763, %v2763
  %v2780 = vmul.f32 %v2764, %v2764
  %v2781 = vmul.f32 %v2765, %v2765
  %v2782 = vmul.f32 %v2766, %v2766
  %v2783 = vmul.f32 %v2767, %v2767
  %v2784 = vmul.f32 %v2768, %v2768
  %v2785 = vsel %vm2509, %v2769, 0.0
  %v2786 = vsel %vm2509, %v2770, 0.0
  %v2787 = vadd.f32 %v2785, %v2786
  %v2788 = vsel %vm2509, %v2771, 0.0
  %v2789 = vadd.f32 %v2787, %v2788
  %v2790 = vsel %vm2509, %v2772, 0.0
  %v2791 = vadd.f32 %v2789, %v2790
  %v2792 = vsel %vm2509, %v2773, 0.0
  %v2793 = vadd.f32 %v2791, %v2792
  %v2794 = vsel %vm2509, %v2774, 0.0
  %v2795 = vadd.f32 %v2793, %v2794
  %v2796 = vsel %vm2509, %v2775, 0.0
  %v2797 = vadd.f32 %v2795, %v2796
  %v2798 = vsel %vm2509, %v2776, 0.0
  %v2799 = vadd.f32 %v2797, %v2798
  %v2800 = vsel %vm2509, %v2777, 0.0
  %v2801 = vadd.f32 %v2799, %v2800
  %v2802 = vsel %vm2509, %v2778, 0.0
  %v2803 = vadd.f32 %v2801, %v2802
  %v2804 = vsel %vm2509, %v2779, 0.0
  %v2805 = vadd.f32 %v2803, %v2804
  %v2806 = vsel %vm2509, %v2780, 0.0
  %v2807 = vadd.f32 %v2805, %v2806
  %v2808 = vsel %vm2509, %v2781, 0.0
  %v2809 = vadd.f32 %v2807, %v2808
  %v2810 = vsel %vm2509, %v2782, 0.0
  %v2811 = vadd.f32 %v2809, %v2810
  %v2812 = vsel %vm2509, %v2783, 0.0
  %v2813 = vadd.f32 %v2811, %v2812
  %v2814 = vsel %vm2509, %v2784, 0.0
  %v2815 = vadd.f32 %v2813, %v2814
  %v2816 = vrot.slane %v2815, 4
  %v2817 = vadd.f32 %v2815, %v2816
  %v2818 = vrot.slane %v2817, 2
  %v2819 = vadd.f32 %v2817, %v2818
  %v2820 = vrot.slane %v2819, 1
  %v2821 = vadd.f32 %v2819, %v2820
  %v2822 = vmul.f32 %v2821, %v2751
  %v2823 = vadd.f32 %v2822, 1e-05
  %v2824 = vrsqrt.pop %v2823
  %v2825 = vmul.f32 %v2753, %v2824
  %v2826 = vmul.f32 %v2754, %v2824
  %v2827 = vmul.f32 %v2755, %v2824
  %v2828 = vmul.f32 %v2756, %v2824
  %v2829 = vmul.f32 %v2757, %v2824
  %v2830 = vmul.f32 %v2758, %v2824
  %v2831 = vmul.f32 %v2759, %v2824
  %v2832 = vmul.f32 %v2760, %v2824
  %v2833 = vmul.f32 %v2761, %v2824
  %v2834 = vmul.f32 %v2762, %v2824
  %v2835 = vmul.f32 %v2763, %v2824
  %v2836 = vmul.f32 %v2764, %v2824
  %v2837 = vmul.f32 %v2765, %v2824
  %v2838 = vmul.f32 %v2766, %v2824
  %v2839 = vmul.f32 %v2767, %v2824
  %v2840 = vmul.f32 %v2768, %v2824
  %v2842 = vlaneseq
  %v2843 = vshrl.u32 %v2842, 7
  %v2844 = vsub.s32 0, %v2843
  %v2845 = vrot.slane %v2712, %v2844
  %v2847 = vmul.f32 %v2825, %v2845
  %v2848 = vmul.f32 %v2826, %v2845
  %v2849 = vmul.f32 %v2827, %v2845
  %v2850 = vmul.f32 %v2828, %v2845
  %v2851 = vmul.f32 %v2829, %v2845
  %v2852 = vmul.f32 %v2830, %v2845
  %v2853 = vmul.f32 %v2831, %v2845
  %v2854 = vmul.f32 %v2832, %v2845
  %v2855 = vmul.f32 %v2833, %v2845
  %v2856 = vmul.f32 %v2834, %v2845
  %v2857 = vmul.f32 %v2835, %v2845
  %v2858 = vmul.f32 %v2836, %v2845
  %v2859 = vmul.f32 %v2837, %v2845
  %v2860 = vmul.f32 %v2838, %v2845
  %v2861 = vmul.f32 %v2839, %v2845
  %v2862 = vmul.f32 %v2840, %v2845
  %v2864 = vlaneseq
  %v2865 = vshrl.u32 %v2864, 7
  %v2866 = vsub.s32 0, %v2865
  %v2867 = vrot.slane %v2713, %v2866
  %v2869 = vadd.f32 %v2847, %v2867
  %v2870 = vadd.f32 %v2848, %v2867
  %v2871 = vadd.f32 %v2849, %v2867
  %v2872 = vadd.f32 %v2850, %v2867
  %v2873 = vadd.f32 %v2851, %v2867
  %v2874 = vadd.f32 %v2852, %v2867
  %v2875 = vadd.f32 %v2853, %v2867
  %v2876 = vadd.f32 %v2854, %v2867
  %v2877 = vadd.f32 %v2855, %v2867
  %v2878 = vadd.f32 %v2856, %v2867
  %v2879 = vadd.f32 %v2857, %v2867
  %v2880 = vadd.f32 %v2858, %v2867
  %v2881 = vadd.f32 %v2859, %v2867
  %v2882 = vadd.f32 %v2860, %v2867
  %v2883 = vadd.f32 %v2861, %v2867
  %v2884 = vadd.f32 %v2862, %v2867
  %v2885 = vmul.f32 %v2869, 0.2
  %v2886 = vmul.f32 %v2870, 0.2
  %v2887 = vmul.f32 %v2871, 0.2
  %v2888 = vmul.f32 %v2872, 0.2
  %v2889 = vmul.f32 %v2873, 0.2
  %v2890 = vmul.f32 %v2874, 0.2
  %v2891 = vmul.f32 %v2875, 0.2
  %v2892 = vmul.f32 %v2876, 0.2
  %v2893 = vmul.f32 %v2877, 0.2
  %v2894 = vmul.f32 %v2878, 0.2
  %v2895 = vmul.f32 %v2879, 0.2
  %v2896 = vmul.f32 %v2880, 0.2
  %v2897 = vmul.f32 %v2881, 0.2
  %v2898 = vmul.f32 %v2882, 0.2
  %v2899 = vmul.f32 %v2883, 0.2
  %v2900 = vmul.f32 %v2884, 0.2
  %v2901 = vmax.f32 %v2869, %v2885
  %v2902 = vmax.f32 %v2870, %v2886
  %v2903 = vmax.f32 %v2871, %v2887
  %v2904 = vmax.f32 %v2872, %v2888
  %v2905 = vmax.f32 %v2873, %v2889
  %v2906 = vmax.f32 %v2874, %v2890
  %v2907 = vmax.f32 %v2875, %v2891
  %v2908 = vmax.f32 %v2876, %v2892
  %v2909 = vmax.f32 %v2877, %v2893
  %v2910 = vmax.f32 %v2878, %v2894
  %v2911 = vmax.f32 %v2879, %v2895
  %v2912 = vmax.f32 %v2880, %v2896
  %v2913 = vmax.f32 %v2881, %v2897
  %v2914 = vmax.f32 %v2882, %v2898
  %v2915 = vmax.f32 %v2883, %v2899
  %v2916 = vmax.f32 %v2884, %v2900
  %v2917 = vpack.c.bf16 %v2902, %v2901
  %v2918 = vpack.c.bf16 %v2904, %v2903
  %v2919 = vpack.c.bf16 %v2906, %v2905
  %v2920 = vpack.c.bf16 %v2908, %v2907
  %v2921 = vpack.c.bf16 %v2910, %v2909
  %v2922 = vpack.c.bf16 %v2912, %v2911
  %v2923 = vpack.c.bf16 %v2914, %v2913
  %v2924 = vpack.c.bf16 %v2916, %v2915
  %v2925 = vld [vmem:[%s6] sm:$0xff]
  %v2926 = vld [vmem:[%s6 + $0x8] sm:$0xff]
  %v2927 = vld [vmem:[%s6 + $0x10] sm:$0xff]
  %v2928 = vld [vmem:[%s6 + $0x18] sm:$0xff]
  %2929 = vset.pattern.permute.xlu0 0
  %2930 = vperm.xlu0 %2929, %v2925
  %v2931 = vpop.permute.xlu0 %2930
  %2932 = vset.pattern.permute.xlu0 0
  %2933 = vperm.xlu0 %2932, %v2926
  %v2934 = vpop.permute.xlu0 %2933
  %2935 = vset.pattern.permute.xlu0 0
  %2936 = vperm.xlu0 %2935, %v2927
  %v2937 = vpop.permute.xlu0 %2936
  %2938 = vset.pattern.permute.xlu0 0
  %2939 = vperm.xlu0 %2938, %v2928
  %v2940 = vpop.permute.xlu0 %2939
  %vm2941 = vcmp.eq.s32.totalorder %v651, %v2931
  %vm2942 = vcmp.eq.s32.totalorder %v651, %v2934
  %vm2943 = vcmp.eq.s32.totalorder %v651, %v2937
  %vm2944 = vcmp.eq.s32.totalorder %v651, %v2940
  %v2945 = vsel %vm2941, 1.0, 0.0
  %v2946 = vsel %vm2942, 1.0, 0.0
  %v2947 = vsel %vm2943, 1.0, 0.0
  %v2948 = vsel %vm2944, 1.0, 0.0
  %v2949 = vpack.c.bf16 %v2946, %v2945
  %v2950 = vpack.c.bf16 %v2948, %v2947
  %2951 = vmatprep.subr.bf16.mxu0 0
  %2952 = vmatpush1.bf16.msra.mxu0 %v2924
  %2953 = vmatprep.subr.bf16.mxu0 0
  %2954 = vmatpush1.bf16.msra.mxu0 %v2923
  %2955 = vmatprep.subr.bf16.mxu0 0
  %2956 = vmatpush1.bf16.msra.mxu0 %v2922
  %2957 = vmatprep.subr.bf16.mxu0 0
  %2958 = vmatpush1.bf16.msra.mxu0 %v2921
  %2959 = vmatprep.subr.bf16.mxu0 0
  %2960 = vmatpush1.bf16.msra.mxu0 %v2920
  %2961 = vmatprep.subr.bf16.mxu0 0
  %2962 = vmatpush1.bf16.msra.mxu0 %v2919
  %2963 = vmatprep.subr.bf16.mxu0 0
  %2964 = vmatpush1.bf16.msra.mxu0 %v2918
  %2965 = vmatprep.subr.bf16.mxu0 0
  %2966 = vmatpush1.bf16.msra.mxu0 %v2917
  %2967 = vmatprep.subr.bf16.mxu0 0
  %2968 = vmatpush2.bf16.msra.mxu0 0
  %2969 = vmatprep.subr.bf16.mxu0 0
  %2970 = vmatpush2.bf16.msra.mxu0 0
  %2971 = vmatprep.subr.bf16.mxu0 0
  %2972 = vmatpush2.bf16.msra.mxu0 0
  %2973 = vmatprep.subr.bf16.mxu0 0
  %2974 = vmatpush2.bf16.msra.mxu0 0
  %2975 = vmatprep.subr.bf16.mxu0 0
  %2976 = vmatpush2.bf16.msra.mxu0 0
  %2977 = vmatprep.subr.bf16.mxu0 0
  %2978 = vmatpush2.bf16.msra.mxu0 0
  %2979 = vmatprep.subr.bf16.mxu0 0
  %2980 = vmatpush2.bf16.msra.mxu0 0
  %2981 = vmatprep.subr.bf16.mxu0 0
  %2982 = vmatpush2.bf16.msra.mxu0 0
  %2983 = vmatprep.mubr.bf16.mxu0 0
  %2984 = vmatmul.mubr.bf16.gmra.mxu0 %v2949
  %v2985 = vpop.f32.mrf.mxu0
  %v2986 = vadd.f32 0.0, %v2985
  %v2987 = vpop.f32.mrf.mxu0
  %v2988 = vpop.f32.mrf.mxu0
  %v2989 = vadd.f32 0.0, %v2988
  %v2990 = vpop.f32.mrf.mxu0
  %2991 = vmatprep.mubr.bf16.mxu0 0
  %2992 = vmatmul.mubr.bf16.gmra.mxu0 %v2950
  %v2993 = vpop.f32.mrf.mxu0
  %v2994 = vadd.f32 0.0, %v2993
  %v2995 = vpop.f32.mrf.mxu0
  %v2996 = vpop.f32.mrf.mxu0
  %v2997 = vadd.f32 0.0, %v2996
  %v2998 = vpop.f32.mrf.mxu0
  %2999 = vdwg.mxu0
  %v3000 = vpack.c.bf16 %v2989, %v2986
  %v3001 = vpack.c.bf16 %v2997, %v2994
  %3002 = vset.pattern.permute.xlu0 1
  %3003 = vperm.xlu0 %3002, %v2925
  %v3004 = vpop.permute.xlu0 %3003
  %3005 = vset.pattern.permute.xlu0 1
  %3006 = vperm.xlu0 %3005, %v2926
  %v3007 = vpop.permute.xlu0 %3006
  %3008 = vset.pattern.permute.xlu0 1
  %3009 = vperm.xlu0 %3008, %v2927
  %v3010 = vpop.permute.xlu0 %3009
  %3011 = vset.pattern.permute.xlu0 1
  %3012 = vperm.xlu0 %3011, %v2928
  %v3013 = vpop.permute.xlu0 %3012
  %vm3014 = vcmp.eq.s32.totalorder %v651, %v3004
  %vm3015 = vcmp.eq.s32.totalorder %v651, %v3007
  %vm3016 = vcmp.eq.s32.totalorder %v651, %v3010
  %vm3017 = vcmp.eq.s32.totalorder %v651, %v3013
  %v3018 = vsel %vm3014, 1.0, 0.0
  %v3019 = vsel %vm3015, 1.0, 0.0
  %v3020 = vsel %vm3016, 1.0, 0.0
  %v3021 = vsel %vm3017, 1.0, 0.0
  %v3022 = vpack.c.bf16 %v3019, %v3018
  %v3023 = vpack.c.bf16 %v3021, %v3020
  %3024 = vmatprep.subr.bf16.mxu0 0
  %3025 = vmatpush1.bf16.msra.mxu0 %v2924
  %3026 = vmatprep.subr.bf16.mxu0 0
  %3027 = vmatpush1.bf16.msra.mxu0 %v2923
  %3028 = vmatprep.subr.bf16.mxu0 0
  %3029 = vmatpush1.bf16.msra.mxu0 %v2922
  %3030 = vmatprep.subr.bf16.mxu0 0
  %3031 = vmatpush1.bf16.msra.mxu0 %v2921
  %3032 = vmatprep.subr.bf16.mxu0 0
  %3033 = vmatpush1.bf16.msra.mxu0 %v2920
  %3034 = vmatprep.subr.bf16.mxu0 0
  %3035 = vmatpush1.bf16.msra.mxu0 %v2919
  %3036 = vmatprep.subr.bf16.mxu0 0
  %3037 = vmatpush1.bf16.msra.mxu0 %v2918
  %3038 = vmatprep.subr.bf16.mxu0 0
  %3039 = vmatpush1.bf16.msra.mxu0 %v2917
  %3040 = vmatprep.subr.bf16.mxu0 0
  %3041 = vmatpush2.bf16.msra.mxu0 0
  %3042 = vmatprep.subr.bf16.mxu0 0
  %3043 = vmatpush2.bf16.msra.mxu0 0
  %3044 = vmatprep.subr.bf16.mxu0 0
  %3045 = vmatpush2.bf16.msra.mxu0 0
  %3046 = vmatprep.subr.bf16.mxu0 0
  %3047 = vmatpush2.bf16.msra.mxu0 0
  %3048 = vmatprep.subr.bf16.mxu0 0
  %3049 = vmatpush2.bf16.msra.mxu0 0
  %3050 = vmatprep.subr.bf16.mxu0 0
  %3051 = vmatpush2.bf16.msra.mxu0 0
  %3052 = vmatprep.subr.bf16.mxu0 0
  %3053 = vmatpush2.bf16.msra.mxu0 0
  %3054 = vmatprep.subr.bf16.mxu0 0
  %3055 = vmatpush2.bf16.msra.mxu0 0
  %3056 = vmatprep.mubr.bf16.mxu0 0
  %3057 = vmatmul.mubr.bf16.gmra.mxu0 %v3022
  %v3058 = vpop.f32.mrf.mxu0
  %v3059 = vadd.f32 0.0, %v3058
  %v3060 = vpop.f32.mrf.mxu0
  %v3061 = vpop.f32.mrf.mxu0
  %v3062 = vadd.f32 0.0, %v3061
  %v3063 = vpop.f32.mrf.mxu0
  %3064 = vmatprep.mubr.bf16.mxu0 0
  %3065 = vmatmul.mubr.bf16.gmra.mxu0 %v3023
  %v3066 = vpop.f32.mrf.mxu0
  %v3067 = vadd.f32 0.0, %v3066
  %v3068 = vpop.f32.mrf.mxu0
  %v3069 = vpop.f32.mrf.mxu0
  %v3070 = vadd.f32 0.0, %v3069
  %v3071 = vpop.f32.mrf.mxu0
  %3072 = vdwg.mxu0
  %v3073 = vpack.c.bf16 %v3062, %v3059
  %v3074 = vpack.c.bf16 %v3070, %v3067
  %3075 = vset.pattern.permute.xlu0 2
  %3076 = vperm.xlu0 %3075, %v2925
  %v3077 = vpop.permute.xlu0 %3076
  %3078 = vset.pattern.permute.xlu0 2
  %3079 = vperm.xlu0 %3078, %v2926
  %v3080 = vpop.permute.xlu0 %3079
  %3081 = vset.pattern.permute.xlu0 2
  %3082 = vperm.xlu0 %3081, %v2927
  %v3083 = vpop.permute.xlu0 %3082
  %3084 = vset.pattern.permute.xlu0 2
  %3085 = vperm.xlu0 %3084, %v2928
  %v3086 = vpop.permute.xlu0 %3085
  %vm3087 = vcmp.eq.s32.totalorder %v651, %v3077
  %vm3088 = vcmp.eq.s32.totalorder %v651, %v3080
  %vm3089 = vcmp.eq.s32.totalorder %v651, %v3083
  %vm3090 = vcmp.eq.s32.totalorder %v651, %v3086
  %v3091 = vsel %vm3087, 1.0, 0.0
  %v3092 = vsel %vm3088, 1.0, 0.0
  %v3093 = vsel %vm3089, 1.0, 0.0
  %v3094 = vsel %vm3090, 1.0, 0.0
  %v3095 = vpack.c.bf16 %v3092, %v3091
  %v3096 = vpack.c.bf16 %v3094, %v3093
  %3097 = vmatprep.subr.bf16.mxu0 0
  %3098 = vmatpush1.bf16.msra.mxu0 %v2924
  %3099 = vmatprep.subr.bf16.mxu0 0
  %3100 = vmatpush1.bf16.msra.mxu0 %v2923
  %3101 = vmatprep.subr.bf16.mxu0 0
  %3102 = vmatpush1.bf16.msra.mxu0 %v2922
  %3103 = vmatprep.subr.bf16.mxu0 0
  %3104 = vmatpush1.bf16.msra.mxu0 %v2921
  %3105 = vmatprep.subr.bf16.mxu0 0
  %3106 = vmatpush1.bf16.msra.mxu0 %v2920
  %3107 = vmatprep.subr.bf16.mxu0 0
  %3108 = vmatpush1.bf16.msra.mxu0 %v2919
  %3109 = vmatprep.subr.bf16.mxu0 0
  %3110 = vmatpush1.bf16.msra.mxu0 %v2918
  %3111 = vmatprep.subr.bf16.mxu0 0
  %3112 = vmatpush1.bf16.msra.mxu0 %v2917
  %3113 = vmatprep.subr.bf16.mxu0 0
  %3114 = vmatpush2.bf16.msra.mxu0 0
  %3115 = vmatprep.subr.bf16.mxu0 0
  %3116 = vmatpush2.bf16.msra.mxu0 0
  %3117 = vmatprep.subr.bf16.mxu0 0
  %3118 = vmatpush2.bf16.msra.mxu0 0
  %3119 = vmatprep.subr.bf16.mxu0 0
  %3120 = vmatpush2.bf16.msra.mxu0 0
  %3121 = vmatprep.subr.bf16.mxu0 0
  %3122 = vmatpush2.bf16.msra.mxu0 0
  %3123 = vmatprep.subr.bf16.mxu0 0
  %3124 = vmatpush2.bf16.msra.mxu0 0
  %3125 = vmatprep.subr.bf16.mxu0 0
  %3126 = vmatpush2.bf16.msra.mxu0 0
  %3127 = vmatprep.subr.bf16.mxu0 0
  %3128 = vmatpush2.bf16.msra.mxu0 0
  %3129 = vmatprep.mubr.bf16.mxu0 0
  %3130 = vmatmul.mubr.bf16.gmra.mxu0 %v3095
  %v3131 = vpop.f32.mrf.mxu0
  %v3132 = vadd.f32 0.0, %v3131
  %v3133 = vpop.f32.mrf.mxu0
  %v3134 = vpop.f32.mrf.mxu0
  %v3135 = vadd.f32 0.0, %v3134
  %v3136 = vpop.f32.mrf.mxu0
  %3137 = vmatprep.mubr.bf16.mxu0 0
  %3138 = vmatmul.mubr.bf16.gmra.mxu0 %v3096
  %v3139 = vpop.f32.mrf.mxu0
  %v3140 = vadd.f32 0.0, %v3139
  %v3141 = vpop.f32.mrf.mxu0
  %v3142 = vpop.f32.mrf.mxu0
  %v3143 = vadd.f32 0.0, %v3142
  %v3144 = vpop.f32.mrf.mxu0
  %3145 = vdwg.mxu0
  %v3146 = vpack.c.bf16 %v3135, %v3132
  %v3147 = vpack.c.bf16 %v3143, %v3140
  %3148 = vset.pattern.permute.xlu0 3
  %3149 = vperm.xlu0 %3148, %v2925
  %v3150 = vpop.permute.xlu0 %3149
  %3151 = vset.pattern.permute.xlu0 3
  %3152 = vperm.xlu0 %3151, %v2926
  %v3153 = vpop.permute.xlu0 %3152
  %3154 = vset.pattern.permute.xlu0 3
  %3155 = vperm.xlu0 %3154, %v2927
  %v3156 = vpop.permute.xlu0 %3155
  %3157 = vset.pattern.permute.xlu0 3
  %3158 = vperm.xlu0 %3157, %v2928
  %v3159 = vpop.permute.xlu0 %3158
  %vm3160 = vcmp.eq.s32.totalorder %v651, %v3150
  %vm3161 = vcmp.eq.s32.totalorder %v651, %v3153
  %vm3162 = vcmp.eq.s32.totalorder %v651, %v3156
  %vm3163 = vcmp.eq.s32.totalorder %v651, %v3159
  %v3164 = vsel %vm3160, 1.0, 0.0
  %v3165 = vsel %vm3161, 1.0, 0.0
  %v3166 = vsel %vm3162, 1.0, 0.0
  %v3167 = vsel %vm3163, 1.0, 0.0
  %v3168 = vpack.c.bf16 %v3165, %v3164
  %v3169 = vpack.c.bf16 %v3167, %v3166
  %3170 = vmatprep.subr.bf16.mxu0 0
  %3171 = vmatpush1.bf16.msra.mxu0 %v2924
  %3172 = vmatprep.subr.bf16.mxu0 0
  %3173 = vmatpush1.bf16.msra.mxu0 %v2923
  %3174 = vmatprep.subr.bf16.mxu0 0
  %3175 = vmatpush1.bf16.msra.mxu0 %v2922
  %3176 = vmatprep.subr.bf16.mxu0 0
  %3177 = vmatpush1.bf16.msra.mxu0 %v2921
  %3178 = vmatprep.subr.bf16.mxu0 0
  %3179 = vmatpush1.bf16.msra.mxu0 %v2920
  %3180 = vmatprep.subr.bf16.mxu0 0
  %3181 = vmatpush1.bf16.msra.mxu0 %v2919
  %3182 = vmatprep.subr.bf16.mxu0 0
  %3183 = vmatpush1.bf16.msra.mxu0 %v2918
  %3184 = vmatprep.subr.bf16.mxu0 0
  %3185 = vmatpush1.bf16.msra.mxu0 %v2917
  %3186 = vmatprep.subr.bf16.mxu0 0
  %3187 = vmatpush2.bf16.msra.mxu0 0
  %3188 = vmatprep.subr.bf16.mxu0 0
  %3189 = vmatpush2.bf16.msra.mxu0 0
  %3190 = vmatprep.subr.bf16.mxu0 0
  %3191 = vmatpush2.bf16.msra.mxu0 0
  %3192 = vmatprep.subr.bf16.mxu0 0
  %3193 = vmatpush2.bf16.msra.mxu0 0
  %3194 = vmatprep.subr.bf16.mxu0 0
  %3195 = vmatpush2.bf16.msra.mxu0 0
  %3196 = vmatprep.subr.bf16.mxu0 0
  %3197 = vmatpush2.bf16.msra.mxu0 0
  %3198 = vmatprep.subr.bf16.mxu0 0
  %3199 = vmatpush2.bf16.msra.mxu0 0
  %3200 = vmatprep.subr.bf16.mxu0 0
  %3201 = vmatpush2.bf16.msra.mxu0 0
  %3202 = vmatprep.mubr.bf16.mxu0 0
  %3203 = vmatmul.mubr.bf16.gmra.mxu0 %v3168
  %v3204 = vpop.f32.mrf.mxu0
  %v3205 = vadd.f32 0.0, %v3204
  %v3206 = vpop.f32.mrf.mxu0
  %v3207 = vpop.f32.mrf.mxu0
  %v3208 = vadd.f32 0.0, %v3207
  %v3209 = vpop.f32.mrf.mxu0
  %3210 = vmatprep.mubr.bf16.mxu0 0
  %3211 = vmatmul.mubr.bf16.gmra.mxu0 %v3169
  %v3212 = vpop.f32.mrf.mxu0
  %v3213 = vadd.f32 0.0, %v3212
  %v3214 = vpop.f32.mrf.mxu0
  %v3215 = vpop.f32.mrf.mxu0
  %v3216 = vadd.f32 0.0, %v3215
  %v3217 = vpop.f32.mrf.mxu0
  %3218 = vdwg.mxu0
  %v3219 = vpack.c.bf16 %v3208, %v3205
  %v3220 = vpack.c.bf16 %v3216, %v3213
  %3221 = vset.pattern.permute.xlu0 4
  %3222 = vperm.xlu0 %3221, %v2925
  %v3223 = vpop.permute.xlu0 %3222
  %3224 = vset.pattern.permute.xlu0 4
  %3225 = vperm.xlu0 %3224, %v2926
  %v3226 = vpop.permute.xlu0 %3225
  %3227 = vset.pattern.permute.xlu0 4
  %3228 = vperm.xlu0 %3227, %v2927
  %v3229 = vpop.permute.xlu0 %3228
  %3230 = vset.pattern.permute.xlu0 4
  %3231 = vperm.xlu0 %3230, %v2928
  %v3232 = vpop.permute.xlu0 %3231
  %vm3233 = vcmp.eq.s32.totalorder %v651, %v3223
  %vm3234 = vcmp.eq.s32.totalorder %v651, %v3226
  %vm3235 = vcmp.eq.s32.totalorder %v651, %v3229
  %vm3236 = vcmp.eq.s32.totalorder %v651, %v3232
  %v3237 = vsel %vm3233, 1.0, 0.0
  %v3238 = vsel %vm3234, 1.0, 0.0
  %v3239 = vsel %vm3235, 1.0, 0.0
  %v3240 = vsel %vm3236, 1.0, 0.0
  %v3241 = vpack.c.bf16 %v3238, %v3237
  %v3242 = vpack.c.bf16 %v3240, %v3239
  %3243 = vmatprep.subr.bf16.mxu0 0
  %3244 = vmatpush1.bf16.msra.mxu0 %v2924
  %3245 = vmatprep.subr.bf16.mxu0 0
  %3246 = vmatpush1.bf16.msra.mxu0 %v2923
  %3247 = vmatprep.subr.bf16.mxu0 0
  %3248 = vmatpush1.bf16.msra.mxu0 %v2922
  %3249 = vmatprep.subr.bf16.mxu0 0
  %3250 = vmatpush1.bf16.msra.mxu0 %v2921
  %3251 = vmatprep.subr.bf16.mxu0 0
  %3252 = vmatpush1.bf16.msra.mxu0 %v2920
  %3253 = vmatprep.subr.bf16.mxu0 0
  %3254 = vmatpush1.bf16.msra.mxu0 %v2919
  %3255 = vmatprep.subr.bf16.mxu0 0
  %3256 = vmatpush1.bf16.msra.mxu0 %v2918
  %3257 = vmatprep.subr.bf16.mxu0 0
  %3258 = vmatpush1.bf16.msra.mxu0 %v2917
  %3259 = vmatprep.subr.bf16.mxu0 0
  %3260 = vmatpush2.bf16.msra.mxu0 0
  %3261 = vmatprep.subr.bf16.mxu0 0
  %3262 = vmatpush2.bf16.msra.mxu0 0
  %3263 = vmatprep.subr.bf16.mxu0 0
  %3264 = vmatpush2.bf16.msra.mxu0 0
  %3265 = vmatprep.subr.bf16.mxu0 0
  %3266 = vmatpush2.bf16.msra.mxu0 0
  %3267 = vmatprep.subr.bf16.mxu0 0
  %3268 = vmatpush2.bf16.msra.mxu0 0
  %3269 = vmatprep.subr.bf16.mxu0 0
  %3270 = vmatpush2.bf16.msra.mxu0 0
  %3271 = vmatprep.subr.bf16.mxu0 0
  %3272 = vmatpush2.bf16.msra.mxu0 0
  %3273 = vmatprep.subr.bf16.mxu0 0
  %3274 = vmatpush2.bf16.msra.mxu0 0
  %3275 = vmatprep.mubr.bf16.mxu0 0
  %3276 = vmatmul.mubr.bf16.gmra.mxu0 %v3241
  %v3277 = vpop.f32.mrf.mxu0
  %v3278 = vadd.f32 0.0, %v3277
  %v3279 = vpop.f32.mrf.mxu0
  %v3280 = vpop.f32.mrf.mxu0
  %v3281 = vadd.f32 0.0, %v3280
  %v3282 = vpop.f32.mrf.mxu0
  %3283 = vmatprep.mubr.bf16.mxu0 0
  %3284 = vmatmul.mubr.bf16.gmra.mxu0 %v3242
  %v3285 = vpop.f32.mrf.mxu0
  %v3286 = vadd.f32 0.0, %v3285
  %v3287 = vpop.f32.mrf.mxu0
  %v3288 = vpop.f32.mrf.mxu0
  %v3289 = vadd.f32 0.0, %v3288
  %v3290 = vpop.f32.mrf.mxu0
  %3291 = vdwg.mxu0
  %v3292 = vpack.c.bf16 %v3281, %v3278
  %v3293 = vpack.c.bf16 %v3289, %v3286
  %3294 = vset.pattern.permute.xlu0 5
  %3295 = vperm.xlu0 %3294, %v2925
  %v3296 = vpop.permute.xlu0 %3295
  %3297 = vset.pattern.permute.xlu0 5
  %3298 = vperm.xlu0 %3297, %v2926
  %v3299 = vpop.permute.xlu0 %3298
  %3300 = vset.pattern.permute.xlu0 5
  %3301 = vperm.xlu0 %3300, %v2927
  %v3302 = vpop.permute.xlu0 %3301
  %3303 = vset.pattern.permute.xlu0 5
  %3304 = vperm.xlu0 %3303, %v2928
  %v3305 = vpop.permute.xlu0 %3304
  %vm3306 = vcmp.eq.s32.totalorder %v651, %v3296
  %vm3307 = vcmp.eq.s32.totalorder %v651, %v3299
  %vm3308 = vcmp.eq.s32.totalorder %v651, %v3302
  %vm3309 = vcmp.eq.s32.totalorder %v651, %v3305
  %v3310 = vsel %vm3306, 1.0, 0.0
  %v3311 = vsel %vm3307, 1.0, 0.0
  %v3312 = vsel %vm3308, 1.0, 0.0
  %v3313 = vsel %vm3309, 1.0, 0.0
  %v3314 = vpack.c.bf16 %v3311, %v3310
  %v3315 = vpack.c.bf16 %v3313, %v3312
  %3316 = vmatprep.subr.bf16.mxu0 0
  %3317 = vmatpush1.bf16.msra.mxu0 %v2924
  %3318 = vmatprep.subr.bf16.mxu0 0
  %3319 = vmatpush1.bf16.msra.mxu0 %v2923
  %3320 = vmatprep.subr.bf16.mxu0 0
  %3321 = vmatpush1.bf16.msra.mxu0 %v2922
  %3322 = vmatprep.subr.bf16.mxu0 0
  %3323 = vmatpush1.bf16.msra.mxu0 %v2921
  %3324 = vmatprep.subr.bf16.mxu0 0
  %3325 = vmatpush1.bf16.msra.mxu0 %v2920
  %3326 = vmatprep.subr.bf16.mxu0 0
  %3327 = vmatpush1.bf16.msra.mxu0 %v2919
  %3328 = vmatprep.subr.bf16.mxu0 0
  %3329 = vmatpush1.bf16.msra.mxu0 %v2918
  %3330 = vmatprep.subr.bf16.mxu0 0
  %3331 = vmatpush1.bf16.msra.mxu0 %v2917
  %3332 = vmatprep.subr.bf16.mxu0 0
  %3333 = vmatpush2.bf16.msra.mxu0 0
  %3334 = vmatprep.subr.bf16.mxu0 0
  %3335 = vmatpush2.bf16.msra.mxu0 0
  %3336 = vmatprep.subr.bf16.mxu0 0
  %3337 = vmatpush2.bf16.msra.mxu0 0
  %3338 = vmatprep.subr.bf16.mxu0 0
  %3339 = vmatpush2.bf16.msra.mxu0 0
  %3340 = vmatprep.subr.bf16.mxu0 0
  %3341 = vmatpush2.bf16.msra.mxu0 0
  %3342 = vmatprep.subr.bf16.mxu0 0
  %3343 = vmatpush2.bf16.msra.mxu0 0
  %3344 = vmatprep.subr.bf16.mxu0 0
  %3345 = vmatpush2.bf16.msra.mxu0 0
  %3346 = vmatprep.subr.bf16.mxu0 0
  %3347 = vmatpush2.bf16.msra.mxu0 0
  %3348 = vmatprep.mubr.bf16.mxu0 0
  %3349 = vmatmul.mubr.bf16.gmra.mxu0 %v3314
  %v3350 = vpop.f32.mrf.mxu0
  %v3351 = vadd.f32 0.0, %v3350
  %v3352 = vpop.f32.mrf.mxu0
  %v3353 = vpop.f32.mrf.mxu0
  %v3354 = vadd.f32 0.0, %v3353
  %v3355 = vpop.f32.mrf.mxu0
  %3356 = vmatprep.mubr.bf16.mxu0 0
  %3357 = vmatmul.mubr.bf16.gmra.mxu0 %v3315
  %v3358 = vpop.f32.mrf.mxu0
  %v3359 = vadd.f32 0.0, %v3358
  %v3360 = vpop.f32.mrf.mxu0
  %v3361 = vpop.f32.mrf.mxu0
  %v3362 = vadd.f32 0.0, %v3361
  %v3363 = vpop.f32.mrf.mxu0
  %3364 = vdwg.mxu0
  %v3365 = vpack.c.bf16 %v3354, %v3351
  %v3366 = vpack.c.bf16 %v3362, %v3359
  %3367 = vset.pattern.permute.xlu0 6
  %3368 = vperm.xlu0 %3367, %v2925
  %v3369 = vpop.permute.xlu0 %3368
  %3370 = vset.pattern.permute.xlu0 6
  %3371 = vperm.xlu0 %3370, %v2926
  %v3372 = vpop.permute.xlu0 %3371
  %3373 = vset.pattern.permute.xlu0 6
  %3374 = vperm.xlu0 %3373, %v2927
  %v3375 = vpop.permute.xlu0 %3374
  %3376 = vset.pattern.permute.xlu0 6
  %3377 = vperm.xlu0 %3376, %v2928
  %v3378 = vpop.permute.xlu0 %3377
  %vm3379 = vcmp.eq.s32.totalorder %v651, %v3369
  %vm3380 = vcmp.eq.s32.totalorder %v651, %v3372
  %vm3381 = vcmp.eq.s32.totalorder %v651, %v3375
  %vm3382 = vcmp.eq.s32.totalorder %v651, %v3378
  %v3383 = vsel %vm3379, 1.0, 0.0
  %v3384 = vsel %vm3380, 1.0, 0.0
  %v3385 = vsel %vm3381, 1.0, 0.0
  %v3386 = vsel %vm3382, 1.0, 0.0
  %v3387 = vpack.c.bf16 %v3384, %v3383
  %v3388 = vpack.c.bf16 %v3386, %v3385
  %3389 = vmatprep.subr.bf16.mxu0 0
  %3390 = vmatpush1.bf16.msra.mxu0 %v2924
  %3391 = vmatprep.subr.bf16.mxu0 0
  %3392 = vmatpush1.bf16.msra.mxu0 %v2923
  %3393 = vmatprep.subr.bf16.mxu0 0
  %3394 = vmatpush1.bf16.msra.mxu0 %v2922
  %3395 = vmatprep.subr.bf16.mxu0 0
  %3396 = vmatpush1.bf16.msra.mxu0 %v2921
  %3397 = vmatprep.subr.bf16.mxu0 0
  %3398 = vmatpush1.bf16.msra.mxu0 %v2920
  %3399 = vmatprep.subr.bf16.mxu0 0
  %3400 = vmatpush1.bf16.msra.mxu0 %v2919
  %3401 = vmatprep.subr.bf16.mxu0 0
  %3402 = vmatpush1.bf16.msra.mxu0 %v2918
  %3403 = vmatprep.subr.bf16.mxu0 0
  %3404 = vmatpush1.bf16.msra.mxu0 %v2917
  %3405 = vmatprep.subr.bf16.mxu0 0
  %3406 = vmatpush2.bf16.msra.mxu0 0
  %3407 = vmatprep.subr.bf16.mxu0 0
  %3408 = vmatpush2.bf16.msra.mxu0 0
  %3409 = vmatprep.subr.bf16.mxu0 0
  %3410 = vmatpush2.bf16.msra.mxu0 0
  %3411 = vmatprep.subr.bf16.mxu0 0
  %3412 = vmatpush2.bf16.msra.mxu0 0
  %3413 = vmatprep.subr.bf16.mxu0 0
  %3414 = vmatpush2.bf16.msra.mxu0 0
  %3415 = vmatprep.subr.bf16.mxu0 0
  %3416 = vmatpush2.bf16.msra.mxu0 0
  %3417 = vmatprep.subr.bf16.mxu0 0
  %3418 = vmatpush2.bf16.msra.mxu0 0
  %3419 = vmatprep.subr.bf16.mxu0 0
  %3420 = vmatpush2.bf16.msra.mxu0 0
  %3421 = vmatprep.mubr.bf16.mxu0 0
  %3422 = vmatmul.mubr.bf16.gmra.mxu0 %v3387
  %v3423 = vpop.f32.mrf.mxu0
  %v3424 = vadd.f32 0.0, %v3423
  %v3425 = vpop.f32.mrf.mxu0
  %v3426 = vpop.f32.mrf.mxu0
  %v3427 = vadd.f32 0.0, %v3426
  %v3428 = vpop.f32.mrf.mxu0
  %3429 = vmatprep.mubr.bf16.mxu0 0
  %3430 = vmatmul.mubr.bf16.gmra.mxu0 %v3388
  %v3431 = vpop.f32.mrf.mxu0
  %v3432 = vadd.f32 0.0, %v3431
  %v3433 = vpop.f32.mrf.mxu0
  %v3434 = vpop.f32.mrf.mxu0
  %v3435 = vadd.f32 0.0, %v3434
  %v3436 = vpop.f32.mrf.mxu0
  %3437 = vdwg.mxu0
  %v3438 = vpack.c.bf16 %v3427, %v3424
  %v3439 = vpack.c.bf16 %v3435, %v3432
  %3440 = vset.pattern.permute.xlu0 7
  %3441 = vperm.xlu0 %3440, %v2925
  %v3442 = vpop.permute.xlu0 %3441
  %3443 = vset.pattern.permute.xlu0 7
  %3444 = vperm.xlu0 %3443, %v2926
  %v3445 = vpop.permute.xlu0 %3444
  %3446 = vset.pattern.permute.xlu0 7
  %3447 = vperm.xlu0 %3446, %v2927
  %v3448 = vpop.permute.xlu0 %3447
  %3449 = vset.pattern.permute.xlu0 7
  %3450 = vperm.xlu0 %3449, %v2928
  %v3451 = vpop.permute.xlu0 %3450
  %vm3452 = vcmp.eq.s32.totalorder %v651, %v3442
  %vm3453 = vcmp.eq.s32.totalorder %v651, %v3445
  %vm3454 = vcmp.eq.s32.totalorder %v651, %v3448
  %vm3455 = vcmp.eq.s32.totalorder %v651, %v3451
  %v3456 = vsel %vm3452, 1.0, 0.0
  %v3457 = vsel %vm3453, 1.0, 0.0
  %v3458 = vsel %vm3454, 1.0, 0.0
  %v3459 = vsel %vm3455, 1.0, 0.0
  %v3460 = vpack.c.bf16 %v3457, %v3456
  %v3461 = vpack.c.bf16 %v3459, %v3458
  %3462 = vmatprep.subr.bf16.mxu0 0
  %3463 = vmatpush1.bf16.msra.mxu0 %v2924
  %3464 = vmatprep.subr.bf16.mxu0 0
  %3465 = vmatpush1.bf16.msra.mxu0 %v2923
  %3466 = vmatprep.subr.bf16.mxu0 0
  %3467 = vmatpush1.bf16.msra.mxu0 %v2922
  %3468 = vmatprep.subr.bf16.mxu0 0
  %3469 = vmatpush1.bf16.msra.mxu0 %v2921
  %3470 = vmatprep.subr.bf16.mxu0 0
  %3471 = vmatpush1.bf16.msra.mxu0 %v2920
  %3472 = vmatprep.subr.bf16.mxu0 0
  %3473 = vmatpush1.bf16.msra.mxu0 %v2919
  %3474 = vmatprep.subr.bf16.mxu0 0
  %3475 = vmatpush1.bf16.msra.mxu0 %v2918
  %3476 = vmatprep.subr.bf16.mxu0 0
  %3477 = vmatpush1.bf16.msra.mxu0 %v2917
  %3478 = vmatprep.subr.bf16.mxu0 0
  %3479 = vmatpush2.bf16.msra.mxu0 0
  %3480 = vmatprep.subr.bf16.mxu0 0
  %3481 = vmatpush2.bf16.msra.mxu0 0
  %3482 = vmatprep.subr.bf16.mxu0 0
  %3483 = vmatpush2.bf16.msra.mxu0 0
  %3484 = vmatprep.subr.bf16.mxu0 0
  %3485 = vmatpush2.bf16.msra.mxu0 0
  %3486 = vmatprep.subr.bf16.mxu0 0
  %3487 = vmatpush2.bf16.msra.mxu0 0
  %3488 = vmatprep.subr.bf16.mxu0 0
  %3489 = vmatpush2.bf16.msra.mxu0 0
  %3490 = vmatprep.subr.bf16.mxu0 0
  %3491 = vmatpush2.bf16.msra.mxu0 0
  %3492 = vmatprep.subr.bf16.mxu0 0
  %3493 = vmatpush2.bf16.msra.mxu0 0
  %3494 = vmatprep.mubr.bf16.mxu0 0
  %3495 = vmatmul.mubr.bf16.gmra.mxu0 %v3460
  %v3496 = vpop.f32.mrf.mxu0
  %v3497 = vadd.f32 0.0, %v3496
  %v3498 = vpop.f32.mrf.mxu0
  %v3499 = vpop.f32.mrf.mxu0
  %v3500 = vadd.f32 0.0, %v3499
  %v3501 = vpop.f32.mrf.mxu0
  %3502 = vmatprep.mubr.bf16.mxu0 0
  %3503 = vmatmul.mubr.bf16.gmra.mxu0 %v3461
  %v3504 = vpop.f32.mrf.mxu0
  %v3505 = vadd.f32 0.0, %v3504
  %v3506 = vpop.f32.mrf.mxu0
  %v3507 = vpop.f32.mrf.mxu0
  %v3508 = vadd.f32 0.0, %v3507
  %v3509 = vpop.f32.mrf.mxu0
  %3510 = vdwg.mxu0
  %v3511 = vpack.c.bf16 %v3500, %v3497
  %v3512 = vpack.c.bf16 %v3508, %v3505
  %3513 = vset.pattern.permute.xlu0 8
  %3514 = vperm.xlu0 %3513, %v2925
  %v3515 = vpop.permute.xlu0 %3514
  %3516 = vset.pattern.permute.xlu0 8
  %3517 = vperm.xlu0 %3516, %v2926
  %v3518 = vpop.permute.xlu0 %3517
  %3519 = vset.pattern.permute.xlu0 8
  %3520 = vperm.xlu0 %3519, %v2927
  %v3521 = vpop.permute.xlu0 %3520
  %3522 = vset.pattern.permute.xlu0 8
  %3523 = vperm.xlu0 %3522, %v2928
  %v3524 = vpop.permute.xlu0 %3523
  %vm3525 = vcmp.eq.s32.totalorder %v651, %v3515
  %vm3526 = vcmp.eq.s32.totalorder %v651, %v3518
  %vm3527 = vcmp.eq.s32.totalorder %v651, %v3521
  %vm3528 = vcmp.eq.s32.totalorder %v651, %v3524
  %v3529 = vsel %vm3525, 1.0, 0.0
  %v3530 = vsel %vm3526, 1.0, 0.0
  %v3531 = vsel %vm3527, 1.0, 0.0
  %v3532 = vsel %vm3528, 1.0, 0.0
  %v3533 = vpack.c.bf16 %v3530, %v3529
  %v3534 = vpack.c.bf16 %v3532, %v3531
  %3535 = vmatprep.subr.bf16.mxu0 0
  %3536 = vmatpush1.bf16.msra.mxu0 %v2924
  %3537 = vmatprep.subr.bf16.mxu0 0
  %3538 = vmatpush1.bf16.msra.mxu0 %v2923
  %3539 = vmatprep.subr.bf16.mxu0 0
  %3540 = vmatpush1.bf16.msra.mxu0 %v2922
  %3541 = vmatprep.subr.bf16.mxu0 0
  %3542 = vmatpush1.bf16.msra.mxu0 %v2921
  %3543 = vmatprep.subr.bf16.mxu0 0
  %3544 = vmatpush1.bf16.msra.mxu0 %v2920
  %3545 = vmatprep.subr.bf16.mxu0 0
  %3546 = vmatpush1.bf16.msra.mxu0 %v2919
  %3547 = vmatprep.subr.bf16.mxu0 0
  %3548 = vmatpush1.bf16.msra.mxu0 %v2918
  %3549 = vmatprep.subr.bf16.mxu0 0
  %3550 = vmatpush1.bf16.msra.mxu0 %v2917
  %3551 = vmatprep.subr.bf16.mxu0 0
  %3552 = vmatpush2.bf16.msra.mxu0 0
  %3553 = vmatprep.subr.bf16.mxu0 0
  %3554 = vmatpush2.bf16.msra.mxu0 0
  %3555 = vmatprep.subr.bf16.mxu0 0
  %3556 = vmatpush2.bf16.msra.mxu0 0
  %3557 = vmatprep.subr.bf16.mxu0 0
  %3558 = vmatpush2.bf16.msra.mxu0 0
  %3559 = vmatprep.subr.bf16.mxu0 0
  %3560 = vmatpush2.bf16.msra.mxu0 0
  %3561 = vmatprep.subr.bf16.mxu0 0
  %3562 = vmatpush2.bf16.msra.mxu0 0
  %3563 = vmatprep.subr.bf16.mxu0 0
  %3564 = vmatpush2.bf16.msra.mxu0 0
  %3565 = vmatprep.subr.bf16.mxu0 0
  %3566 = vmatpush2.bf16.msra.mxu0 0
  %3567 = vmatprep.mubr.bf16.mxu0 0
  %3568 = vmatmul.mubr.bf16.gmra.mxu0 %v3533
  %v3569 = vpop.f32.mrf.mxu0
  %v3570 = vadd.f32 0.0, %v3569
  %v3571 = vpop.f32.mrf.mxu0
  %v3572 = vpop.f32.mrf.mxu0
  %v3573 = vadd.f32 0.0, %v3572
  %v3574 = vpop.f32.mrf.mxu0
  %3575 = vmatprep.mubr.bf16.mxu0 0
  %3576 = vmatmul.mubr.bf16.gmra.mxu0 %v3534
  %v3577 = vpop.f32.mrf.mxu0
  %v3578 = vadd.f32 0.0, %v3577
  %v3579 = vpop.f32.mrf.mxu0
  %v3580 = vpop.f32.mrf.mxu0
  %v3581 = vadd.f32 0.0, %v3580
  %v3582 = vpop.f32.mrf.mxu0
  %3583 = vdwg.mxu0
  %v3584 = vpack.c.bf16 %v3573, %v3570
  %v3585 = vpack.c.bf16 %v3581, %v3578
  %3586 = vset.pattern.permute.xlu0 9
  %3587 = vperm.xlu0 %3586, %v2925
  %v3588 = vpop.permute.xlu0 %3587
  %3589 = vset.pattern.permute.xlu0 9
  %3590 = vperm.xlu0 %3589, %v2926
  %v3591 = vpop.permute.xlu0 %3590
  %3592 = vset.pattern.permute.xlu0 9
  %3593 = vperm.xlu0 %3592, %v2927
  %v3594 = vpop.permute.xlu0 %3593
  %3595 = vset.pattern.permute.xlu0 9
  %3596 = vperm.xlu0 %3595, %v2928
  %v3597 = vpop.permute.xlu0 %3596
  %vm3598 = vcmp.eq.s32.totalorder %v651, %v3588
  %vm3599 = vcmp.eq.s32.totalorder %v651, %v3591
  %vm3600 = vcmp.eq.s32.totalorder %v651, %v3594
  %vm3601 = vcmp.eq.s32.totalorder %v651, %v3597
  %v3602 = vsel %vm3598, 1.0, 0.0
  %v3603 = vsel %vm3599, 1.0, 0.0
  %v3604 = vsel %vm3600, 1.0, 0.0
  %v3605 = vsel %vm3601, 1.0, 0.0
  %v3606 = vpack.c.bf16 %v3603, %v3602
  %v3607 = vpack.c.bf16 %v3605, %v3604
  %3608 = vmatprep.subr.bf16.mxu0 0
  %3609 = vmatpush1.bf16.msra.mxu0 %v2924
  %3610 = vmatprep.subr.bf16.mxu0 0
  %3611 = vmatpush1.bf16.msra.mxu0 %v2923
  %3612 = vmatprep.subr.bf16.mxu0 0
  %3613 = vmatpush1.bf16.msra.mxu0 %v2922
  %3614 = vmatprep.subr.bf16.mxu0 0
  %3615 = vmatpush1.bf16.msra.mxu0 %v2921
  %3616 = vmatprep.subr.bf16.mxu0 0
  %3617 = vmatpush1.bf16.msra.mxu0 %v2920
  %3618 = vmatprep.subr.bf16.mxu0 0
  %3619 = vmatpush1.bf16.msra.mxu0 %v2919
  %3620 = vmatprep.subr.bf16.mxu0 0
  %3621 = vmatpush1.bf16.msra.mxu0 %v2918
  %3622 = vmatprep.subr.bf16.mxu0 0
  %3623 = vmatpush1.bf16.msra.mxu0 %v2917
  %3624 = vmatprep.subr.bf16.mxu0 0
  %3625 = vmatpush2.bf16.msra.mxu0 0
  %3626 = vmatprep.subr.bf16.mxu0 0
  %3627 = vmatpush2.bf16.msra.mxu0 0
  %3628 = vmatprep.subr.bf16.mxu0 0
  %3629 = vmatpush2.bf16.msra.mxu0 0
  %3630 = vmatprep.subr.bf16.mxu0 0
  %3631 = vmatpush2.bf16.msra.mxu0 0
  %3632 = vmatprep.subr.bf16.mxu0 0
  %3633 = vmatpush2.bf16.msra.mxu0 0
  %3634 = vmatprep.subr.bf16.mxu0 0
  %3635 = vmatpush2.bf16.msra.mxu0 0
  %3636 = vmatprep.subr.bf16.mxu0 0
  %3637 = vmatpush2.bf16.msra.mxu0 0
  %3638 = vmatprep.subr.bf16.mxu0 0
  %3639 = vmatpush2.bf16.msra.mxu0 0
  %3640 = vmatprep.mubr.bf16.mxu0 0
  %3641 = vmatmul.mubr.bf16.gmra.mxu0 %v3606
  %v3642 = vpop.f32.mrf.mxu0
  %v3643 = vadd.f32 0.0, %v3642
  %v3644 = vpop.f32.mrf.mxu0
  %v3645 = vpop.f32.mrf.mxu0
  %v3646 = vadd.f32 0.0, %v3645
  %v3647 = vpop.f32.mrf.mxu0
  %3648 = vmatprep.mubr.bf16.mxu0 0
  %3649 = vmatmul.mubr.bf16.gmra.mxu0 %v3607
  %v3650 = vpop.f32.mrf.mxu0
  %v3651 = vadd.f32 0.0, %v3650
  %v3652 = vpop.f32.mrf.mxu0
  %v3653 = vpop.f32.mrf.mxu0
  %v3654 = vadd.f32 0.0, %v3653
  %v3655 = vpop.f32.mrf.mxu0
  %3656 = vdwg.mxu0
  %v3657 = vpack.c.bf16 %v3646, %v3643
  %v3658 = vpack.c.bf16 %v3654, %v3651
  %3659 = vset.pattern.permute.xlu0 10
  %3660 = vperm.xlu0 %3659, %v2925
  %v3661 = vpop.permute.xlu0 %3660
  %3662 = vset.pattern.permute.xlu0 10
  %3663 = vperm.xlu0 %3662, %v2926
  %v3664 = vpop.permute.xlu0 %3663
  %3665 = vset.pattern.permute.xlu0 10
  %3666 = vperm.xlu0 %3665, %v2927
  %v3667 = vpop.permute.xlu0 %3666
  %3668 = vset.pattern.permute.xlu0 10
  %3669 = vperm.xlu0 %3668, %v2928
  %v3670 = vpop.permute.xlu0 %3669
  %vm3671 = vcmp.eq.s32.totalorder %v651, %v3661
  %vm3672 = vcmp.eq.s32.totalorder %v651, %v3664
  %vm3673 = vcmp.eq.s32.totalorder %v651, %v3667
  %vm3674 = vcmp.eq.s32.totalorder %v651, %v3670
  %v3675 = vsel %vm3671, 1.0, 0.0
  %v3676 = vsel %vm3672, 1.0, 0.0
  %v3677 = vsel %vm3673, 1.0, 0.0
  %v3678 = vsel %vm3674, 1.0, 0.0
  %v3679 = vpack.c.bf16 %v3676, %v3675
  %v3680 = vpack.c.bf16 %v3678, %v3677
  %3681 = vmatprep.subr.bf16.mxu0 0
  %3682 = vmatpush1.bf16.msra.mxu0 %v2924
  %3683 = vmatprep.subr.bf16.mxu0 0
  %3684 = vmatpush1.bf16.msra.mxu0 %v2923
  %3685 = vmatprep.subr.bf16.mxu0 0
  %3686 = vmatpush1.bf16.msra.mxu0 %v2922
  %3687 = vmatprep.subr.bf16.mxu0 0
  %3688 = vmatpush1.bf16.msra.mxu0 %v2921
  %3689 = vmatprep.subr.bf16.mxu0 0
  %3690 = vmatpush1.bf16.msra.mxu0 %v2920
  %3691 = vmatprep.subr.bf16.mxu0 0
  %3692 = vmatpush1.bf16.msra.mxu0 %v2919
  %3693 = vmatprep.subr.bf16.mxu0 0
  %3694 = vmatpush1.bf16.msra.mxu0 %v2918
  %3695 = vmatprep.subr.bf16.mxu0 0
  %3696 = vmatpush1.bf16.msra.mxu0 %v2917
  %3697 = vmatprep.subr.bf16.mxu0 0
  %3698 = vmatpush2.bf16.msra.mxu0 0
  %3699 = vmatprep.subr.bf16.mxu0 0
  %3700 = vmatpush2.bf16.msra.mxu0 0
  %3701 = vmatprep.subr.bf16.mxu0 0
  %3702 = vmatpush2.bf16.msra.mxu0 0
  %3703 = vmatprep.subr.bf16.mxu0 0
  %3704 = vmatpush2.bf16.msra.mxu0 0
  %3705 = vmatprep.subr.bf16.mxu0 0
  %3706 = vmatpush2.bf16.msra.mxu0 0
  %3707 = vmatprep.subr.bf16.mxu0 0
  %3708 = vmatpush2.bf16.msra.mxu0 0
  %3709 = vmatprep.subr.bf16.mxu0 0
  %3710 = vmatpush2.bf16.msra.mxu0 0
  %3711 = vmatprep.subr.bf16.mxu0 0
  %3712 = vmatpush2.bf16.msra.mxu0 0
  %3713 = vmatprep.mubr.bf16.mxu0 0
  %3714 = vmatmul.mubr.bf16.gmra.mxu0 %v3679
  %v3715 = vpop.f32.mrf.mxu0
  %v3716 = vadd.f32 0.0, %v3715
  %v3717 = vpop.f32.mrf.mxu0
  %v3718 = vpop.f32.mrf.mxu0
  %v3719 = vadd.f32 0.0, %v3718
  %v3720 = vpop.f32.mrf.mxu0
  %3721 = vmatprep.mubr.bf16.mxu0 0
  %3722 = vmatmul.mubr.bf16.gmra.mxu0 %v3680
  %v3723 = vpop.f32.mrf.mxu0
  %v3724 = vadd.f32 0.0, %v3723
  %v3725 = vpop.f32.mrf.mxu0
  %v3726 = vpop.f32.mrf.mxu0
  %v3727 = vadd.f32 0.0, %v3726
  %v3728 = vpop.f32.mrf.mxu0
  %3729 = vdwg.mxu0
  %v3730 = vpack.c.bf16 %v3719, %v3716
  %v3731 = vpack.c.bf16 %v3727, %v3724
  %3732 = vset.pattern.permute.xlu0 11
  %3733 = vperm.xlu0 %3732, %v2925
  %v3734 = vpop.permute.xlu0 %3733
  %3735 = vset.pattern.permute.xlu0 11
  %3736 = vperm.xlu0 %3735, %v2926
  %v3737 = vpop.permute.xlu0 %3736
  %3738 = vset.pattern.permute.xlu0 11
  %3739 = vperm.xlu0 %3738, %v2927
  %v3740 = vpop.permute.xlu0 %3739
  %3741 = vset.pattern.permute.xlu0 11
  %3742 = vperm.xlu0 %3741, %v2928
  %v3743 = vpop.permute.xlu0 %3742
  %vm3744 = vcmp.eq.s32.totalorder %v651, %v3734
  %vm3745 = vcmp.eq.s32.totalorder %v651, %v3737
  %vm3746 = vcmp.eq.s32.totalorder %v651, %v3740
  %vm3747 = vcmp.eq.s32.totalorder %v651, %v3743
  %v3748 = vsel %vm3744, 1.0, 0.0
  %v3749 = vsel %vm3745, 1.0, 0.0
  %v3750 = vsel %vm3746, 1.0, 0.0
  %v3751 = vsel %vm3747, 1.0, 0.0
  %v3752 = vpack.c.bf16 %v3749, %v3748
  %v3753 = vpack.c.bf16 %v3751, %v3750
  %3754 = vmatprep.subr.bf16.mxu0 0
  %3755 = vmatpush1.bf16.msra.mxu0 %v2924
  %3756 = vmatprep.subr.bf16.mxu0 0
  %3757 = vmatpush1.bf16.msra.mxu0 %v2923
  %3758 = vmatprep.subr.bf16.mxu0 0
  %3759 = vmatpush1.bf16.msra.mxu0 %v2922
  %3760 = vmatprep.subr.bf16.mxu0 0
  %3761 = vmatpush1.bf16.msra.mxu0 %v2921
  %3762 = vmatprep.subr.bf16.mxu0 0
  %3763 = vmatpush1.bf16.msra.mxu0 %v2920
  %3764 = vmatprep.subr.bf16.mxu0 0
  %3765 = vmatpush1.bf16.msra.mxu0 %v2919
  %3766 = vmatprep.subr.bf16.mxu0 0
  %3767 = vmatpush1.bf16.msra.mxu0 %v2918
  %3768 = vmatprep.subr.bf16.mxu0 0
  %3769 = vmatpush1.bf16.msra.mxu0 %v2917
  %3770 = vmatprep.subr.bf16.mxu0 0
  %3771 = vmatpush2.bf16.msra.mxu0 0
  %3772 = vmatprep.subr.bf16.mxu0 0
  %3773 = vmatpush2.bf16.msra.mxu0 0
  %3774 = vmatprep.subr.bf16.mxu0 0
  %3775 = vmatpush2.bf16.msra.mxu0 0
  %3776 = vmatprep.subr.bf16.mxu0 0
  %3777 = vmatpush2.bf16.msra.mxu0 0
  %3778 = vmatprep.subr.bf16.mxu0 0
  %3779 = vmatpush2.bf16.msra.mxu0 0
  %3780 = vmatprep.subr.bf16.mxu0 0
  %3781 = vmatpush2.bf16.msra.mxu0 0
  %3782 = vmatprep.subr.bf16.mxu0 0
  %3783 = vmatpush2.bf16.msra.mxu0 0
  %3784 = vmatprep.subr.bf16.mxu0 0
  %3785 = vmatpush2.bf16.msra.mxu0 0
  %3786 = vmatprep.mubr.bf16.mxu0 0
  %3787 = vmatmul.mubr.bf16.gmra.mxu0 %v3752
  %v3788 = vpop.f32.mrf.mxu0
  %v3789 = vadd.f32 0.0, %v3788
  %v3790 = vpop.f32.mrf.mxu0
  %v3791 = vpop.f32.mrf.mxu0
  %v3792 = vadd.f32 0.0, %v3791
  %v3793 = vpop.f32.mrf.mxu0
  %3794 = vmatprep.mubr.bf16.mxu0 0
  %3795 = vmatmul.mubr.bf16.gmra.mxu0 %v3753
  %v3796 = vpop.f32.mrf.mxu0
  %v3797 = vadd.f32 0.0, %v3796
  %v3798 = vpop.f32.mrf.mxu0
  %v3799 = vpop.f32.mrf.mxu0
  %v3800 = vadd.f32 0.0, %v3799
  %v3801 = vpop.f32.mrf.mxu0
  %3802 = vdwg.mxu0
  %v3803 = vpack.c.bf16 %v3792, %v3789
  %v3804 = vpack.c.bf16 %v3800, %v3797
  %3805 = vset.pattern.permute.xlu0 12
  %3806 = vperm.xlu0 %3805, %v2925
  %v3807 = vpop.permute.xlu0 %3806
  %3808 = vset.pattern.permute.xlu0 12
  %3809 = vperm.xlu0 %3808, %v2926
  %v3810 = vpop.permute.xlu0 %3809
  %3811 = vset.pattern.permute.xlu0 12
  %3812 = vperm.xlu0 %3811, %v2927
  %v3813 = vpop.permute.xlu0 %3812
  %3814 = vset.pattern.permute.xlu0 12
  %3815 = vperm.xlu0 %3814, %v2928
  %v3816 = vpop.permute.xlu0 %3815
  %vm3817 = vcmp.eq.s32.totalorder %v651, %v3807
  %vm3818 = vcmp.eq.s32.totalorder %v651, %v3810
  %vm3819 = vcmp.eq.s32.totalorder %v651, %v3813
  %vm3820 = vcmp.eq.s32.totalorder %v651, %v3816
  %v3821 = vsel %vm3817, 1.0, 0.0
  %v3822 = vsel %vm3818, 1.0, 0.0
  %v3823 = vsel %vm3819, 1.0, 0.0
  %v3824 = vsel %vm3820, 1.0, 0.0
  %v3825 = vpack.c.bf16 %v3822, %v3821
  %v3826 = vpack.c.bf16 %v3824, %v3823
  %3827 = vmatprep.subr.bf16.mxu0 0
  %3828 = vmatpush1.bf16.msra.mxu0 %v2924
  %3829 = vmatprep.subr.bf16.mxu0 0
  %3830 = vmatpush1.bf16.msra.mxu0 %v2923
  %3831 = vmatprep.subr.bf16.mxu0 0
  %3832 = vmatpush1.bf16.msra.mxu0 %v2922
  %3833 = vmatprep.subr.bf16.mxu0 0
  %3834 = vmatpush1.bf16.msra.mxu0 %v2921
  %3835 = vmatprep.subr.bf16.mxu0 0
  %3836 = vmatpush1.bf16.msra.mxu0 %v2920
  %3837 = vmatprep.subr.bf16.mxu0 0
  %3838 = vmatpush1.bf16.msra.mxu0 %v2919
  %3839 = vmatprep.subr.bf16.mxu0 0
  %3840 = vmatpush1.bf16.msra.mxu0 %v2918
  %3841 = vmatprep.subr.bf16.mxu0 0
  %3842 = vmatpush1.bf16.msra.mxu0 %v2917
  %3843 = vmatprep.subr.bf16.mxu0 0
  %3844 = vmatpush2.bf16.msra.mxu0 0
  %3845 = vmatprep.subr.bf16.mxu0 0
  %3846 = vmatpush2.bf16.msra.mxu0 0
  %3847 = vmatprep.subr.bf16.mxu0 0
  %3848 = vmatpush2.bf16.msra.mxu0 0
  %3849 = vmatprep.subr.bf16.mxu0 0
  %3850 = vmatpush2.bf16.msra.mxu0 0
  %3851 = vmatprep.subr.bf16.mxu0 0
  %3852 = vmatpush2.bf16.msra.mxu0 0
  %3853 = vmatprep.subr.bf16.mxu0 0
  %3854 = vmatpush2.bf16.msra.mxu0 0
  %3855 = vmatprep.subr.bf16.mxu0 0
  %3856 = vmatpush2.bf16.msra.mxu0 0
  %3857 = vmatprep.subr.bf16.mxu0 0
  %3858 = vmatpush2.bf16.msra.mxu0 0
  %3859 = vmatprep.mubr.bf16.mxu0 0
  %3860 = vmatmul.mubr.bf16.gmra.mxu0 %v3825
  %v3861 = vpop.f32.mrf.mxu0
  %v3862 = vadd.f32 0.0, %v3861
  %v3863 = vpop.f32.mrf.mxu0
  %v3864 = vpop.f32.mrf.mxu0
  %v3865 = vadd.f32 0.0, %v3864
  %v3866 = vpop.f32.mrf.mxu0
  %3867 = vmatprep.mubr.bf16.mxu0 0
  %3868 = vmatmul.mubr.bf16.gmra.mxu0 %v3826
  %v3869 = vpop.f32.mrf.mxu0
  %v3870 = vadd.f32 0.0, %v3869
  %v3871 = vpop.f32.mrf.mxu0
  %v3872 = vpop.f32.mrf.mxu0
  %v3873 = vadd.f32 0.0, %v3872
  %v3874 = vpop.f32.mrf.mxu0
  %3875 = vdwg.mxu0
  %v3876 = vpack.c.bf16 %v3865, %v3862
  %v3877 = vpack.c.bf16 %v3873, %v3870
  %3878 = vset.pattern.permute.xlu0 13
  %3879 = vperm.xlu0 %3878, %v2925
  %v3880 = vpop.permute.xlu0 %3879
  %3881 = vset.pattern.permute.xlu0 13
  %3882 = vperm.xlu0 %3881, %v2926
  %v3883 = vpop.permute.xlu0 %3882
  %3884 = vset.pattern.permute.xlu0 13
  %3885 = vperm.xlu0 %3884, %v2927
  %v3886 = vpop.permute.xlu0 %3885
  %3887 = vset.pattern.permute.xlu0 13
  %3888 = vperm.xlu0 %3887, %v2928
  %v3889 = vpop.permute.xlu0 %3888
  %vm3890 = vcmp.eq.s32.totalorder %v651, %v3880
  %vm3891 = vcmp.eq.s32.totalorder %v651, %v3883
  %vm3892 = vcmp.eq.s32.totalorder %v651, %v3886
  %vm3893 = vcmp.eq.s32.totalorder %v651, %v3889
  %v3894 = vsel %vm3890, 1.0, 0.0
  %v3895 = vsel %vm3891, 1.0, 0.0
  %v3896 = vsel %vm3892, 1.0, 0.0
  %v3897 = vsel %vm3893, 1.0, 0.0
  %v3898 = vpack.c.bf16 %v3895, %v3894
  %v3899 = vpack.c.bf16 %v3897, %v3896
  %3900 = vmatprep.subr.bf16.mxu0 0
  %3901 = vmatpush1.bf16.msra.mxu0 %v2924
  %3902 = vmatprep.subr.bf16.mxu0 0
  %3903 = vmatpush1.bf16.msra.mxu0 %v2923
  %3904 = vmatprep.subr.bf16.mxu0 0
  %3905 = vmatpush1.bf16.msra.mxu0 %v2922
  %3906 = vmatprep.subr.bf16.mxu0 0
  %3907 = vmatpush1.bf16.msra.mxu0 %v2921
  %3908 = vmatprep.subr.bf16.mxu0 0
  %3909 = vmatpush1.bf16.msra.mxu0 %v2920
  %3910 = vmatprep.subr.bf16.mxu0 0
  %3911 = vmatpush1.bf16.msra.mxu0 %v2919
  %3912 = vmatprep.subr.bf16.mxu0 0
  %3913 = vmatpush1.bf16.msra.mxu0 %v2918
  %3914 = vmatprep.subr.bf16.mxu0 0
  %3915 = vmatpush1.bf16.msra.mxu0 %v2917
  %3916 = vmatprep.subr.bf16.mxu0 0
  %3917 = vmatpush2.bf16.msra.mxu0 0
  %3918 = vmatprep.subr.bf16.mxu0 0
  %3919 = vmatpush2.bf16.msra.mxu0 0
  %3920 = vmatprep.subr.bf16.mxu0 0
  %3921 = vmatpush2.bf16.msra.mxu0 0
  %3922 = vmatprep.subr.bf16.mxu0 0
  %3923 = vmatpush2.bf16.msra.mxu0 0
  %3924 = vmatprep.subr.bf16.mxu0 0
  %3925 = vmatpush2.bf16.msra.mxu0 0
  %3926 = vmatprep.subr.bf16.mxu0 0
  %3927 = vmatpush2.bf16.msra.mxu0 0
  %3928 = vmatprep.subr.bf16.mxu0 0
  %3929 = vmatpush2.bf16.msra.mxu0 0
  %3930 = vmatprep.subr.bf16.mxu0 0
  %3931 = vmatpush2.bf16.msra.mxu0 0
  %3932 = vmatprep.mubr.bf16.mxu0 0
  %3933 = vmatmul.mubr.bf16.gmra.mxu0 %v3898
  %v3934 = vpop.f32.mrf.mxu0
  %v3935 = vadd.f32 0.0, %v3934
  %v3936 = vpop.f32.mrf.mxu0
  %v3937 = vpop.f32.mrf.mxu0
  %v3938 = vadd.f32 0.0, %v3937
  %v3939 = vpop.f32.mrf.mxu0
  %3940 = vmatprep.mubr.bf16.mxu0 0
  %3941 = vmatmul.mubr.bf16.gmra.mxu0 %v3899
  %v3942 = vpop.f32.mrf.mxu0
  %v3943 = vadd.f32 0.0, %v3942
  %v3944 = vpop.f32.mrf.mxu0
  %v3945 = vpop.f32.mrf.mxu0
  %v3946 = vadd.f32 0.0, %v3945
  %v3947 = vpop.f32.mrf.mxu0
  %3948 = vdwg.mxu0
  %v3949 = vpack.c.bf16 %v3938, %v3935
  %v3950 = vpack.c.bf16 %v3946, %v3943
  %3951 = vset.pattern.permute.xlu0 14
  %3952 = vperm.xlu0 %3951, %v2925
  %v3953 = vpop.permute.xlu0 %3952
  %3954 = vset.pattern.permute.xlu0 14
  %3955 = vperm.xlu0 %3954, %v2926
  %v3956 = vpop.permute.xlu0 %3955
  %3957 = vset.pattern.permute.xlu0 14
  %3958 = vperm.xlu0 %3957, %v2927
  %v3959 = vpop.permute.xlu0 %3958
  %3960 = vset.pattern.permute.xlu0 14
  %3961 = vperm.xlu0 %3960, %v2928
  %v3962 = vpop.permute.xlu0 %3961
  %vm3963 = vcmp.eq.s32.totalorder %v651, %v3953
  %vm3964 = vcmp.eq.s32.totalorder %v651, %v3956
  %vm3965 = vcmp.eq.s32.totalorder %v651, %v3959
  %vm3966 = vcmp.eq.s32.totalorder %v651, %v3962
  %v3967 = vsel %vm3963, 1.0, 0.0
  %v3968 = vsel %vm3964, 1.0, 0.0
  %v3969 = vsel %vm3965, 1.0, 0.0
  %v3970 = vsel %vm3966, 1.0, 0.0
  %v3971 = vpack.c.bf16 %v3968, %v3967
  %v3972 = vpack.c.bf16 %v3970, %v3969
  %3973 = vmatprep.subr.bf16.mxu0 0
  %3974 = vmatpush1.bf16.msra.mxu0 %v2924
  %3975 = vmatprep.subr.bf16.mxu0 0
  %3976 = vmatpush1.bf16.msra.mxu0 %v2923
  %3977 = vmatprep.subr.bf16.mxu0 0
  %3978 = vmatpush1.bf16.msra.mxu0 %v2922
  %3979 = vmatprep.subr.bf16.mxu0 0
  %3980 = vmatpush1.bf16.msra.mxu0 %v2921
  %3981 = vmatprep.subr.bf16.mxu0 0
  %3982 = vmatpush1.bf16.msra.mxu0 %v2920
  %3983 = vmatprep.subr.bf16.mxu0 0
  %3984 = vmatpush1.bf16.msra.mxu0 %v2919
  %3985 = vmatprep.subr.bf16.mxu0 0
  %3986 = vmatpush1.bf16.msra.mxu0 %v2918
  %3987 = vmatprep.subr.bf16.mxu0 0
  %3988 = vmatpush1.bf16.msra.mxu0 %v2917
  %3989 = vmatprep.subr.bf16.mxu0 0
  %3990 = vmatpush2.bf16.msra.mxu0 0
  %3991 = vmatprep.subr.bf16.mxu0 0
  %3992 = vmatpush2.bf16.msra.mxu0 0
  %3993 = vmatprep.subr.bf16.mxu0 0
  %3994 = vmatpush2.bf16.msra.mxu0 0
  %3995 = vmatprep.subr.bf16.mxu0 0
  %3996 = vmatpush2.bf16.msra.mxu0 0
  %3997 = vmatprep.subr.bf16.mxu0 0
  %3998 = vmatpush2.bf16.msra.mxu0 0
  %3999 = vmatprep.subr.bf16.mxu0 0
  %4000 = vmatpush2.bf16.msra.mxu0 0
  %4001 = vmatprep.subr.bf16.mxu0 0
  %4002 = vmatpush2.bf16.msra.mxu0 0
  %4003 = vmatprep.subr.bf16.mxu0 0
  %4004 = vmatpush2.bf16.msra.mxu0 0
  %4005 = vmatprep.mubr.bf16.mxu0 0
  %4006 = vmatmul.mubr.bf16.gmra.mxu0 %v3971
  %v4007 = vpop.f32.mrf.mxu0
  %v4008 = vadd.f32 0.0, %v4007
  %v4009 = vpop.f32.mrf.mxu0
  %v4010 = vpop.f32.mrf.mxu0
  %v4011 = vadd.f32 0.0, %v4010
  %v4012 = vpop.f32.mrf.mxu0
  %4013 = vmatprep.mubr.bf16.mxu0 0
  %4014 = vmatmul.mubr.bf16.gmra.mxu0 %v3972
  %v4015 = vpop.f32.mrf.mxu0
  %v4016 = vadd.f32 0.0, %v4015
  %v4017 = vpop.f32.mrf.mxu0
  %v4018 = vpop.f32.mrf.mxu0
  %v4019 = vadd.f32 0.0, %v4018
  %v4020 = vpop.f32.mrf.mxu0
  %4021 = vdwg.mxu0
  %v4022 = vpack.c.bf16 %v4011, %v4008
  %v4023 = vpack.c.bf16 %v4019, %v4016
  %4024 = vset.pattern.permute.xlu0 15
  %4025 = vperm.xlu0 %4024, %v2925
  %v4026 = vpop.permute.xlu0 %4025
  %4027 = vset.pattern.permute.xlu0 15
  %4028 = vperm.xlu0 %4027, %v2926
  %v4029 = vpop.permute.xlu0 %4028
  %4030 = vset.pattern.permute.xlu0 15
  %4031 = vperm.xlu0 %4030, %v2927
  %v4032 = vpop.permute.xlu0 %4031
  %4033 = vset.pattern.permute.xlu0 15
  %4034 = vperm.xlu0 %4033, %v2928
  %v4035 = vpop.permute.xlu0 %4034
  %vm4036 = vcmp.eq.s32.totalorder %v651, %v4026
  %vm4037 = vcmp.eq.s32.totalorder %v651, %v4029
  %vm4038 = vcmp.eq.s32.totalorder %v651, %v4032
  %vm4039 = vcmp.eq.s32.totalorder %v651, %v4035
  %v4040 = vsel %vm4036, 1.0, 0.0
  %v4041 = vsel %vm4037, 1.0, 0.0
  %v4042 = vsel %vm4038, 1.0, 0.0
  %v4043 = vsel %vm4039, 1.0, 0.0
  %v4044 = vpack.c.bf16 %v4041, %v4040
  %v4045 = vpack.c.bf16 %v4043, %v4042
  %4046 = vmatprep.subr.bf16.mxu0 0
  %4047 = vmatpush1.bf16.msra.mxu0 %v2924
  %4048 = vmatprep.subr.bf16.mxu0 0
  %4049 = vmatpush1.bf16.msra.mxu0 %v2923
  %4050 = vmatprep.subr.bf16.mxu0 0
  %4051 = vmatpush1.bf16.msra.mxu0 %v2922
  %4052 = vmatprep.subr.bf16.mxu0 0
  %4053 = vmatpush1.bf16.msra.mxu0 %v2921
  %4054 = vmatprep.subr.bf16.mxu0 0
  %4055 = vmatpush1.bf16.msra.mxu0 %v2920
  %4056 = vmatprep.subr.bf16.mxu0 0
  %4057 = vmatpush1.bf16.msra.mxu0 %v2919
  %4058 = vmatprep.subr.bf16.mxu0 0
  %4059 = vmatpush1.bf16.msra.mxu0 %v2918
  %4060 = vmatprep.subr.bf16.mxu0 0
  %4061 = vmatpush1.bf16.msra.mxu0 %v2917
  %4062 = vmatprep.subr.bf16.mxu0 0
  %4063 = vmatpush2.bf16.msra.mxu0 0
  %4064 = vmatprep.subr.bf16.mxu0 0
  %4065 = vmatpush2.bf16.msra.mxu0 0
  %4066 = vmatprep.subr.bf16.mxu0 0
  %4067 = vmatpush2.bf16.msra.mxu0 0
  %4068 = vmatprep.subr.bf16.mxu0 0
  %4069 = vmatpush2.bf16.msra.mxu0 0
  %4070 = vmatprep.subr.bf16.mxu0 0
  %4071 = vmatpush2.bf16.msra.mxu0 0
  %4072 = vmatprep.subr.bf16.mxu0 0
  %4073 = vmatpush2.bf16.msra.mxu0 0
  %4074 = vmatprep.subr.bf16.mxu0 0
  %4075 = vmatpush2.bf16.msra.mxu0 0
  %4076 = vmatprep.subr.bf16.mxu0 0
  %4077 = vmatpush2.bf16.msra.mxu0 0
  %4078 = vmatprep.mubr.bf16.mxu0 0
  %4079 = vmatmul.mubr.bf16.gmra.mxu0 %v4044
  %v4080 = vpop.f32.mrf.mxu0
  %v4081 = vadd.f32 0.0, %v4080
  %v4082 = vpop.f32.mrf.mxu0
  %v4083 = vpop.f32.mrf.mxu0
  %v4084 = vadd.f32 0.0, %v4083
  %v4085 = vpop.f32.mrf.mxu0
  %4086 = vmatprep.mubr.bf16.mxu0 0
  %4087 = vmatmul.mubr.bf16.gmra.mxu0 %v4045
  %v4088 = vpop.f32.mrf.mxu0
  %v4089 = vadd.f32 0.0, %v4088
  %v4090 = vpop.f32.mrf.mxu0
  %v4091 = vpop.f32.mrf.mxu0
  %v4092 = vadd.f32 0.0, %v4091
  %v4093 = vpop.f32.mrf.mxu0
  %4094 = vdwg.mxu0
  %v4095 = vpack.c.bf16 %v4084, %v4081
  %v4096 = vpack.c.bf16 %v4092, %v4089
  %4099 = vrot.lane.b32.xlu0 %v3073, 64
  %v4100 = vpop.permute.xlu0 %4099
  %4101 = vrot.lane.b32.xlu0 %v3074, 64
  %v4102 = vpop.permute.xlu0 %4101
  %4105 = vrot.lane.b32.xlu0 %v3219, 64
  %v4106 = vpop.permute.xlu0 %4105
  %4107 = vrot.lane.b32.xlu0 %v3220, 64
  %v4108 = vpop.permute.xlu0 %4107
  %4111 = vrot.lane.b32.xlu0 %v3365, 64
  %v4112 = vpop.permute.xlu0 %4111
  %4113 = vrot.lane.b32.xlu0 %v3366, 64
  %v4114 = vpop.permute.xlu0 %4113
  %4117 = vrot.lane.b32.xlu0 %v3511, 64
  %v4118 = vpop.permute.xlu0 %4117
  %4119 = vrot.lane.b32.xlu0 %v3512, 64
  %v4120 = vpop.permute.xlu0 %4119
  %4123 = vrot.lane.b32.xlu0 %v3657, 64
  %v4124 = vpop.permute.xlu0 %4123
  %4125 = vrot.lane.b32.xlu0 %v3658, 64
  %v4126 = vpop.permute.xlu0 %4125
  %4129 = vrot.lane.b32.xlu0 %v3803, 64
  %v4130 = vpop.permute.xlu0 %4129
  %4131 = vrot.lane.b32.xlu0 %v3804, 64
  %v4132 = vpop.permute.xlu0 %4131
  %4135 = vrot.lane.b32.xlu0 %v3949, 64
  %v4136 = vpop.permute.xlu0 %4135
  %4137 = vrot.lane.b32.xlu0 %v3950, 64
  %v4138 = vpop.permute.xlu0 %4137
  %4141 = vrot.lane.b32.xlu0 %v4095, 64
  %v4142 = vpop.permute.xlu0 %4141
  %4143 = vrot.lane.b32.xlu0 %v4096, 64
  %v4144 = vpop.permute.xlu0 %4143
  %v4147 = vsel %vm2509, %v3000, %v4100
  %v4151 = vsel %vm2509, %v3001, %v4102
  %v4155 = vsel %vm2509, %v3146, %v4106
  %v4159 = vsel %vm2509, %v3147, %v4108
  %v4163 = vsel %vm2509, %v3292, %v4112
  %v4167 = vsel %vm2509, %v3293, %v4114
  %v4171 = vsel %vm2509, %v3438, %v4118
  %v4175 = vsel %vm2509, %v3439, %v4120
  %v4179 = vsel %vm2509, %v3584, %v4124
  %v4183 = vsel %vm2509, %v3585, %v4126
  %v4187 = vsel %vm2509, %v3730, %v4130
  %v4191 = vsel %vm2509, %v3731, %v4132
  %v4195 = vsel %vm2509, %v3876, %v4136
  %v4199 = vsel %vm2509, %v3877, %v4138
  %v4203 = vsel %vm2509, %v4022, %v4142
  %v4207 = vsel %vm2509, %v4023, %v4144
  %v4209 = vld [vmem:[%s7] sm:$0xf]
  %v4210 = vld [vmem:[%s7 + $0x4] sm:$0xf]
  %v4211 = vld [vmem:[%s7 + $0x8] sm:$0xf]
  %v4212 = vld [vmem:[%s7 + $0xc] sm:$0xf]
  %v4213 = vld [vmem:[%s7 + $0x10] sm:$0xf]
  %v4214 = vld [vmem:[%s7 + $0x14] sm:$0xf]
  %v4215 = vld [vmem:[%s7 + $0x18] sm:$0xf]
  %v4216 = vld [vmem:[%s7 + $0x1c] sm:$0xf]
  %v4217 = vld [vmem:[%s7 + $0x20] sm:$0xf]
  %v4218 = vld [vmem:[%s7 + $0x24] sm:$0xf]
  %v4219 = vld [vmem:[%s7 + $0x28] sm:$0xf]
  %v4220 = vld [vmem:[%s7 + $0x2c] sm:$0xf]
  %v4221 = vld [vmem:[%s7 + $0x30] sm:$0xf]
  %v4222 = vld [vmem:[%s7 + $0x34] sm:$0xf]
  %v4223 = vld [vmem:[%s7 + $0x38] sm:$0xf]
  %v4224 = vld [vmem:[%s7 + $0x3c] sm:$0xf]
  %v4225 = vld [vmem:[%s7 + $0x40] sm:$0xf]
  %v4226 = vld [vmem:[%s7 + $0x44] sm:$0xf]
  %v4227 = vld [vmem:[%s7 + $0x48] sm:$0xf]
  %v4228 = vld [vmem:[%s7 + $0x4c] sm:$0xf]
  %v4229 = vld [vmem:[%s7 + $0x50] sm:$0xf]
  %v4230 = vld [vmem:[%s7 + $0x54] sm:$0xf]
  %v4231 = vld [vmem:[%s7 + $0x58] sm:$0xf]
  %v4232 = vld [vmem:[%s7 + $0x5c] sm:$0xf]
  %v4233 = vld [vmem:[%s7 + $0x60] sm:$0xf]
  %v4234 = vld [vmem:[%s7 + $0x64] sm:$0xf]
  %v4235 = vld [vmem:[%s7 + $0x68] sm:$0xf]
  %v4236 = vld [vmem:[%s7 + $0x6c] sm:$0xf]
  %v4237 = vld [vmem:[%s7 + $0x70] sm:$0xf]
  %v4238 = vld [vmem:[%s7 + $0x74] sm:$0xf]
  %v4239 = vld [vmem:[%s7 + $0x78] sm:$0xf]
  %v4240 = vld [vmem:[%s7 + $0x7c] sm:$0xf]
  %v4241 = vld [vmem:[%s7 + $0x80] sm:$0xf]
  %v4242 = vld [vmem:[%s7 + $0x84] sm:$0xf]
  %v4243 = vld [vmem:[%s7 + $0x88] sm:$0xf]
  %v4244 = vld [vmem:[%s7 + $0x8c] sm:$0xf]
  %v4245 = vld [vmem:[%s7 + $0x90] sm:$0xf]
  %v4246 = vld [vmem:[%s7 + $0x94] sm:$0xf]
  %v4247 = vld [vmem:[%s7 + $0x98] sm:$0xf]
  %v4248 = vld [vmem:[%s7 + $0x9c] sm:$0xf]
  %v4249 = vld [vmem:[%s7 + $0xa0] sm:$0xf]
  %v4250 = vld [vmem:[%s7 + $0xa4] sm:$0xf]
  %v4251 = vld [vmem:[%s7 + $0xa8] sm:$0xf]
  %v4252 = vld [vmem:[%s7 + $0xac] sm:$0xf]
  %v4253 = vld [vmem:[%s7 + $0xb0] sm:$0xf]
  %v4254 = vld [vmem:[%s7 + $0xb4] sm:$0xf]
  %v4255 = vld [vmem:[%s7 + $0xb8] sm:$0xf]
  %v4256 = vld [vmem:[%s7 + $0xbc] sm:$0xf]
  %v4257 = vld [vmem:[%s7 + $0xc0] sm:$0xf]
  %v4258 = vld [vmem:[%s7 + $0xc4] sm:$0xf]
  %v4259 = vld [vmem:[%s7 + $0xc8] sm:$0xf]
  %v4260 = vld [vmem:[%s7 + $0xcc] sm:$0xf]
  %v4261 = vld [vmem:[%s7 + $0xd0] sm:$0xf]
  %v4262 = vld [vmem:[%s7 + $0xd4] sm:$0xf]
  %v4263 = vld [vmem:[%s7 + $0xd8] sm:$0xf]
  %v4264 = vld [vmem:[%s7 + $0xdc] sm:$0xf]
  %v4265 = vld [vmem:[%s7 + $0xe0] sm:$0xf]
  %v4266 = vld [vmem:[%s7 + $0xe4] sm:$0xf]
  %v4267 = vld [vmem:[%s7 + $0xe8] sm:$0xf]
  %v4268 = vld [vmem:[%s7 + $0xec] sm:$0xf]
  %v4269 = vld [vmem:[%s7 + $0xf0] sm:$0xf]
  %v4270 = vld [vmem:[%s7 + $0xf4] sm:$0xf]
  %v4271 = vld [vmem:[%s7 + $0xf8] sm:$0xf]
  %v4272 = vld [vmem:[%s7 + $0xfc] sm:$0xf]
  %v4273 = vld [vmem:[%s7 + $0x100] sm:$0xf]
  %v4274 = vld [vmem:[%s7 + $0x104] sm:$0xf]
  %v4275 = vld [vmem:[%s7 + $0x108] sm:$0xf]
  %v4276 = vld [vmem:[%s7 + $0x10c] sm:$0xf]
  %v4277 = vld [vmem:[%s7 + $0x110] sm:$0xf]
  %v4278 = vld [vmem:[%s7 + $0x114] sm:$0xf]
  %v4279 = vld [vmem:[%s7 + $0x118] sm:$0xf]
  %v4280 = vld [vmem:[%s7 + $0x11c] sm:$0xf]
  %v4281 = vld [vmem:[%s7 + $0x120] sm:$0xf]
  %v4282 = vld [vmem:[%s7 + $0x124] sm:$0xf]
  %v4283 = vld [vmem:[%s7 + $0x128] sm:$0xf]
  %v4284 = vld [vmem:[%s7 + $0x12c] sm:$0xf]
  %v4285 = vld [vmem:[%s7 + $0x130] sm:$0xf]
  %v4286 = vld [vmem:[%s7 + $0x134] sm:$0xf]
  %v4287 = vld [vmem:[%s7 + $0x138] sm:$0xf]
  %v4288 = vld [vmem:[%s7 + $0x13c] sm:$0xf]
  %v4289 = vld [vmem:[%s7 + $0x140] sm:$0xf]
  %v4290 = vld [vmem:[%s7 + $0x144] sm:$0xf]
  %v4291 = vld [vmem:[%s7 + $0x148] sm:$0xf]
  %v4292 = vld [vmem:[%s7 + $0x14c] sm:$0xf]
  %v4293 = vld [vmem:[%s7 + $0x150] sm:$0xf]
  %v4294 = vld [vmem:[%s7 + $0x154] sm:$0xf]
  %v4295 = vld [vmem:[%s7 + $0x158] sm:$0xf]
  %v4296 = vld [vmem:[%s7 + $0x15c] sm:$0xf]
  %v4297 = vld [vmem:[%s7 + $0x160] sm:$0xf]
  %v4298 = vld [vmem:[%s7 + $0x164] sm:$0xf]
  %v4299 = vld [vmem:[%s7 + $0x168] sm:$0xf]
  %v4300 = vld [vmem:[%s7 + $0x16c] sm:$0xf]
  %v4301 = vld [vmem:[%s7 + $0x170] sm:$0xf]
  %v4302 = vld [vmem:[%s7 + $0x174] sm:$0xf]
  %v4303 = vld [vmem:[%s7 + $0x178] sm:$0xf]
  %v4304 = vld [vmem:[%s7 + $0x17c] sm:$0xf]
  %v4305 = vld [vmem:[%s7 + $0x180] sm:$0xf]
  %v4306 = vld [vmem:[%s7 + $0x184] sm:$0xf]
  %v4307 = vld [vmem:[%s7 + $0x188] sm:$0xf]
  %v4308 = vld [vmem:[%s7 + $0x18c] sm:$0xf]
  %v4309 = vld [vmem:[%s7 + $0x190] sm:$0xf]
  %v4310 = vld [vmem:[%s7 + $0x194] sm:$0xf]
  %v4311 = vld [vmem:[%s7 + $0x198] sm:$0xf]
  %v4312 = vld [vmem:[%s7 + $0x19c] sm:$0xf]
  %v4313 = vld [vmem:[%s7 + $0x1a0] sm:$0xf]
  %v4314 = vld [vmem:[%s7 + $0x1a4] sm:$0xf]
  %v4315 = vld [vmem:[%s7 + $0x1a8] sm:$0xf]
  %v4316 = vld [vmem:[%s7 + $0x1ac] sm:$0xf]
  %v4317 = vld [vmem:[%s7 + $0x1b0] sm:$0xf]
  %v4318 = vld [vmem:[%s7 + $0x1b4] sm:$0xf]
  %v4319 = vld [vmem:[%s7 + $0x1b8] sm:$0xf]
  %v4320 = vld [vmem:[%s7 + $0x1bc] sm:$0xf]
  %v4321 = vld [vmem:[%s7 + $0x1c0] sm:$0xf]
  %v4322 = vld [vmem:[%s7 + $0x1c4] sm:$0xf]
  %v4323 = vld [vmem:[%s7 + $0x1c8] sm:$0xf]
  %v4324 = vld [vmem:[%s7 + $0x1cc] sm:$0xf]
  %v4325 = vld [vmem:[%s7 + $0x1d0] sm:$0xf]
  %v4326 = vld [vmem:[%s7 + $0x1d4] sm:$0xf]
  %v4327 = vld [vmem:[%s7 + $0x1d8] sm:$0xf]
  %v4328 = vld [vmem:[%s7 + $0x1dc] sm:$0xf]
  %v4329 = vld [vmem:[%s7 + $0x1e0] sm:$0xf]
  %v4330 = vld [vmem:[%s7 + $0x1e4] sm:$0xf]
  %v4331 = vld [vmem:[%s7 + $0x1e8] sm:$0xf]
  %v4332 = vld [vmem:[%s7 + $0x1ec] sm:$0xf]
  %v4333 = vld [vmem:[%s7 + $0x1f0] sm:$0xf]
  %v4334 = vld [vmem:[%s7 + $0x1f4] sm:$0xf]
  %v4335 = vld [vmem:[%s7 + $0x1f8] sm:$0xf]
  %v4336 = vld [vmem:[%s7 + $0x1fc] sm:$0xf]
  %v4465 = vunpack.c.l.b16 %v4209
  %v4466 = vunpack.c.l.b16 %v4210
  %v4467 = vunpack.c.l.b16 %v4211
  %v4468 = vunpack.c.l.b16 %v4212
  %v4469 = vunpack.c.l.b16 %v4213
  %v4470 = vunpack.c.l.b16 %v4214
  %v4471 = vunpack.c.l.b16 %v4215
  %v4472 = vunpack.c.l.b16 %v4216
  %v4473 = vunpack.c.l.b16 %v4217
  %v4474 = vunpack.c.l.b16 %v4218
  %v4475 = vunpack.c.l.b16 %v4219
  %v4476 = vunpack.c.l.b16 %v4220
  %v4477 = vunpack.c.l.b16 %v4221
  %v4478 = vunpack.c.l.b16 %v4222
  %v4479 = vunpack.c.l.b16 %v4223
  %v4480 = vunpack.c.l.b16 %v4224
  %v4481 = vunpack.c.l.b16 %v4225
  %v4482 = vunpack.c.l.b16 %v4226
  %v4483 = vunpack.c.l.b16 %v4227
  %v4484 = vunpack.c.l.b16 %v4228
  %v4485 = vunpack.c.l.b16 %v4229
  %v4486 = vunpack.c.l.b16 %v4230
  %v4487 = vunpack.c.l.b16 %v4231
  %v4488 = vunpack.c.l.b16 %v4232
  %v4489 = vunpack.c.l.b16 %v4233
  %v4490 = vunpack.c.l.b16 %v4234
  %v4491 = vunpack.c.l.b16 %v4235
  %v4492 = vunpack.c.l.b16 %v4236
  %v4493 = vunpack.c.l.b16 %v4237
  %v4494 = vunpack.c.l.b16 %v4238
  %v4495 = vunpack.c.l.b16 %v4239
  %v4496 = vunpack.c.l.b16 %v4240
  %v4497 = vunpack.c.l.b16 %v4241
  %v4498 = vunpack.c.l.b16 %v4242
  %v4499 = vunpack.c.l.b16 %v4243
  %v4500 = vunpack.c.l.b16 %v4244
  %v4501 = vunpack.c.l.b16 %v4245
  %v4502 = vunpack.c.l.b16 %v4246
  %v4503 = vunpack.c.l.b16 %v4247
  %v4504 = vunpack.c.l.b16 %v4248
  %v4505 = vunpack.c.l.b16 %v4249
  %v4506 = vunpack.c.l.b16 %v4250
  %v4507 = vunpack.c.l.b16 %v4251
  %v4508 = vunpack.c.l.b16 %v4252
  %v4509 = vunpack.c.l.b16 %v4253
  %v4510 = vunpack.c.l.b16 %v4254
  %v4511 = vunpack.c.l.b16 %v4255
  %v4512 = vunpack.c.l.b16 %v4256
  %v4513 = vunpack.c.l.b16 %v4257
  %v4514 = vunpack.c.l.b16 %v4258
  %v4515 = vunpack.c.l.b16 %v4259
  %v4516 = vunpack.c.l.b16 %v4260
  %v4517 = vunpack.c.l.b16 %v4261
  %v4518 = vunpack.c.l.b16 %v4262
  %v4519 = vunpack.c.l.b16 %v4263
  %v4520 = vunpack.c.l.b16 %v4264
  %v4521 = vunpack.c.l.b16 %v4265
  %v4522 = vunpack.c.l.b16 %v4266
  %v4523 = vunpack.c.l.b16 %v4267
  %v4524 = vunpack.c.l.b16 %v4268
  %v4525 = vunpack.c.l.b16 %v4269
  %v4526 = vunpack.c.l.b16 %v4270
  %v4527 = vunpack.c.l.b16 %v4271
  %v4528 = vunpack.c.l.b16 %v4272
  %v4529 = vunpack.c.l.b16 %v4273
  %v4530 = vunpack.c.l.b16 %v4274
  %v4531 = vunpack.c.l.b16 %v4275
  %v4532 = vunpack.c.l.b16 %v4276
  %v4533 = vunpack.c.l.b16 %v4277
  %v4534 = vunpack.c.l.b16 %v4278
  %v4535 = vunpack.c.l.b16 %v4279
  %v4536 = vunpack.c.l.b16 %v4280
  %v4537 = vunpack.c.l.b16 %v4281
  %v4538 = vunpack.c.l.b16 %v4282
  %v4539 = vunpack.c.l.b16 %v4283
  %v4540 = vunpack.c.l.b16 %v4284
  %v4541 = vunpack.c.l.b16 %v4285
  %v4542 = vunpack.c.l.b16 %v4286
  %v4543 = vunpack.c.l.b16 %v4287
  %v4544 = vunpack.c.l.b16 %v4288
  %v4545 = vunpack.c.l.b16 %v4289
  %v4546 = vunpack.c.l.b16 %v4290
  %v4547 = vunpack.c.l.b16 %v4291
  %v4548 = vunpack.c.l.b16 %v4292
  %v4549 = vunpack.c.l.b16 %v4293
  %v4550 = vunpack.c.l.b16 %v4294
  %v4551 = vunpack.c.l.b16 %v4295
  %v4552 = vunpack.c.l.b16 %v4296
  %v4553 = vunpack.c.l.b16 %v4297
  %v4554 = vunpack.c.l.b16 %v4298
  %v4555 = vunpack.c.l.b16 %v4299
  %v4556 = vunpack.c.l.b16 %v4300
  %v4557 = vunpack.c.l.b16 %v4301
  %v4558 = vunpack.c.l.b16 %v4302
  %v4559 = vunpack.c.l.b16 %v4303
  %v4560 = vunpack.c.l.b16 %v4304
  %v4561 = vunpack.c.l.b16 %v4305
  %v4562 = vunpack.c.l.b16 %v4306
  %v4563 = vunpack.c.l.b16 %v4307
  %v4564 = vunpack.c.l.b16 %v4308
  %v4565 = vunpack.c.l.b16 %v4309
  %v4566 = vunpack.c.l.b16 %v4310
  %v4567 = vunpack.c.l.b16 %v4311
  %v4568 = vunpack.c.l.b16 %v4312
  %v4569 = vunpack.c.l.b16 %v4313
  %v4570 = vunpack.c.l.b16 %v4314
  %v4571 = vunpack.c.l.b16 %v4315
  %v4572 = vunpack.c.l.b16 %v4316
  %v4573 = vunpack.c.l.b16 %v4317
  %v4574 = vunpack.c.l.b16 %v4318
  %v4575 = vunpack.c.l.b16 %v4319
  %v4576 = vunpack.c.l.b16 %v4320
  %v4577 = vunpack.c.l.b16 %v4321
  %v4578 = vunpack.c.l.b16 %v4322
  %v4579 = vunpack.c.l.b16 %v4323
  %v4580 = vunpack.c.l.b16 %v4324
  %v4581 = vunpack.c.l.b16 %v4325
  %v4582 = vunpack.c.l.b16 %v4326
  %v4583 = vunpack.c.l.b16 %v4327
  %v4584 = vunpack.c.l.b16 %v4328
  %v4585 = vunpack.c.l.b16 %v4329
  %v4586 = vunpack.c.l.b16 %v4330
  %v4587 = vunpack.c.l.b16 %v4331
  %v4588 = vunpack.c.l.b16 %v4332
  %v4589 = vunpack.c.l.b16 %v4333
  %v4590 = vunpack.c.l.b16 %v4334
  %v4591 = vunpack.c.l.b16 %v4335
  %v4592 = vunpack.c.l.b16 %v4336
  %v4593 = vpack.c.b16 %v4466, %v4465
  %v4594 = vpack.c.b16 %v4468, %v4467
  %v4595 = vpack.c.b16 %v4470, %v4469
  %v4596 = vpack.c.b16 %v4472, %v4471
  %v4597 = vpack.c.b16 %v4474, %v4473
  %v4598 = vpack.c.b16 %v4476, %v4475
  %v4599 = vpack.c.b16 %v4478, %v4477
  %v4600 = vpack.c.b16 %v4480, %v4479
  %v4601 = vpack.c.b16 %v4482, %v4481
  %v4602 = vpack.c.b16 %v4484, %v4483
  %v4603 = vpack.c.b16 %v4486, %v4485
  %v4604 = vpack.c.b16 %v4488, %v4487
  %v4605 = vpack.c.b16 %v4490, %v4489
  %v4606 = vpack.c.b16 %v4492, %v4491
  %v4607 = vpack.c.b16 %v4494, %v4493
  %v4608 = vpack.c.b16 %v4496, %v4495
  %v4609 = vpack.c.b16 %v4498, %v4497
  %v4610 = vpack.c.b16 %v4500, %v4499
  %v4611 = vpack.c.b16 %v4502, %v4501
  %v4612 = vpack.c.b16 %v4504, %v4503
  %v4613 = vpack.c.b16 %v4506, %v4505
  %v4614 = vpack.c.b16 %v4508, %v4507
  %v4615 = vpack.c.b16 %v4510, %v4509
  %v4616 = vpack.c.b16 %v4512, %v4511
  %v4617 = vpack.c.b16 %v4514, %v4513
  %v4618 = vpack.c.b16 %v4516, %v4515
  %v4619 = vpack.c.b16 %v4518, %v4517
  %v4620 = vpack.c.b16 %v4520, %v4519
  %v4621 = vpack.c.b16 %v4522, %v4521
  %v4622 = vpack.c.b16 %v4524, %v4523
  %v4623 = vpack.c.b16 %v4526, %v4525
  %v4624 = vpack.c.b16 %v4528, %v4527
  %v4625 = vpack.c.b16 %v4530, %v4529
  %v4626 = vpack.c.b16 %v4532, %v4531
  %v4627 = vpack.c.b16 %v4534, %v4533
  %v4628 = vpack.c.b16 %v4536, %v4535
  %v4629 = vpack.c.b16 %v4538, %v4537
  %v4630 = vpack.c.b16 %v4540, %v4539
  %v4631 = vpack.c.b16 %v4542, %v4541
  %v4632 = vpack.c.b16 %v4544, %v4543
  %v4633 = vpack.c.b16 %v4546, %v4545
  %v4634 = vpack.c.b16 %v4548, %v4547
  %v4635 = vpack.c.b16 %v4550, %v4549
  %v4636 = vpack.c.b16 %v4552, %v4551
  %v4637 = vpack.c.b16 %v4554, %v4553
  %v4638 = vpack.c.b16 %v4556, %v4555
  %v4639 = vpack.c.b16 %v4558, %v4557
  %v4640 = vpack.c.b16 %v4560, %v4559
  %v4641 = vpack.c.b16 %v4562, %v4561
  %v4642 = vpack.c.b16 %v4564, %v4563
  %v4643 = vpack.c.b16 %v4566, %v4565
  %v4644 = vpack.c.b16 %v4568, %v4567
  %v4645 = vpack.c.b16 %v4570, %v4569
  %v4646 = vpack.c.b16 %v4572, %v4571
  %v4647 = vpack.c.b16 %v4574, %v4573
  %v4648 = vpack.c.b16 %v4576, %v4575
  %v4649 = vpack.c.b16 %v4578, %v4577
  %v4650 = vpack.c.b16 %v4580, %v4579
  %v4651 = vpack.c.b16 %v4582, %v4581
  %v4652 = vpack.c.b16 %v4584, %v4583
  %v4653 = vpack.c.b16 %v4586, %v4585
  %v4654 = vpack.c.b16 %v4588, %v4587
  %v4655 = vpack.c.b16 %v4590, %v4589
  %v4656 = vpack.c.b16 %v4592, %v4591
  %4721 = vmatprep.subr.bf16.mxu0 0
  %4722 = vmatpush1.bf16.msra.mxu0 %v4600
  %4723 = vmatprep.subr.bf16.mxu0 0
  %4724 = vmatpush1.bf16.msra.mxu0 %v4599
  %4725 = vmatprep.subr.bf16.mxu0 0
  %4726 = vmatpush1.bf16.msra.mxu0 %v4598
  %4727 = vmatprep.subr.bf16.mxu0 0
  %4728 = vmatpush1.bf16.msra.mxu0 %v4597
  %4729 = vmatprep.subr.bf16.mxu0 0
  %4730 = vmatpush1.bf16.msra.mxu0 %v4596
  %4731 = vmatprep.subr.bf16.mxu0 0
  %4732 = vmatpush1.bf16.msra.mxu0 %v4595
  %4733 = vmatprep.subr.bf16.mxu0 0
  %4734 = vmatpush1.bf16.msra.mxu0 %v4594
  %4735 = vmatprep.subr.bf16.mxu0 0
  %4736 = vmatpush1.bf16.msra.mxu0 %v4593
  %4737 = vmatprep.subr.bf16.mxu0 0
  %4738 = vmatpush2.bf16.msra.mxu0 %v4608
  %4739 = vmatprep.subr.bf16.mxu0 0
  %4740 = vmatpush2.bf16.msra.mxu0 %v4607
  %4741 = vmatprep.subr.bf16.mxu0 0
  %4742 = vmatpush2.bf16.msra.mxu0 %v4606
  %4743 = vmatprep.subr.bf16.mxu0 0
  %4744 = vmatpush2.bf16.msra.mxu0 %v4605
  %4745 = vmatprep.subr.bf16.mxu0 0
  %4746 = vmatpush2.bf16.msra.mxu0 %v4604
  %4747 = vmatprep.subr.bf16.mxu0 0
  %4748 = vmatpush2.bf16.msra.mxu0 %v4603
  %4749 = vmatprep.subr.bf16.mxu0 0
  %4750 = vmatpush2.bf16.msra.mxu0 %v4602
  %4751 = vmatprep.subr.bf16.mxu0 0
  %4752 = vmatpush2.bf16.msra.mxu0 %v4601
  %4753 = vmatprep.mubr.bf16.mxu0 %v4155
  %4754 = vmatmul.mubr.bf16.gmra.mxu0 %v4147
  %v4755 = vpop.f32.mrf.mxu0
  %v4756 = vadd.f32 0.0, %v4755
  %v4757 = vpop.f32.mrf.mxu0
  %v4758 = vpop.f32.mrf.mxu0
  %v4759 = vadd.f32 0.0, %v4758
  %v4760 = vpop.f32.mrf.mxu0
  %4761 = vmatprep.mubr.bf16.mxu0 %v4159
  %4762 = vmatmul.mubr.bf16.gmra.mxu0 %v4151
  %v4763 = vpop.f32.mrf.mxu0
  %v4764 = vadd.f32 0.0, %v4763
  %v4765 = vpop.f32.mrf.mxu0
  %v4766 = vpop.f32.mrf.mxu0
  %v4767 = vadd.f32 0.0, %v4766
  %v4768 = vpop.f32.mrf.mxu0
  %4769 = vdwg.mxu0
  %4770 = vmatprep.subr.bf16.mxu0 0
  %4771 = vmatpush1.bf16.msra.mxu0 %v4616
  %4772 = vmatprep.subr.bf16.mxu0 0
  %4773 = vmatpush1.bf16.msra.mxu0 %v4615
  %4774 = vmatprep.subr.bf16.mxu0 0
  %4775 = vmatpush1.bf16.msra.mxu0 %v4614
  %4776 = vmatprep.subr.bf16.mxu0 0
  %4777 = vmatpush1.bf16.msra.mxu0 %v4613
  %4778 = vmatprep.subr.bf16.mxu0 0
  %4779 = vmatpush1.bf16.msra.mxu0 %v4612
  %4780 = vmatprep.subr.bf16.mxu0 0
  %4781 = vmatpush1.bf16.msra.mxu0 %v4611
  %4782 = vmatprep.subr.bf16.mxu0 0
  %4783 = vmatpush1.bf16.msra.mxu0 %v4610
  %4784 = vmatprep.subr.bf16.mxu0 0
  %4785 = vmatpush1.bf16.msra.mxu0 %v4609
  %4786 = vmatprep.subr.bf16.mxu0 0
  %4787 = vmatpush2.bf16.msra.mxu0 %v4624
  %4788 = vmatprep.subr.bf16.mxu0 0
  %4789 = vmatpush2.bf16.msra.mxu0 %v4623
  %4790 = vmatprep.subr.bf16.mxu0 0
  %4791 = vmatpush2.bf16.msra.mxu0 %v4622
  %4792 = vmatprep.subr.bf16.mxu0 0
  %4793 = vmatpush2.bf16.msra.mxu0 %v4621
  %4794 = vmatprep.subr.bf16.mxu0 0
  %4795 = vmatpush2.bf16.msra.mxu0 %v4620
  %4796 = vmatprep.subr.bf16.mxu0 0
  %4797 = vmatpush2.bf16.msra.mxu0 %v4619
  %4798 = vmatprep.subr.bf16.mxu0 0
  %4799 = vmatpush2.bf16.msra.mxu0 %v4618
  %4800 = vmatprep.subr.bf16.mxu0 0
  %4801 = vmatpush2.bf16.msra.mxu0 %v4617
  %4802 = vmatprep.mubr.bf16.mxu0 %v4171
  %4803 = vmatmul.mubr.bf16.gmra.mxu0 %v4163
  %v4804 = vpop.f32.mrf.mxu0
  %v4805 = vadd.f32 %v4756, %v4804
  %v4806 = vpop.f32.mrf.mxu0
  %v4807 = vpop.f32.mrf.mxu0
  %v4808 = vadd.f32 %v4759, %v4807
  %v4809 = vpop.f32.mrf.mxu0
  %4810 = vmatprep.mubr.bf16.mxu0 %v4175
  %4811 = vmatmul.mubr.bf16.gmra.mxu0 %v4167
  %v4812 = vpop.f32.mrf.mxu0
  %v4813 = vadd.f32 %v4764, %v4812
  %v4814 = vpop.f32.mrf.mxu0
  %v4815 = vpop.f32.mrf.mxu0
  %v4816 = vadd.f32 %v4767, %v4815
  %v4817 = vpop.f32.mrf.mxu0
  %4818 = vdwg.mxu0
  %4819 = vmatprep.subr.bf16.mxu0 0
  %4820 = vmatpush1.bf16.msra.mxu0 %v4632
  %4821 = vmatprep.subr.bf16.mxu0 0
  %4822 = vmatpush1.bf16.msra.mxu0 %v4631
  %4823 = vmatprep.subr.bf16.mxu0 0
  %4824 = vmatpush1.bf16.msra.mxu0 %v4630
  %4825 = vmatprep.subr.bf16.mxu0 0
  %4826 = vmatpush1.bf16.msra.mxu0 %v4629
  %4827 = vmatprep.subr.bf16.mxu0 0
  %4828 = vmatpush1.bf16.msra.mxu0 %v4628
  %4829 = vmatprep.subr.bf16.mxu0 0
  %4830 = vmatpush1.bf16.msra.mxu0 %v4627
  %4831 = vmatprep.subr.bf16.mxu0 0
  %4832 = vmatpush1.bf16.msra.mxu0 %v4626
  %4833 = vmatprep.subr.bf16.mxu0 0
  %4834 = vmatpush1.bf16.msra.mxu0 %v4625
  %4835 = vmatprep.subr.bf16.mxu0 0
  %4836 = vmatpush2.bf16.msra.mxu0 %v4640
  %4837 = vmatprep.subr.bf16.mxu0 0
  %4838 = vmatpush2.bf16.msra.mxu0 %v4639
  %4839 = vmatprep.subr.bf16.mxu0 0
  %4840 = vmatpush2.bf16.msra.mxu0 %v4638
  %4841 = vmatprep.subr.bf16.mxu0 0
  %4842 = vmatpush2.bf16.msra.mxu0 %v4637
  %4843 = vmatprep.subr.bf16.mxu0 0
  %4844 = vmatpush2.bf16.msra.mxu0 %v4636
  %4845 = vmatprep.subr.bf16.mxu0 0
  %4846 = vmatpush2.bf16.msra.mxu0 %v4635
  %4847 = vmatprep.subr.bf16.mxu0 0
  %4848 = vmatpush2.bf16.msra.mxu0 %v4634
  %4849 = vmatprep.subr.bf16.mxu0 0
  %4850 = vmatpush2.bf16.msra.mxu0 %v4633
  %4851 = vmatprep.mubr.bf16.mxu0 %v4187
  %4852 = vmatmul.mubr.bf16.gmra.mxu0 %v4179
  %v4853 = vpop.f32.mrf.mxu0
  %v4854 = vadd.f32 %v4805, %v4853
  %v4855 = vpop.f32.mrf.mxu0
  %v4856 = vpop.f32.mrf.mxu0
  %v4857 = vadd.f32 %v4808, %v4856
  %v4858 = vpop.f32.mrf.mxu0
  %4859 = vmatprep.mubr.bf16.mxu0 %v4191
  %4860 = vmatmul.mubr.bf16.gmra.mxu0 %v4183
  %v4861 = vpop.f32.mrf.mxu0
  %v4862 = vadd.f32 %v4813, %v4861
  %v4863 = vpop.f32.mrf.mxu0
  %v4864 = vpop.f32.mrf.mxu0
  %v4865 = vadd.f32 %v4816, %v4864
  %v4866 = vpop.f32.mrf.mxu0
  %4867 = vdwg.mxu0
  %4868 = vmatprep.subr.bf16.mxu0 0
  %4869 = vmatpush1.bf16.msra.mxu0 %v4648
  %4870 = vmatprep.subr.bf16.mxu0 0
  %4871 = vmatpush1.bf16.msra.mxu0 %v4647
  %4872 = vmatprep.subr.bf16.mxu0 0
  %4873 = vmatpush1.bf16.msra.mxu0 %v4646
  %4874 = vmatprep.subr.bf16.mxu0 0
  %4875 = vmatpush1.bf16.msra.mxu0 %v4645
  %4876 = vmatprep.subr.bf16.mxu0 0
  %4877 = vmatpush1.bf16.msra.mxu0 %v4644
  %4878 = vmatprep.subr.bf16.mxu0 0
  %4879 = vmatpush1.bf16.msra.mxu0 %v4643
  %4880 = vmatprep.subr.bf16.mxu0 0
  %4881 = vmatpush1.bf16.msra.mxu0 %v4642
  %4882 = vmatprep.subr.bf16.mxu0 0
  %4883 = vmatpush1.bf16.msra.mxu0 %v4641
  %4884 = vmatprep.subr.bf16.mxu0 0
  %4885 = vmatpush2.bf16.msra.mxu0 %v4656
  %4886 = vmatprep.subr.bf16.mxu0 0
  %4887 = vmatpush2.bf16.msra.mxu0 %v4655
  %4888 = vmatprep.subr.bf16.mxu0 0
  %4889 = vmatpush2.bf16.msra.mxu0 %v4654
  %4890 = vmatprep.subr.bf16.mxu0 0
  %4891 = vmatpush2.bf16.msra.mxu0 %v4653
  %4892 = vmatprep.subr.bf16.mxu0 0
  %4893 = vmatpush2.bf16.msra.mxu0 %v4652
  %4894 = vmatprep.subr.bf16.mxu0 0
  %4895 = vmatpush2.bf16.msra.mxu0 %v4651
  %4896 = vmatprep.subr.bf16.mxu0 0
  %4897 = vmatpush2.bf16.msra.mxu0 %v4650
  %4898 = vmatprep.subr.bf16.mxu0 0
  %4899 = vmatpush2.bf16.msra.mxu0 %v4649
  %4900 = vmatprep.mubr.bf16.mxu0 %v4203
  %4901 = vmatmul.mubr.bf16.gmra.mxu0 %v4195
  %v4902 = vpop.f32.mrf.mxu0
  %v4903 = vadd.f32 %v4854, %v4902
  %v4904 = vpop.f32.mrf.mxu0
  %v4905 = vpop.f32.mrf.mxu0
  %v4906 = vadd.f32 %v4857, %v4905
  %v4907 = vpop.f32.mrf.mxu0
  %4908 = vmatprep.mubr.bf16.mxu0 %v4207
  %4909 = vmatmul.mubr.bf16.gmra.mxu0 %v4199
  %v4910 = vpop.f32.mrf.mxu0
  %v4911 = vadd.f32 %v4862, %v4910
  %v4912 = vpop.f32.mrf.mxu0
  %v4913 = vpop.f32.mrf.mxu0
  %v4914 = vadd.f32 %v4865, %v4913
  %v4915 = vpop.f32.mrf.mxu0
  %4916 = vdwg.mxu0
  %v4917 = vld [vmem:[%s8] sm:$0x1]
  %v4918 = vld [vmem:[%s9] sm:$0x1]
  %v4919 = vadd.f32 %v4903, %v4906
  %v4920 = vadd.f32 %v4919, %v4911
  %v4921 = vadd.f32 %v4920, %v4914
  %v4922 = vrot.slane %v4921, 4
  %v4923 = vadd.f32 %v4921, %v4922
  %v4924 = vrot.slane %v4923, 2
  %v4925 = vadd.f32 %v4923, %v4924
  %v4926 = vrot.slane %v4925, 1
  %v4927 = vadd.f32 %v4925, %v4926
  %v4928 = vrcp.pop 32.0
  %v4929 = vmul.f32 %v4927, %v4928
  %v4930 = vsub.f32 %v4903, %v4929
  %v4931 = vsub.f32 %v4906, %v4929
  %v4932 = vsub.f32 %v4911, %v4929
  %v4933 = vsub.f32 %v4914, %v4929
  %v4934 = vmul.f32 %v4930, %v4930
  %v4935 = vmul.f32 %v4931, %v4931
  %v4936 = vmul.f32 %v4932, %v4932
  %v4937 = vmul.f32 %v4933, %v4933
  %v4938 = vadd.f32 %v4934, %v4935
  %v4939 = vadd.f32 %v4938, %v4936
  %v4940 = vadd.f32 %v4939, %v4937
  %v4941 = vrot.slane %v4940, 4
  %v4942 = vadd.f32 %v4940, %v4941
  %v4943 = vrot.slane %v4942, 2
  %v4944 = vadd.f32 %v4942, %v4943
  %v4945 = vrot.slane %v4944, 1
  %v4946 = vadd.f32 %v4944, %v4945
  %v4947 = vmul.f32 %v4946, %v4928
  %v4948 = vadd.f32 %v4947, 1e-05
  %v4949 = vrsqrt.pop %v4948
  %v4950 = vmul.f32 %v4930, %v4949
  %v4951 = vmul.f32 %v4931, %v4949
  %v4952 = vmul.f32 %v4932, %v4949
  %v4953 = vmul.f32 %v4933, %v4949
  %v4955 = vlaneseq
  %v4956 = vshrl.u32 %v4955, 7
  %v4957 = vsub.s32 0, %v4956
  %v4958 = vrot.slane %v4917, %v4957
  %v4960 = vmul.f32 %v4950, %v4958
  %v4961 = vmul.f32 %v4951, %v4958
  %v4962 = vmul.f32 %v4952, %v4958
  %v4963 = vmul.f32 %v4953, %v4958
  %v4965 = vlaneseq
  %v4966 = vshrl.u32 %v4965, 7
  %v4967 = vsub.s32 0, %v4966
  %v4968 = vrot.slane %v4918, %v4967
  %v4970 = vadd.f32 %v4960, %v4968
  %v4971 = vadd.f32 %v4961, %v4968
  %v4972 = vadd.f32 %v4962, %v4968
  %v4973 = vadd.f32 %v4963, %v4968
  %v4974 = vmul.f32 %v4970, 0.2
  %v4975 = vmul.f32 %v4971, 0.2
  %v4976 = vmul.f32 %v4972, 0.2
  %v4977 = vmul.f32 %v4973, 0.2
  %v4978 = vmax.f32 %v4970, %v4974
  %v4979 = vmax.f32 %v4971, %v4975
  %v4980 = vmax.f32 %v4972, %v4976
  %v4981 = vmax.f32 %v4973, %v4977
  %v4982 = vld [vmem:[%s10] sm:$0xff]
  %v4983 = vld [vmem:[%s10 + $0x8] sm:$0xff]
  %v4984 = vmul.f32 %v4978, %v4982
  %v4985 = vmul.f32 %v4979, %v4983
  %v4986 = vmul.f32 %v4980, %v4982
  %v4987 = vmul.f32 %v4981, %v4983
  %4988 = vadd.xlane.f32.xlu0 %v4984
  %v4989 = vpop.xlane.xlu0 %4988
  %4990 = vadd.xlane.f32.xlu0 %v4985
  %v4991 = vpop.xlane.xlu0 %4990
  %4992 = vadd.xlane.f32.xlu0 %v4986
  %v4993 = vpop.xlane.xlu0 %4992
  %4994 = vadd.xlane.f32.xlu0 %v4987
  %v4995 = vpop.xlane.xlu0 %4994
  %v5000 = vlaneseq
  %v5001 = vshrl.u32 %v5000, 7
  %v5002 = vsub.s32 %v651, %v5001
  %v5003 = vrot.slane %v4989, %v5002
  %v5004 = vadd.s32 %v651, 4294967288
  %v5005 = vlaneseq
  %v5006 = vshrl.u32 %v5005, 7
  %v5007 = vsub.s32 %v5004, %v5006
  %v5008 = vrot.slane %v4991, %v5007
  %vm5009 = vcmask 130112
  %v5010 = vsel %vm5009, %v5008, %v5003
  %v5011 = vlaneseq
  %v5012 = vshrl.u32 %v5011, 7
  %v5013 = vsub.s32 %v651, %v5012
  %v5014 = vrot.slane %v4993, %v5013
  %v5015 = vlaneseq
  %v5016 = vshrl.u32 %v5015, 7
  %v5017 = vsub.s32 %v5004, %v5016
  %v5018 = vrot.slane %v4995, %v5017
  %v5019 = vsel %vm5009, %v5018, %v5014
  %vm5020 = vcmask 1041409
  %v5021 = vsel %vm5020, %v5019, %v5010
  %vm5023 = vcmask 123904
  %v5024 = vsel %vm5023, %v5021, 0.0
  %5025 = vadd.xlane.f32.xlu0 %v5024
  %v5026 = vpop.xlane.xlu0 %5025
  %v5027 = vsub.f32 0.0, %v5026
  %v5028 = vmul.f32 %v5027, 1.442695
  %v5029 = vpow.pop %v5028
  %v5030 = vadd.f32 %v5029, 1.0
  %v5031 = vrcp.pop %v5030
  %v5032 = vmul.f32 1.0, %v5031
  %vm5033 = vcmask 1024
  %5034 = vst.msk [vmem:[%s11] sm:$0x3] %vm5033, %v5032
  // Predicated region
  $region46: #{discriminator_forward.1} parent=0 // pred_check
    _
  $region47: #{discriminator_forward.1} parent=0 // pred_check_branch
    %5036 = sbr.rel (0) target = $region49
  $region48: #{discriminator_forward.1} parent=0 // pred_region
    _
  $region49: #{discriminator_forward.1} parent=0 // pred_fallthru
    _
  // Predicated region
  $region50: #{discriminator_forward.1} parent=0 // pred_check
    _
  $region51: #{discriminator_forward.1} parent=0 // pred_check_branch
    %5038 = sbr.rel (0) target = $region53
  $region52: #{discriminator_forward.1} parent=0 // pred_region
    _
  $region53: #{discriminator_forward.1} parent=0 // pred_fallthru
    _

</llo_original>
